<compile_context>
chip_gen: v6e
topology: v6e:2x2x1
jax: 0.10.0
libtpu: 0.0.40
codegen_flags: <defaults>
</compile_context>

<pallas_src>
import math
import functools

import jax
import jax.numpy as jnp
from jax.experimental import pallas as pl
from jax.experimental.pallas import tpu as pltpu


# 48 MiB: above the 32 MiB default (uses v5e/v6e's 128 MiB headroom) while staying safely
# below v7x's 64 MiB physical VMEM.
_VMEM_LIMIT = 48 * 1024 * 1024


# ----------------------------- in-kernel helpers -----------------------------

def _layernorm(x, gamma, beta, eps):
    """LayerNorm over the last axis (biased variance, like torch.nn.LayerNorm), f32 math."""
    mean = jnp.mean(x, axis=-1, keepdims=True)
    xc = x - mean
    var = jnp.mean(xc * xc, axis=-1, keepdims=True)
    return xc * jax.lax.rsqrt(var + eps) * gamma + beta


def _sparsemax_rows(z):
    """Sparsemax along the last axis of a 2-D f32 array (rows are independent).

    Support-counting formulation (equivalent to the sort-based torch Sparsemax, ties
    handled identically):
      rank_j = #{i : z_i >= z_j},  ssum_j = sum_{i : z_i >= z_j} z_i
      j in support  iff  1 + rank_j * z_j > ssum_j
      tau = (sum_{support} z - 1) / |support|;   p = max(z - tau, 0)

    rank / ssum are accumulated over cyclic shifts, fully unrolled at trace time (S is a
    static constant), so the loop is pure VPU/XLU work with no fori_loop overhead and only
    two cross-lane reductions are emitted in total.
    # TODO(synk): for large S switch to a chunked broadcast-compare / sort+cumsum form.
    """
    n = z.shape[-1]
    rank = jnp.zeros_like(z)
    ssum = jnp.zeros_like(z)
    zr = z
    for i in range(n):                                  # static unroll
        ge = (zr >= z).astype(jnp.float32)
        rank = rank + ge
        ssum = ssum + ge * zr
        if i + 1 < n:
            zr = jnp.roll(zr, -1, axis=-1)
    in_supp = (1.0 + rank * z) > ssum
    k_supp = jnp.sum(in_supp.astype(jnp.float32), axis=-1, keepdims=True)
    s_supp = jnp.sum(jnp.where(in_supp, z, 0.0), axis=-1, keepdims=True)
    tau = (s_supp - 1.0) / k_supp
    return jnp.maximum(z - tau, 0.0)


# ------------------------------- fused kernel --------------------------------

def _transformer_kernel(src_ref, emb_w_ref, peb_ref,
                        wqkv_ref, bqkv_ref, wo_ref, bo_ref,
                        ln1_g_ref, ln1_b_ref,
                        w1_ref, b1_ref, w2_ref, b2_ref,
                        ln2_g_ref, ln2_b_ref,
                        out_w_ref, out_b_ref,
                        logits_ref, *attn_refs,
                        nhead, eps):
    f32, bf16 = jnp.float32, jnp.bfloat16
    B, S, input_dim = src_ref.shape
    D = emb_w_ref.shape[1]
    dk = D // nhead
    BS = B * S
    num_layers = len(attn_refs)
    scale = 1.0 / math.sqrt(dk)

    # ---- embedding: sqrt(input_dim) folded into weight, scaled bias folded into PE table ----
    x0 = src_ref[...].reshape(BS, input_dim).astype(bf16)
    e = jnp.dot(x0, emb_w_ref[...], preferred_element_type=f32)          # (BS, D)
    x = (e.reshape(B, S, D) + peb_ref[...]).reshape(BS, D)               # + (pe + b*scale)
    # TODO(synk): dropout layers are identity here (eval-mode semantics).

    for l in range(num_layers):                                          # static layer loop
        # ---- packed QKV projection: one MXU pass over all B*S rows ----
        qkv = jnp.dot(x.astype(bf16), wqkv_ref[l],
                      preferred_element_type=f32) + bqkv_ref[l]          # (BS, 3D) f32
        qkvb = qkv.astype(bf16)                                          # one slab cast

        # ---- split heads: lane slice + stack -> head-major (B*H, S, dk).  (Lane-splitting
        #      reshapes are not reliably lowered, so heads are gathered via slices.) ----
        def heads(base, qkvb=qkvb):
            return jnp.stack(
                [qkvb[:, base + h * dk: base + (h + 1) * dk].reshape(B, S, dk)
                 for h in range(nhead)], axis=1).reshape(B * nhead, S, dk)
        q3, k3, v3 = heads(0), heads(D), heads(2 * D)

        # ---- one batched contraction for all (batch, head) logits; sparsemax over all rows ----
        z = jnp.einsum('nqd,nkd->nqk', q3, k3,
                       preferred_element_type=f32) * scale               # (B*H, S, S) f32
        p = _sparsemax_rows(z.reshape(B * nhead * S, S))                 # (B*H*S, S) f32
        attn_refs[l][...] = p.reshape(B, nhead, S, S)                    # single contiguous store
        # TODO(synk): mask / masked_fill path is not implemented; forward assumes mask=None.

        # ---- attention-weighted values; merge heads back to a lane-dense (BS, D) slab ----
        ctx3 = jnp.einsum('nqk,nkd->nqd',
                          p.reshape(B * nhead, S, S).astype(bf16), v3,
                          preferred_element_type=f32)                    # (B*H, S, dk) f32
        ctx4 = ctx3.reshape(B, nhead, S, dk)
        ctx = jnp.concatenate(
            [ctx4[:, h].reshape(BS, dk) for h in range(nhead)], axis=-1)  # (BS, D)

        # ---- output projection + residual + LayerNorm 1 ----
        attn_out = jnp.dot(ctx.astype(bf16), wo_ref[l],
                           preferred_element_type=f32) + bo_ref[l]
        x1 = _layernorm(x + attn_out, ln1_g_ref[l], ln1_b_ref[l], eps)

        # ---- feed-forward (matmul + ReLU + matmul) + residual + LayerNorm 2 ----
        h1 = jnp.maximum(
            jnp.dot(x1.astype(bf16), w1_ref[l], preferred_element_type=f32) + b1_ref[l],
            0.0)
        ff = jnp.dot(h1.astype(bf16), w2_ref[l],
                     preferred_element_type=f32) + b2_ref[l]
        x = _layernorm(x1 + ff, ln2_g_ref[l], ln2_b_ref[l], eps)         # (BS, D)

    # ---- classifier head: mean over sequence + Linear(d_model, num_classes) ----
    pooled = jnp.mean(x.reshape(B, S, D), axis=1)                        # (B, D)
    logits_ref[...] = (jnp.dot(pooled.astype(bf16), out_w_ref[...],
                               preferred_element_type=f32) + out_b_ref[...])


# ------------------------------- kernel wrapper -------------------------------

def transformer_forward(src, params, *, nhead, eps=1e-5):
    """src: (B, S, input_dim) f32 -> (logits (B, num_classes), [attn (B, H, S, S)] per layer)."""
    B, S, _ = src.shape
    num_layers = params["wqkv_w"].shape[0]
    num_classes = params["out_w"].shape[1]

    out_shape = ((jax.ShapeDtypeStruct((B, num_classes), jnp.float32),)
                 + tuple(jax.ShapeDtypeStruct((B, nhead, S, S), jnp.float32)
                         for _ in range(num_layers)))

    outs = pl.pallas_call(
        functools.partial(_transformer_kernel, nhead=nhead, eps=eps),
        out_shape=out_shape,
        compiler_params=pltpu.CompilerParams(vmem_limit_bytes=_VMEM_LIMIT),
    )(src,
      params["emb_w"], params["peb"][:S],
      params["wqkv_w"], params["wqkv_b"], params["wo_w"], params["wo_b"],
      params["ln1_g"], params["ln1_b"],
      params["ff1_w"], params["ff1_b"], params["ff2_w"], params["ff2_b"],
      params["ln2_g"], params["ln2_b"],
      params["out_w"], params["out_b"])
    return outs[0], list(outs[1:])


# --------------------------------- model glue ---------------------------------

def make_positional_encoding(max_len, d_model):
    position = jnp.arange(max_len, dtype=jnp.float32)[:, None]
    div_term = jnp.exp(
        jnp.arange(0, d_model, 2, dtype=jnp.float32) * (-math.log(10000.0) / d_model))
    pe = jnp.zeros((max_len, d_model), jnp.float32)
    pe = pe.at[:, 0::2].set(jnp.sin(position * div_term))
    pe = pe.at[:, 1::2].set(jnp.cos(position * div_term))
    return pe


def _init_linear(key, fan_in, fan_out):
    # deterministic init mimicking torch.nn.Linear's U(-1/sqrt(fan_in), 1/sqrt(fan_in))
    k1, k2 = jax.random.split(key)
    bound = 1.0 / math.sqrt(fan_in)
    w = jax.random.uniform(k1, (fan_in, fan_out), jnp.float32, -bound, bound)
    b = jax.random.uniform(k2, (1, fan_out), jnp.float32, -bound, bound)
    return w, b


def init_params(key, input_dim, d_model, num_layers, nhead, dim_feedforward, num_classes,
                max_len=64):
    assert d_model % nhead == 0, "d_model must be divisible by nhead"
    bf16 = jnp.bfloat16
    keys = jax.random.split(key, num_layers + 2)

    emb_w, emb_b = _init_linear(keys[0], input_dim, d_model)
    # PyTorch reference scales by sqrt(src.size(-1)) == sqrt(input_dim); fold it into the
    # embedding weight and fold the scaled bias into the positional-encoding table.
    scale_in = math.sqrt(input_dim)
    pe = make_positional_encoding(max_len, d_model)

    names = ["wqkv_w", "wqkv_b", "wo_w", "wo_b", "ff1_w", "ff1_b", "ff2_w", "ff2_b",
             "ln1_g", "ln1_b", "ln2_g", "ln2_b"]
    stacks = {n: [] for n in names}
    for li in range(num_layers):
        lk = jax.random.split(keys[1 + li], 6)
        wq_w, wq_b = _init_linear(lk[0], d_model, d_model)
        wk_w, wk_b = _init_linear(lk[1], d_model, d_model)
        wv_w, wv_b = _init_linear(lk[2], d_model, d_model)
        fc_w, fc_b = _init_linear(lk[3], d_model, d_model)
        ff1_w, ff1_b = _init_linear(lk[4], d_model, dim_feedforward)
        ff2_w, ff2_b = _init_linear(lk[5], dim_feedforward, d_model)
        # Q/K/V packed into one (D, 3D) matmul; matmul weights pre-cast to bf16 once here.
        stacks["wqkv_w"].append(jnp.concatenate([wq_w, wk_w, wv_w], axis=1).astype(bf16))
        stacks["wqkv_b"].append(jnp.concatenate([wq_b, wk_b, wv_b], axis=1))
        stacks["wo_w"].append(fc_w.astype(bf16))
        stacks["wo_b"].append(fc_b)
        stacks["ff1_w"].append(ff1_w.astype(bf16))
        stacks["ff1_b"].append(ff1_b)
        stacks["ff2_w"].append(ff2_w.astype(bf16))
        stacks["ff2_b"].append(ff2_b)
        stacks["ln1_g"].append(jnp.ones((1, d_model), jnp.float32))
        stacks["ln1_b"].append(jnp.zeros((1, d_model), jnp.float32))
        stacks["ln2_g"].append(jnp.ones((1, d_model), jnp.float32))
        stacks["ln2_b"].append(jnp.zeros((1, d_model), jnp.float32))
    out_w, out_b = _init_linear(keys[-1], d_model, num_classes)

    params = {n: jnp.stack(v, axis=0) for n, v in stacks.items()}   # (L, ...) stacks
    params.update(
        emb_w=(emb_w * scale_in).astype(bf16),      # sqrt(input_dim) folded into the weight
        peb=pe + emb_b * scale_in,                  # pe[:max_len] + scaled embedding bias
        out_w=out_w.astype(bf16), out_b=out_b)
    return params


# ------------------------------------ main ------------------------------------

if __name__ == "__main__":
    input_dim = 16
    d_model = 32
    num_layers = 2
    nhead = 4
    dim_feedforward = 64
    num_classes = 10
    B, S = 2, 8

    key = jax.random.PRNGKey(0)
    pkey, xkey = jax.random.split(key)
    params = init_params(pkey, input_dim, d_model, num_layers, nhead,
                         dim_feedforward, num_classes, max_len=64)
    src = jax.random.normal(xkey, (B, S, input_dim), jnp.float32)

    fwd = jax.jit(functools.partial(transformer_forward, nhead=nhead))
    logits, attentions = fwd(src, params)
    jax.block_until_ready(logits)
    for a in attentions:
        jax.block_until_ready(a)

    assert logits.shape == (B, num_classes)
    assert len(attentions) == num_layers
    assert attentions[0].shape == (B, nhead, S, S)
    # sparsemax rows must sum to 1 and be non-negative
    row_sums = jnp.sum(attentions[0], axis=-1)
    assert bool(jnp.all(jnp.abs(row_sums - 1.0) < 1e-4))
    assert bool(jnp.all(attentions[0] >= 0.0))
    assert bool(jnp.all(jnp.isfinite(logits)))

    print("KERNEL_OK")
</pallas_src>

<mosaic_0001>
module attributes {stable_mosaic.version = 11 : i64} {
  func.func @_transformer_kernel(%arg0: memref<2x8x16xf32, #tpu.memory_space<vmem>>, %arg1: memref<16x32xbf16, #tpu.memory_space<vmem>>, %arg2: memref<8x32xf32, #tpu.memory_space<vmem>>, %arg3: memref<2x32x96xbf16, #tpu.memory_space<vmem>>, %arg4: memref<2x1x96xf32, #tpu.memory_space<vmem>>, %arg5: memref<2x32x32xbf16, #tpu.memory_space<vmem>>, %arg6: memref<2x1x32xf32, #tpu.memory_space<vmem>>, %arg7: memref<2x1x32xf32, #tpu.memory_space<vmem>>, %arg8: memref<2x1x32xf32, #tpu.memory_space<vmem>>, %arg9: memref<2x32x64xbf16, #tpu.memory_space<vmem>>, %arg10: memref<2x1x64xf32, #tpu.memory_space<vmem>>, %arg11: memref<2x64x32xbf16, #tpu.memory_space<vmem>>, %arg12: memref<2x1x32xf32, #tpu.memory_space<vmem>>, %arg13: memref<2x1x32xf32, #tpu.memory_space<vmem>>, %arg14: memref<2x1x32xf32, #tpu.memory_space<vmem>>, %arg15: memref<32x10xbf16, #tpu.memory_space<vmem>>, %arg16: memref<1x10xf32, #tpu.memory_space<vmem>>, %arg17: memref<2x10xf32, #tpu.memory_space<vmem>>, %arg18: memref<2x4x8x8xf32, #tpu.memory_space<vmem>>, %arg19: memref<2x4x8x8xf32, #tpu.memory_space<vmem>>) attributes {dimension_semantics = [], scalar_prefetch = 0 : i64, scratch_operands = 0 : i64, tpu.core_type = #tpu.core_type<tc>} {
    %c0 = arith.constant 0 : index
    %c0_0 = arith.constant 0 : index
    %c0_1 = arith.constant 0 : index
    %0 = vector.load %arg0[%c0, %c0_0, %c0_1] : memref<2x8x16xf32, #tpu.memory_space<vmem>>, vector<2x8x16xf32>
    %1 = vector.shape_cast %0 : vector<2x8x16xf32> to vector<16x16xf32>
    %2 = arith.truncf %1 : vector<16x16xf32> to vector<16x16xbf16>
    %c0_2 = arith.constant 0 : index
    %c0_3 = arith.constant 0 : index
    %3 = vector.load %arg1[%c0_2, %c0_3] : memref<16x32xbf16, #tpu.memory_space<vmem>>, vector<16x32xbf16>
    %cst = arith.constant dense<0.000000e+00> : vector<16x32xf32>
    %4 = tpu.matmul %2, %3, %cst {dimension_numbers = #tpu.dot_dimension_numbers<[1], [0], [0], [1], [0, 0, 1, 1], [], []>} : vector<16x16xbf16>, vector<16x32xbf16>, vector<16x32xf32> -> vector<16x32xf32>
    %5 = vector.shape_cast %4 : vector<16x32xf32> to vector<2x8x32xf32>
    %c0_4 = arith.constant 0 : index
    %c0_5 = arith.constant 0 : index
    %6 = vector.load %arg2[%c0_4, %c0_5] : memref<8x32xf32, #tpu.memory_space<vmem>>, vector<8x32xf32>
    %7 = vector.shape_cast %6 : vector<8x32xf32> to vector<1x8x32xf32>
    %8 = vector.broadcast %7 : vector<1x8x32xf32> to vector<2x8x32xf32>
    %9 = arith.addf %5, %8 : vector<2x8x32xf32>
    %10 = vector.shape_cast %9 : vector<2x8x32xf32> to vector<16x32xf32>
    %11 = arith.truncf %10 : vector<16x32xf32> to vector<16x32xbf16>
    %c0_6 = arith.constant 0 : index
    %c0_7 = arith.constant 0 : index
    %c0_8 = arith.constant 0 : index
    %12 = vector.load %arg3[%c0_6, %c0_7, %c0_8] : memref<2x32x96xbf16, #tpu.memory_space<vmem>>, vector<1x32x96xbf16>
    %13 = vector.shape_cast %12 : vector<1x32x96xbf16> to vector<32x96xbf16>
    %cst_9 = arith.constant dense<0.000000e+00> : vector<16x96xf32>
    %14 = tpu.matmul %11, %13, %cst_9 {dimension_numbers = #tpu.dot_dimension_numbers<[1], [0], [0], [1], [0, 0, 1, 1], [], []>} : vector<16x32xbf16>, vector<32x96xbf16>, vector<16x96xf32> -> vector<16x96xf32>
    %c0_10 = arith.constant 0 : index
    %c0_11 = arith.constant 0 : index
    %c0_12 = arith.constant 0 : index
    %15 = vector.load %arg4[%c0_10, %c0_11, %c0_12] : memref<2x1x96xf32, #tpu.memory_space<vmem>>, vector<1x1x96xf32>
    %16 = vector.shape_cast %15 : vector<1x1x96xf32> to vector<1x96xf32>
    %17 = vector.broadcast %16 : vector<1x96xf32> to vector<16x96xf32>
    %18 = arith.addf %14, %17 : vector<16x96xf32>
    %19 = arith.truncf %18 : vector<16x96xf32> to vector<16x96xbf16>
    %20 = vector.extract_strided_slice %19 {offsets = [0, 0], sizes = [16, 8], strides = [1, 1]} : vector<16x96xbf16> to vector<16x8xbf16>
    %21 = vector.shape_cast %20 : vector<16x8xbf16> to vector<2x8x8xbf16>
    %22 = vector.extract_strided_slice %19 {offsets = [0, 8], sizes = [16, 8], strides = [1, 1]} : vector<16x96xbf16> to vector<16x8xbf16>
    %23 = vector.shape_cast %22 : vector<16x8xbf16> to vector<2x8x8xbf16>
    %24 = vector.extract_strided_slice %19 {offsets = [0, 16], sizes = [16, 8], strides = [1, 1]} : vector<16x96xbf16> to vector<16x8xbf16>
    %25 = vector.shape_cast %24 : vector<16x8xbf16> to vector<2x8x8xbf16>
    %26 = vector.extract_strided_slice %19 {offsets = [0, 24], sizes = [16, 8], strides = [1, 1]} : vector<16x96xbf16> to vector<16x8xbf16>
    %27 = vector.shape_cast %26 : vector<16x8xbf16> to vector<2x8x8xbf16>
    %28 = vector.shape_cast %21 : vector<2x8x8xbf16> to vector<2x1x8x8xbf16>
    %29 = vector.shape_cast %23 : vector<2x8x8xbf16> to vector<2x1x8x8xbf16>
    %30 = vector.shape_cast %25 : vector<2x8x8xbf16> to vector<2x1x8x8xbf16>
    %31 = vector.shape_cast %27 : vector<2x8x8xbf16> to vector<2x1x8x8xbf16>
    %32 = tpu.concatenate %28, %29, %30, %31 in 1 : vector<2x1x8x8xbf16>, vector<2x1x8x8xbf16>, vector<2x1x8x8xbf16>, vector<2x1x8x8xbf16> -> vector<2x4x8x8xbf16>
    %33 = vector.shape_cast %32 : vector<2x4x8x8xbf16> to vector<8x8x8xbf16>
    %34 = vector.extract_strided_slice %19 {offsets = [0, 32], sizes = [16, 8], strides = [1, 1]} : vector<16x96xbf16> to vector<16x8xbf16>
    %35 = vector.shape_cast %34 : vector<16x8xbf16> to vector<2x8x8xbf16>
    %36 = vector.extract_strided_slice %19 {offsets = [0, 40], sizes = [16, 8], strides = [1, 1]} : vector<16x96xbf16> to vector<16x8xbf16>
    %37 = vector.shape_cast %36 : vector<16x8xbf16> to vector<2x8x8xbf16>
    %38 = vector.extract_strided_slice %19 {offsets = [0, 48], sizes = [16, 8], strides = [1, 1]} : vector<16x96xbf16> to vector<16x8xbf16>
    %39 = vector.shape_cast %38 : vector<16x8xbf16> to vector<2x8x8xbf16>
    %40 = vector.extract_strided_slice %19 {offsets = [0, 56], sizes = [16, 8], strides = [1, 1]} : vector<16x96xbf16> to vector<16x8xbf16>
    %41 = vector.shape_cast %40 : vector<16x8xbf16> to vector<2x8x8xbf16>
    %42 = vector.shape_cast %35 : vector<2x8x8xbf16> to vector<2x1x8x8xbf16>
    %43 = vector.shape_cast %37 : vector<2x8x8xbf16> to vector<2x1x8x8xbf16>
    %44 = vector.shape_cast %39 : vector<2x8x8xbf16> to vector<2x1x8x8xbf16>
    %45 = vector.shape_cast %41 : vector<2x8x8xbf16> to vector<2x1x8x8xbf16>
    %46 = tpu.concatenate %42, %43, %44, %45 in 1 : vector<2x1x8x8xbf16>, vector<2x1x8x8xbf16>, vector<2x1x8x8xbf16>, vector<2x1x8x8xbf16> -> vector<2x4x8x8xbf16>
    %47 = vector.shape_cast %46 : vector<2x4x8x8xbf16> to vector<8x8x8xbf16>
    %48 = vector.extract_strided_slice %19 {offsets = [0, 64], sizes = [16, 8], strides = [1, 1]} : vector<16x96xbf16> to vector<16x8xbf16>
    %49 = vector.shape_cast %48 : vector<16x8xbf16> to vector<2x8x8xbf16>
    %50 = vector.extract_strided_slice %19 {offsets = [0, 72], sizes = [16, 8], strides = [1, 1]} : vector<16x96xbf16> to vector<16x8xbf16>
    %51 = vector.shape_cast %50 : vector<16x8xbf16> to vector<2x8x8xbf16>
    %52 = vector.extract_strided_slice %19 {offsets = [0, 80], sizes = [16, 8], strides = [1, 1]} : vector<16x96xbf16> to vector<16x8xbf16>
    %53 = vector.shape_cast %52 : vector<16x8xbf16> to vector<2x8x8xbf16>
    %54 = vector.extract_strided_slice %19 {offsets = [0, 88], sizes = [16, 8], strides = [1, 1]} : vector<16x96xbf16> to vector<16x8xbf16>
    %55 = vector.shape_cast %54 : vector<16x8xbf16> to vector<2x8x8xbf16>
    %56 = vector.shape_cast %49 : vector<2x8x8xbf16> to vector<2x1x8x8xbf16>
    %57 = vector.shape_cast %51 : vector<2x8x8xbf16> to vector<2x1x8x8xbf16>
    %58 = vector.shape_cast %53 : vector<2x8x8xbf16> to vector<2x1x8x8xbf16>
    %59 = vector.shape_cast %55 : vector<2x8x8xbf16> to vector<2x1x8x8xbf16>
    %60 = tpu.concatenate %56, %57, %58, %59 in 1 : vector<2x1x8x8xbf16>, vector<2x1x8x8xbf16>, vector<2x1x8x8xbf16>, vector<2x1x8x8xbf16> -> vector<2x4x8x8xbf16>
    %61 = vector.shape_cast %60 : vector<2x4x8x8xbf16> to vector<8x8x8xbf16>
    "tpu.trace_start"() <{level = 10 : i32, message = "nqd,nkd->nqk"}> : () -> ()
    %cst_13 = arith.constant dense<0.000000e+00> : vector<8x8x8xf32>
    %62 = tpu.matmul %33, %47, %cst_13 {dimension_numbers = #tpu.dot_dimension_numbers<[2], [2], [1], [1], [0, 0, 0, 1, 1, 1], [0], [0]>} : vector<8x8x8xbf16>, vector<8x8x8xbf16>, vector<8x8x8xf32> -> vector<8x8x8xf32>
    "tpu.trace_stop"() : () -> ()
    %cst_14 = arith.constant 0.353553385 : f32
    %63 = vector.broadcast %cst_14 : f32 to vector<8x8x8xf32>
    %64 = arith.mulf %62, %63 : vector<8x8x8xf32>
    %65 = vector.shape_cast %64 : vector<8x8x8xf32> to vector<64x8xf32>
    %cst_15 = arith.constant 0.000000e+00 : f32
    %66 = vector.broadcast %cst_15 : f32 to vector<64x8xf32>
    %cst_16 = arith.constant 0.000000e+00 : f32
    %67 = vector.broadcast %cst_16 : f32 to vector<64x8xf32>
    %68 = arith.cmpf oge, %65, %65 : vector<64x8xf32>
    %69 = arith.extui %68 : vector<64x8xi1> to vector<64x8xi32>
    %70 = arith.sitofp %69 : vector<64x8xi32> to vector<64x8xf32>
    %71 = arith.addf %66, %70 : vector<64x8xf32>
    %72 = arith.mulf %70, %65 : vector<64x8xf32>
    %73 = arith.addf %67, %72 : vector<64x8xf32>
    %74 = vector.extract_strided_slice %65 {offsets = [0, 1], sizes = [64, 7], strides = [1, 1]} : vector<64x8xf32> to vector<64x7xf32>
    %75 = vector.extract_strided_slice %65 {offsets = [0, 0], sizes = [64, 1], strides = [1, 1]} : vector<64x8xf32> to vector<64x1xf32>
    %76 = tpu.concatenate %74, %75 in 1 : vector<64x7xf32>, vector<64x1xf32> -> vector<64x8xf32>
    %77 = arith.cmpf oge, %76, %65 : vector<64x8xf32>
    %78 = arith.extui %77 : vector<64x8xi1> to vector<64x8xi32>
    %79 = arith.sitofp %78 : vector<64x8xi32> to vector<64x8xf32>
    %80 = arith.addf %71, %79 : vector<64x8xf32>
    %81 = arith.mulf %79, %76 : vector<64x8xf32>
    %82 = arith.addf %73, %81 : vector<64x8xf32>
    %83 = vector.extract_strided_slice %76 {offsets = [0, 1], sizes = [64, 7], strides = [1, 1]} : vector<64x8xf32> to vector<64x7xf32>
    %84 = vector.extract_strided_slice %76 {offsets = [0, 0], sizes = [64, 1], strides = [1, 1]} : vector<64x8xf32> to vector<64x1xf32>
    %85 = tpu.concatenate %83, %84 in 1 : vector<64x7xf32>, vector<64x1xf32> -> vector<64x8xf32>
    %86 = arith.cmpf oge, %85, %65 : vector<64x8xf32>
    %87 = arith.extui %86 : vector<64x8xi1> to vector<64x8xi32>
    %88 = arith.sitofp %87 : vector<64x8xi32> to vector<64x8xf32>
    %89 = arith.addf %80, %88 : vector<64x8xf32>
    %90 = arith.mulf %88, %85 : vector<64x8xf32>
    %91 = arith.addf %82, %90 : vector<64x8xf32>
    %92 = vector.extract_strided_slice %85 {offsets = [0, 1], sizes = [64, 7], strides = [1, 1]} : vector<64x8xf32> to vector<64x7xf32>
    %93 = vector.extract_strided_slice %85 {offsets = [0, 0], sizes = [64, 1], strides = [1, 1]} : vector<64x8xf32> to vector<64x1xf32>
    %94 = tpu.concatenate %92, %93 in 1 : vector<64x7xf32>, vector<64x1xf32> -> vector<64x8xf32>
    %95 = arith.cmpf oge, %94, %65 : vector<64x8xf32>
    %96 = arith.extui %95 : vector<64x8xi1> to vector<64x8xi32>
    %97 = arith.sitofp %96 : vector<64x8xi32> to vector<64x8xf32>
    %98 = arith.addf %89, %97 : vector<64x8xf32>
    %99 = arith.mulf %97, %94 : vector<64x8xf32>
    %100 = arith.addf %91, %99 : vector<64x8xf32>
    %101 = vector.extract_strided_slice %94 {offsets = [0, 1], sizes = [64, 7], strides = [1, 1]} : vector<64x8xf32> to vector<64x7xf32>
    %102 = vector.extract_strided_slice %94 {offsets = [0, 0], sizes = [64, 1], strides = [1, 1]} : vector<64x8xf32> to vector<64x1xf32>
    %103 = tpu.concatenate %101, %102 in 1 : vector<64x7xf32>, vector<64x1xf32> -> vector<64x8xf32>
    %104 = arith.cmpf oge, %103, %65 : vector<64x8xf32>
    %105 = arith.extui %104 : vector<64x8xi1> to vector<64x8xi32>
    %106 = arith.sitofp %105 : vector<64x8xi32> to vector<64x8xf32>
    %107 = arith.addf %98, %106 : vector<64x8xf32>
    %108 = arith.mulf %106, %103 : vector<64x8xf32>
    %109 = arith.addf %100, %108 : vector<64x8xf32>
    %110 = vector.extract_strided_slice %103 {offsets = [0, 1], sizes = [64, 7], strides = [1, 1]} : vector<64x8xf32> to vector<64x7xf32>
    %111 = vector.extract_strided_slice %103 {offsets = [0, 0], sizes = [64, 1], strides = [1, 1]} : vector<64x8xf32> to vector<64x1xf32>
    %112 = tpu.concatenate %110, %111 in 1 : vector<64x7xf32>, vector<64x1xf32> -> vector<64x8xf32>
    %113 = arith.cmpf oge, %112, %65 : vector<64x8xf32>
    %114 = arith.extui %113 : vector<64x8xi1> to vector<64x8xi32>
    %115 = arith.sitofp %114 : vector<64x8xi32> to vector<64x8xf32>
    %116 = arith.addf %107, %115 : vector<64x8xf32>
    %117 = arith.mulf %115, %112 : vector<64x8xf32>
    %118 = arith.addf %109, %117 : vector<64x8xf32>
    %119 = vector.extract_strided_slice %112 {offsets = [0, 1], sizes = [64, 7], strides = [1, 1]} : vector<64x8xf32> to vector<64x7xf32>
    %120 = vector.extract_strided_slice %112 {offsets = [0, 0], sizes = [64, 1], strides = [1, 1]} : vector<64x8xf32> to vector<64x1xf32>
    %121 = tpu.concatenate %119, %120 in 1 : vector<64x7xf32>, vector<64x1xf32> -> vector<64x8xf32>
    %122 = arith.cmpf oge, %121, %65 : vector<64x8xf32>
    %123 = arith.extui %122 : vector<64x8xi1> to vector<64x8xi32>
    %124 = arith.sitofp %123 : vector<64x8xi32> to vector<64x8xf32>
    %125 = arith.addf %116, %124 : vector<64x8xf32>
    %126 = arith.mulf %124, %121 : vector<64x8xf32>
    %127 = arith.addf %118, %126 : vector<64x8xf32>
    %128 = vector.extract_strided_slice %121 {offsets = [0, 1], sizes = [64, 7], strides = [1, 1]} : vector<64x8xf32> to vector<64x7xf32>
    %129 = vector.extract_strided_slice %121 {offsets = [0, 0], sizes = [64, 1], strides = [1, 1]} : vector<64x8xf32> to vector<64x1xf32>
    %130 = tpu.concatenate %128, %129 in 1 : vector<64x7xf32>, vector<64x1xf32> -> vector<64x8xf32>
    %131 = arith.cmpf oge, %130, %65 : vector<64x8xf32>
    %132 = arith.extui %131 : vector<64x8xi1> to vector<64x8xi32>
    %133 = arith.sitofp %132 : vector<64x8xi32> to vector<64x8xf32>
    %134 = arith.addf %125, %133 : vector<64x8xf32>
    %135 = arith.mulf %133, %130 : vector<64x8xf32>
    %136 = arith.addf %127, %135 : vector<64x8xf32>
    %137 = arith.mulf %134, %65 : vector<64x8xf32>
    %cst_17 = arith.constant 1.000000e+00 : f32
    %138 = vector.broadcast %cst_17 : f32 to vector<64x8xf32>
    %139 = arith.addf %138, %137 : vector<64x8xf32>
    %140 = arith.cmpf ogt, %139, %136 : vector<64x8xf32>
    %141 = arith.extui %140 : vector<64x8xi1> to vector<64x8xi32>
    %142 = arith.sitofp %141 : vector<64x8xi32> to vector<64x8xf32>
    %cst_18 = arith.constant dense<0.000000e+00> : vector<64xf32>
    %143 = vector.multi_reduction <add>, %142, %cst_18 [1] : vector<64x8xf32> to vector<64xf32>
    %144 = vector.shape_cast %143 : vector<64xf32> to vector<64x1xf32>
    %cst_19 = arith.constant 0.000000e+00 : f32
    %145 = vector.broadcast %cst_19 : f32 to vector<64x8xf32>
    %146 = arith.select %140, %65, %145 : vector<64x8xi1>, vector<64x8xf32>
    %cst_20 = arith.constant dense<0.000000e+00> : vector<64xf32>
    %147 = vector.multi_reduction <add>, %146, %cst_20 [1] : vector<64x8xf32> to vector<64xf32>
    %148 = vector.shape_cast %147 : vector<64xf32> to vector<64x1xf32>
    %cst_21 = arith.constant 1.000000e+00 : f32
    %149 = vector.broadcast %cst_21 : f32 to vector<64x1xf32>
    %150 = arith.subf %148, %149 : vector<64x1xf32>
    %151 = arith.divf %150, %144 : vector<64x1xf32>
    %152 = vector.broadcast %151 : vector<64x1xf32> to vector<64x8xf32>
    %153 = arith.subf %65, %152 : vector<64x8xf32>
    %cst_22 = arith.constant 0.000000e+00 : f32
    %154 = vector.broadcast %cst_22 : f32 to vector<64x8xf32>
    %155 = arith.maximumf %153, %154 : vector<64x8xf32>
    %156 = vector.shape_cast %155 : vector<64x8xf32> to vector<2x4x8x8xf32>
    %c0_23 = arith.constant 0 : index
    %c0_24 = arith.constant 0 : index
    %c0_25 = arith.constant 0 : index
    %c0_26 = arith.constant 0 : index
    %157 = vector.load %arg18[%c0_23, %c0_24, %c0_25, %c0_26] : memref<2x4x8x8xf32, #tpu.memory_space<vmem>>, vector<2x4x8x8xf32>
    tpu.vector_store %arg18[%c0_23, %c0_24, %c0_25, %c0_26], %156 {strides = array<i32>} : memref<2x4x8x8xf32, #tpu.memory_space<vmem>>, vector<2x4x8x8xf32>,
    %158 = vector.shape_cast %155 : vector<64x8xf32> to vector<8x8x8xf32>
    %159 = arith.truncf %158 : vector<8x8x8xf32> to vector<8x8x8xbf16>
    "tpu.trace_start"() <{level = 10 : i32, message = "nqk,nkd->nqd"}> : () -> ()
    %cst_27 = arith.constant dense<0.000000e+00> : vector<8x8x8xf32>
    %160 = tpu.matmul %159, %61, %cst_27 {dimension_numbers = #tpu.dot_dimension_numbers<[2], [1], [1], [2], [0, 0, 0, 1, 1, 2], [0], [0]>} : vector<8x8x8xbf16>, vector<8x8x8xbf16>, vector<8x8x8xf32> -> vector<8x8x8xf32>
    "tpu.trace_stop"() : () -> ()
    %161 = vector.shape_cast %160 : vector<8x8x8xf32> to vector<2x4x8x8xf32>
    %162 = vector.extract_strided_slice %161 {offsets = [0, 0, 0, 0], sizes = [2, 1, 8, 8], strides = [1, 1, 1, 1]} : vector<2x4x8x8xf32> to vector<2x1x8x8xf32>
    %163 = vector.shape_cast %162 : vector<2x1x8x8xf32> to vector<2x8x8xf32>
    %164 = vector.shape_cast %163 : vector<2x8x8xf32> to vector<16x8xf32>
    %165 = vector.extract_strided_slice %161 {offsets = [0, 1, 0, 0], sizes = [2, 1, 8, 8], strides = [1, 1, 1, 1]} : vector<2x4x8x8xf32> to vector<2x1x8x8xf32>
    %166 = vector.shape_cast %165 : vector<2x1x8x8xf32> to vector<2x8x8xf32>
    %167 = vector.shape_cast %166 : vector<2x8x8xf32> to vector<16x8xf32>
    %168 = vector.extract_strided_slice %161 {offsets = [0, 2, 0, 0], sizes = [2, 1, 8, 8], strides = [1, 1, 1, 1]} : vector<2x4x8x8xf32> to vector<2x1x8x8xf32>
    %169 = vector.shape_cast %168 : vector<2x1x8x8xf32> to vector<2x8x8xf32>
    %170 = vector.shape_cast %169 : vector<2x8x8xf32> to vector<16x8xf32>
    %171 = vector.extract_strided_slice %161 {offsets = [0, 3, 0, 0], sizes = [2, 1, 8, 8], strides = [1, 1, 1, 1]} : vector<2x4x8x8xf32> to vector<2x1x8x8xf32>
    %172 = vector.shape_cast %171 : vector<2x1x8x8xf32> to vector<2x8x8xf32>
    %173 = vector.shape_cast %172 : vector<2x8x8xf32> to vector<16x8xf32>
    %174 = tpu.concatenate %164, %167, %170, %173 in 1 : vector<16x8xf32>, vector<16x8xf32>, vector<16x8xf32>, vector<16x8xf32> -> vector<16x32xf32>
    %175 = arith.truncf %174 : vector<16x32xf32> to vector<16x32xbf16>
    %c0_28 = arith.constant 0 : index
    %c0_29 = arith.constant 0 : index
    %c0_30 = arith.constant 0 : index
    %176 = vector.load %arg5[%c0_28, %c0_29, %c0_30] : memref<2x32x32xbf16, #tpu.memory_space<vmem>>, vector<1x32x32xbf16>
    %177 = vector.shape_cast %176 : vector<1x32x32xbf16> to vector<32x32xbf16>
    %cst_31 = arith.constant dense<0.000000e+00> : vector<16x32xf32>
    %178 = tpu.matmul %175, %177, %cst_31 {dimension_numbers = #tpu.dot_dimension_numbers<[1], [0], [0], [1], [0, 0, 1, 1], [], []>} : vector<16x32xbf16>, vector<32x32xbf16>, vector<16x32xf32> -> vector<16x32xf32>
    %c0_32 = arith.constant 0 : index
    %c0_33 = arith.constant 0 : index
    %c0_34 = arith.constant 0 : index
    %179 = vector.load %arg6[%c0_32, %c0_33, %c0_34] : memref<2x1x32xf32, #tpu.memory_space<vmem>>, vector<1x1x32xf32>
    %180 = vector.shape_cast %179 : vector<1x1x32xf32> to vector<1x32xf32>
    %181 = vector.broadcast %180 : vector<1x32xf32> to vector<16x32xf32>
    %182 = arith.addf %178, %181 : vector<16x32xf32>
    %183 = arith.addf %10, %182 : vector<16x32xf32>
    %c0_35 = arith.constant 0 : index
    %c0_36 = arith.constant 0 : index
    %c0_37 = arith.constant 0 : index
    %184 = vector.load %arg7[%c0_35, %c0_36, %c0_37] : memref<2x1x32xf32, #tpu.memory_space<vmem>>, vector<1x1x32xf32>
    %185 = vector.shape_cast %184 : vector<1x1x32xf32> to vector<1x32xf32>
    %c0_38 = arith.constant 0 : index
    %c0_39 = arith.constant 0 : index
    %c0_40 = arith.constant 0 : index
    %186 = vector.load %arg8[%c0_38, %c0_39, %c0_40] : memref<2x1x32xf32, #tpu.memory_space<vmem>>, vector<1x1x32xf32>
    %187 = vector.shape_cast %186 : vector<1x1x32xf32> to vector<1x32xf32>
    %cst_41 = arith.constant dense<0.000000e+00> : vector<16xf32>
    %188 = vector.multi_reduction <add>, %183, %cst_41 [1] : vector<16x32xf32> to vector<16xf32>
    %189 = vector.shape_cast %188 : vector<16xf32> to vector<16x1xf32>
    %cst_42 = arith.constant 3.200000e+01 : f32
    %190 = vector.broadcast %cst_42 : f32 to vector<16x1xf32>
    %191 = arith.divf %189, %190 : vector<16x1xf32>
    %192 = vector.broadcast %191 : vector<16x1xf32> to vector<16x32xf32>
    %193 = arith.subf %183, %192 : vector<16x32xf32>
    %194 = arith.mulf %193, %193 : vector<16x32xf32>
    %cst_43 = arith.constant dense<0.000000e+00> : vector<16xf32>
    %195 = vector.multi_reduction <add>, %194, %cst_43 [1] : vector<16x32xf32> to vector<16xf32>
    %196 = vector.shape_cast %195 : vector<16xf32> to vector<16x1xf32>
    %cst_44 = arith.constant 3.200000e+01 : f32
    %197 = vector.broadcast %cst_44 : f32 to vector<16x1xf32>
    %198 = arith.divf %196, %197 : vector<16x1xf32>
    %cst_45 = arith.constant 9.99999974E-6 : f32
    %199 = vector.broadcast %cst_45 : f32 to vector<16x1xf32>
    %200 = arith.addf %198, %199 : vector<16x1xf32>
    %201 = math.rsqrt %200 : vector<16x1xf32>
    %202 = vector.broadcast %201 : vector<16x1xf32> to vector<16x32xf32>
    %203 = arith.mulf %193, %202 : vector<16x32xf32>
    %204 = vector.broadcast %185 : vector<1x32xf32> to vector<16x32xf32>
    %205 = arith.mulf %203, %204 : vector<16x32xf32>
    %206 = vector.broadcast %187 : vector<1x32xf32> to vector<16x32xf32>
    %207 = arith.addf %205, %206 : vector<16x32xf32>
    %208 = arith.truncf %207 : vector<16x32xf32> to vector<16x32xbf16>
    %c0_46 = arith.constant 0 : index
    %c0_47 = arith.constant 0 : index
    %c0_48 = arith.constant 0 : index
    %209 = vector.load %arg9[%c0_46, %c0_47, %c0_48] : memref<2x32x64xbf16, #tpu.memory_space<vmem>>, vector<1x32x64xbf16>
    %210 = vector.shape_cast %209 : vector<1x32x64xbf16> to vector<32x64xbf16>
    %cst_49 = arith.constant dense<0.000000e+00> : vector<16x64xf32>
    %211 = tpu.matmul %208, %210, %cst_49 {dimension_numbers = #tpu.dot_dimension_numbers<[1], [0], [0], [1], [0, 0, 1, 1], [], []>} : vector<16x32xbf16>, vector<32x64xbf16>, vector<16x64xf32> -> vector<16x64xf32>
    %c0_50 = arith.constant 0 : index
    %c0_51 = arith.constant 0 : index
    %c0_52 = arith.constant 0 : index
    %212 = vector.load %arg10[%c0_50, %c0_51, %c0_52] : memref<2x1x64xf32, #tpu.memory_space<vmem>>, vector<1x1x64xf32>
    %213 = vector.shape_cast %212 : vector<1x1x64xf32> to vector<1x64xf32>
    %214 = vector.broadcast %213 : vector<1x64xf32> to vector<16x64xf32>
    %215 = arith.addf %211, %214 : vector<16x64xf32>
    %cst_53 = arith.constant 0.000000e+00 : f32
    %216 = vector.broadcast %cst_53 : f32 to vector<16x64xf32>
    %217 = arith.maximumf %215, %216 : vector<16x64xf32>
    %218 = arith.truncf %217 : vector<16x64xf32> to vector<16x64xbf16>
    %c0_54 = arith.constant 0 : index
    %c0_55 = arith.constant 0 : index
    %c0_56 = arith.constant 0 : index
    %219 = vector.load %arg11[%c0_54, %c0_55, %c0_56] : memref<2x64x32xbf16, #tpu.memory_space<vmem>>, vector<1x64x32xbf16>
    %220 = vector.shape_cast %219 : vector<1x64x32xbf16> to vector<64x32xbf16>
    %cst_57 = arith.constant dense<0.000000e+00> : vector<16x32xf32>
    %221 = tpu.matmul %218, %220, %cst_57 {dimension_numbers = #tpu.dot_dimension_numbers<[1], [0], [0], [1], [0, 0, 1, 1], [], []>} : vector<16x64xbf16>, vector<64x32xbf16>, vector<16x32xf32> -> vector<16x32xf32>
    %c0_58 = arith.constant 0 : index
    %c0_59 = arith.constant 0 : index
    %c0_60 = arith.constant 0 : index
    %222 = vector.load %arg12[%c0_58, %c0_59, %c0_60] : memref<2x1x32xf32, #tpu.memory_space<vmem>>, vector<1x1x32xf32>
    %223 = vector.shape_cast %222 : vector<1x1x32xf32> to vector<1x32xf32>
    %224 = vector.broadcast %223 : vector<1x32xf32> to vector<16x32xf32>
    %225 = arith.addf %221, %224 : vector<16x32xf32>
    %226 = arith.addf %207, %225 : vector<16x32xf32>
    %c0_61 = arith.constant 0 : index
    %c0_62 = arith.constant 0 : index
    %c0_63 = arith.constant 0 : index
    %227 = vector.load %arg13[%c0_61, %c0_62, %c0_63] : memref<2x1x32xf32, #tpu.memory_space<vmem>>, vector<1x1x32xf32>
    %228 = vector.shape_cast %227 : vector<1x1x32xf32> to vector<1x32xf32>
    %c0_64 = arith.constant 0 : index
    %c0_65 = arith.constant 0 : index
    %c0_66 = arith.constant 0 : index
    %229 = vector.load %arg14[%c0_64, %c0_65, %c0_66] : memref<2x1x32xf32, #tpu.memory_space<vmem>>, vector<1x1x32xf32>
    %230 = vector.shape_cast %229 : vector<1x1x32xf32> to vector<1x32xf32>
    %cst_67 = arith.constant dense<0.000000e+00> : vector<16xf32>
    %231 = vector.multi_reduction <add>, %226, %cst_67 [1] : vector<16x32xf32> to vector<16xf32>
    %232 = vector.shape_cast %231 : vector<16xf32> to vector<16x1xf32>
    %cst_68 = arith.constant 3.200000e+01 : f32
    %233 = vector.broadcast %cst_68 : f32 to vector<16x1xf32>
    %234 = arith.divf %232, %233 : vector<16x1xf32>
    %235 = vector.broadcast %234 : vector<16x1xf32> to vector<16x32xf32>
    %236 = arith.subf %226, %235 : vector<16x32xf32>
    %237 = arith.mulf %236, %236 : vector<16x32xf32>
    %cst_69 = arith.constant dense<0.000000e+00> : vector<16xf32>
    %238 = vector.multi_reduction <add>, %237, %cst_69 [1] : vector<16x32xf32> to vector<16xf32>
    %239 = vector.shape_cast %238 : vector<16xf32> to vector<16x1xf32>
    %cst_70 = arith.constant 3.200000e+01 : f32
    %240 = vector.broadcast %cst_70 : f32 to vector<16x1xf32>
    %241 = arith.divf %239, %240 : vector<16x1xf32>
    %cst_71 = arith.constant 9.99999974E-6 : f32
    %242 = vector.broadcast %cst_71 : f32 to vector<16x1xf32>
    %243 = arith.addf %241, %242 : vector<16x1xf32>
    %244 = math.rsqrt %243 : vector<16x1xf32>
    %245 = vector.broadcast %244 : vector<16x1xf32> to vector<16x32xf32>
    %246 = arith.mulf %236, %245 : vector<16x32xf32>
    %247 = vector.broadcast %228 : vector<1x32xf32> to vector<16x32xf32>
    %248 = arith.mulf %246, %247 : vector<16x32xf32>
    %249 = vector.broadcast %230 : vector<1x32xf32> to vector<16x32xf32>
    %250 = arith.addf %248, %249 : vector<16x32xf32>
    %251 = arith.truncf %250 : vector<16x32xf32> to vector<16x32xbf16>
    %c1 = arith.constant 1 : index
    %c0_72 = arith.constant 0 : index
    %c0_73 = arith.constant 0 : index
    %252 = vector.load %arg3[%c1, %c0_72, %c0_73] : memref<2x32x96xbf16, #tpu.memory_space<vmem>>, vector<1x32x96xbf16>
    %253 = vector.shape_cast %252 : vector<1x32x96xbf16> to vector<32x96xbf16>
    %cst_74 = arith.constant dense<0.000000e+00> : vector<16x96xf32>
    %254 = tpu.matmul %251, %253, %cst_74 {dimension_numbers = #tpu.dot_dimension_numbers<[1], [0], [0], [1], [0, 0, 1, 1], [], []>} : vector<16x32xbf16>, vector<32x96xbf16>, vector<16x96xf32> -> vector<16x96xf32>
    %c1_75 = arith.constant 1 : index
    %c0_76 = arith.constant 0 : index
    %c0_77 = arith.constant 0 : index
    %255 = vector.load %arg4[%c1_75, %c0_76, %c0_77] : memref<2x1x96xf32, #tpu.memory_space<vmem>>, vector<1x1x96xf32>
    %256 = vector.shape_cast %255 : vector<1x1x96xf32> to vector<1x96xf32>
    %257 = vector.broadcast %256 : vector<1x96xf32> to vector<16x96xf32>
    %258 = arith.addf %254, %257 : vector<16x96xf32>
    %259 = arith.truncf %258 : vector<16x96xf32> to vector<16x96xbf16>
    %260 = vector.extract_strided_slice %259 {offsets = [0, 0], sizes = [16, 8], strides = [1, 1]} : vector<16x96xbf16> to vector<16x8xbf16>
    %261 = vector.shape_cast %260 : vector<16x8xbf16> to vector<2x8x8xbf16>
    %262 = vector.extract_strided_slice %259 {offsets = [0, 8], sizes = [16, 8], strides = [1, 1]} : vector<16x96xbf16> to vector<16x8xbf16>
    %263 = vector.shape_cast %262 : vector<16x8xbf16> to vector<2x8x8xbf16>
    %264 = vector.extract_strided_slice %259 {offsets = [0, 16], sizes = [16, 8], strides = [1, 1]} : vector<16x96xbf16> to vector<16x8xbf16>
    %265 = vector.shape_cast %264 : vector<16x8xbf16> to vector<2x8x8xbf16>
    %266 = vector.extract_strided_slice %259 {offsets = [0, 24], sizes = [16, 8], strides = [1, 1]} : vector<16x96xbf16> to vector<16x8xbf16>
    %267 = vector.shape_cast %266 : vector<16x8xbf16> to vector<2x8x8xbf16>
    %268 = vector.shape_cast %261 : vector<2x8x8xbf16> to vector<2x1x8x8xbf16>
    %269 = vector.shape_cast %263 : vector<2x8x8xbf16> to vector<2x1x8x8xbf16>
    %270 = vector.shape_cast %265 : vector<2x8x8xbf16> to vector<2x1x8x8xbf16>
    %271 = vector.shape_cast %267 : vector<2x8x8xbf16> to vector<2x1x8x8xbf16>
    %272 = tpu.concatenate %268, %269, %270, %271 in 1 : vector<2x1x8x8xbf16>, vector<2x1x8x8xbf16>, vector<2x1x8x8xbf16>, vector<2x1x8x8xbf16> -> vector<2x4x8x8xbf16>
    %273 = vector.shape_cast %272 : vector<2x4x8x8xbf16> to vector<8x8x8xbf16>
    %274 = vector.extract_strided_slice %259 {offsets = [0, 32], sizes = [16, 8], strides = [1, 1]} : vector<16x96xbf16> to vector<16x8xbf16>
    %275 = vector.shape_cast %274 : vector<16x8xbf16> to vector<2x8x8xbf16>
    %276 = vector.extract_strided_slice %259 {offsets = [0, 40], sizes = [16, 8], strides = [1, 1]} : vector<16x96xbf16> to vector<16x8xbf16>
    %277 = vector.shape_cast %276 : vector<16x8xbf16> to vector<2x8x8xbf16>
    %278 = vector.extract_strided_slice %259 {offsets = [0, 48], sizes = [16, 8], strides = [1, 1]} : vector<16x96xbf16> to vector<16x8xbf16>
    %279 = vector.shape_cast %278 : vector<16x8xbf16> to vector<2x8x8xbf16>
    %280 = vector.extract_strided_slice %259 {offsets = [0, 56], sizes = [16, 8], strides = [1, 1]} : vector<16x96xbf16> to vector<16x8xbf16>
    %281 = vector.shape_cast %280 : vector<16x8xbf16> to vector<2x8x8xbf16>
    %282 = vector.shape_cast %275 : vector<2x8x8xbf16> to vector<2x1x8x8xbf16>
    %283 = vector.shape_cast %277 : vector<2x8x8xbf16> to vector<2x1x8x8xbf16>
    %284 = vector.shape_cast %279 : vector<2x8x8xbf16> to vector<2x1x8x8xbf16>
    %285 = vector.shape_cast %281 : vector<2x8x8xbf16> to vector<2x1x8x8xbf16>
    %286 = tpu.concatenate %282, %283, %284, %285 in 1 : vector<2x1x8x8xbf16>, vector<2x1x8x8xbf16>, vector<2x1x8x8xbf16>, vector<2x1x8x8xbf16> -> vector<2x4x8x8xbf16>
    %287 = vector.shape_cast %286 : vector<2x4x8x8xbf16> to vector<8x8x8xbf16>
    %288 = vector.extract_strided_slice %259 {offsets = [0, 64], sizes = [16, 8], strides = [1, 1]} : vector<16x96xbf16> to vector<16x8xbf16>
    %289 = vector.shape_cast %288 : vector<16x8xbf16> to vector<2x8x8xbf16>
    %290 = vector.extract_strided_slice %259 {offsets = [0, 72], sizes = [16, 8], strides = [1, 1]} : vector<16x96xbf16> to vector<16x8xbf16>
    %291 = vector.shape_cast %290 : vector<16x8xbf16> to vector<2x8x8xbf16>
    %292 = vector.extract_strided_slice %259 {offsets = [0, 80], sizes = [16, 8], strides = [1, 1]} : vector<16x96xbf16> to vector<16x8xbf16>
    %293 = vector.shape_cast %292 : vector<16x8xbf16> to vector<2x8x8xbf16>
    %294 = vector.extract_strided_slice %259 {offsets = [0, 88], sizes = [16, 8], strides = [1, 1]} : vector<16x96xbf16> to vector<16x8xbf16>
    %295 = vector.shape_cast %294 : vector<16x8xbf16> to vector<2x8x8xbf16>
    %296 = vector.shape_cast %289 : vector<2x8x8xbf16> to vector<2x1x8x8xbf16>
    %297 = vector.shape_cast %291 : vector<2x8x8xbf16> to vector<2x1x8x8xbf16>
    %298 = vector.shape_cast %293 : vector<2x8x8xbf16> to vector<2x1x8x8xbf16>
    %299 = vector.shape_cast %295 : vector<2x8x8xbf16> to vector<2x1x8x8xbf16>
    %300 = tpu.concatenate %296, %297, %298, %299 in 1 : vector<2x1x8x8xbf16>, vector<2x1x8x8xbf16>, vector<2x1x8x8xbf16>, vector<2x1x8x8xbf16> -> vector<2x4x8x8xbf16>
    %301 = vector.shape_cast %300 : vector<2x4x8x8xbf16> to vector<8x8x8xbf16>
    "tpu.trace_start"() <{level = 10 : i32, message = "nqd,nkd->nqk"}> : () -> ()
    %cst_78 = arith.constant dense<0.000000e+00> : vector<8x8x8xf32>
    %302 = tpu.matmul %273, %287, %cst_78 {dimension_numbers = #tpu.dot_dimension_numbers<[2], [2], [1], [1], [0, 0, 0, 1, 1, 1], [0], [0]>} : vector<8x8x8xbf16>, vector<8x8x8xbf16>, vector<8x8x8xf32> -> vector<8x8x8xf32>
    "tpu.trace_stop"() : () -> ()
    %cst_79 = arith.constant 0.353553385 : f32
    %303 = vector.broadcast %cst_79 : f32 to vector<8x8x8xf32>
    %304 = arith.mulf %302, %303 : vector<8x8x8xf32>
    %305 = vector.shape_cast %304 : vector<8x8x8xf32> to vector<64x8xf32>
    %cst_80 = arith.constant 0.000000e+00 : f32
    %306 = vector.broadcast %cst_80 : f32 to vector<64x8xf32>
    %cst_81 = arith.constant 0.000000e+00 : f32
    %307 = vector.broadcast %cst_81 : f32 to vector<64x8xf32>
    %308 = arith.cmpf oge, %305, %305 : vector<64x8xf32>
    %309 = arith.extui %308 : vector<64x8xi1> to vector<64x8xi32>
    %310 = arith.sitofp %309 : vector<64x8xi32> to vector<64x8xf32>
    %311 = arith.addf %306, %310 : vector<64x8xf32>
    %312 = arith.mulf %310, %305 : vector<64x8xf32>
    %313 = arith.addf %307, %312 : vector<64x8xf32>
    %314 = vector.extract_strided_slice %305 {offsets = [0, 1], sizes = [64, 7], strides = [1, 1]} : vector<64x8xf32> to vector<64x7xf32>
    %315 = vector.extract_strided_slice %305 {offsets = [0, 0], sizes = [64, 1], strides = [1, 1]} : vector<64x8xf32> to vector<64x1xf32>
    %316 = tpu.concatenate %314, %315 in 1 : vector<64x7xf32>, vector<64x1xf32> -> vector<64x8xf32>
    %317 = arith.cmpf oge, %316, %305 : vector<64x8xf32>
    %318 = arith.extui %317 : vector<64x8xi1> to vector<64x8xi32>
    %319 = arith.sitofp %318 : vector<64x8xi32> to vector<64x8xf32>
    %320 = arith.addf %311, %319 : vector<64x8xf32>
    %321 = arith.mulf %319, %316 : vector<64x8xf32>
    %322 = arith.addf %313, %321 : vector<64x8xf32>
    %323 = vector.extract_strided_slice %316 {offsets = [0, 1], sizes = [64, 7], strides = [1, 1]} : vector<64x8xf32> to vector<64x7xf32>
    %324 = vector.extract_strided_slice %316 {offsets = [0, 0], sizes = [64, 1], strides = [1, 1]} : vector<64x8xf32> to vector<64x1xf32>
    %325 = tpu.concatenate %323, %324 in 1 : vector<64x7xf32>, vector<64x1xf32> -> vector<64x8xf32>
    %326 = arith.cmpf oge, %325, %305 : vector<64x8xf32>
    %327 = arith.extui %326 : vector<64x8xi1> to vector<64x8xi32>
    %328 = arith.sitofp %327 : vector<64x8xi32> to vector<64x8xf32>
    %329 = arith.addf %320, %328 : vector<64x8xf32>
    %330 = arith.mulf %328, %325 : vector<64x8xf32>
    %331 = arith.addf %322, %330 : vector<64x8xf32>
    %332 = vector.extract_strided_slice %325 {offsets = [0, 1], sizes = [64, 7], strides = [1, 1]} : vector<64x8xf32> to vector<64x7xf32>
    %333 = vector.extract_strided_slice %325 {offsets = [0, 0], sizes = [64, 1], strides = [1, 1]} : vector<64x8xf32> to vector<64x1xf32>
    %334 = tpu.concatenate %332, %333 in 1 : vector<64x7xf32>, vector<64x1xf32> -> vector<64x8xf32>
    %335 = arith.cmpf oge, %334, %305 : vector<64x8xf32>
    %336 = arith.extui %335 : vector<64x8xi1> to vector<64x8xi32>
    %337 = arith.sitofp %336 : vector<64x8xi32> to vector<64x8xf32>
    %338 = arith.addf %329, %337 : vector<64x8xf32>
    %339 = arith.mulf %337, %334 : vector<64x8xf32>
    %340 = arith.addf %331, %339 : vector<64x8xf32>
    %341 = vector.extract_strided_slice %334 {offsets = [0, 1], sizes = [64, 7], strides = [1, 1]} : vector<64x8xf32> to vector<64x7xf32>
    %342 = vector.extract_strided_slice %334 {offsets = [0, 0], sizes = [64, 1], strides = [1, 1]} : vector<64x8xf32> to vector<64x1xf32>
    %343 = tpu.concatenate %341, %342 in 1 : vector<64x7xf32>, vector<64x1xf32> -> vector<64x8xf32>
    %344 = arith.cmpf oge, %343, %305 : vector<64x8xf32>
    %345 = arith.extui %344 : vector<64x8xi1> to vector<64x8xi32>
    %346 = arith.sitofp %345 : vector<64x8xi32> to vector<64x8xf32>
    %347 = arith.addf %338, %346 : vector<64x8xf32>
    %348 = arith.mulf %346, %343 : vector<64x8xf32>
    %349 = arith.addf %340, %348 : vector<64x8xf32>
    %350 = vector.extract_strided_slice %343 {offsets = [0, 1], sizes = [64, 7], strides = [1, 1]} : vector<64x8xf32> to vector<64x7xf32>
    %351 = vector.extract_strided_slice %343 {offsets = [0, 0], sizes = [64, 1], strides = [1, 1]} : vector<64x8xf32> to vector<64x1xf32>
    %352 = tpu.concatenate %350, %351 in 1 : vector<64x7xf32>, vector<64x1xf32> -> vector<64x8xf32>
    %353 = arith.cmpf oge, %352, %305 : vector<64x8xf32>
    %354 = arith.extui %353 : vector<64x8xi1> to vector<64x8xi32>
    %355 = arith.sitofp %354 : vector<64x8xi32> to vector<64x8xf32>
    %356 = arith.addf %347, %355 : vector<64x8xf32>
    %357 = arith.mulf %355, %352 : vector<64x8xf32>
    %358 = arith.addf %349, %357 : vector<64x8xf32>
    %359 = vector.extract_strided_slice %352 {offsets = [0, 1], sizes = [64, 7], strides = [1, 1]} : vector<64x8xf32> to vector<64x7xf32>
    %360 = vector.extract_strided_slice %352 {offsets = [0, 0], sizes = [64, 1], strides = [1, 1]} : vector<64x8xf32> to vector<64x1xf32>
    %361 = tpu.concatenate %359, %360 in 1 : vector<64x7xf32>, vector<64x1xf32> -> vector<64x8xf32>
    %362 = arith.cmpf oge, %361, %305 : vector<64x8xf32>
    %363 = arith.extui %362 : vector<64x8xi1> to vector<64x8xi32>
    %364 = arith.sitofp %363 : vector<64x8xi32> to vector<64x8xf32>
    %365 = arith.addf %356, %364 : vector<64x8xf32>
    %366 = arith.mulf %364, %361 : vector<64x8xf32>
    %367 = arith.addf %358, %366 : vector<64x8xf32>
    %368 = vector.extract_strided_slice %361 {offsets = [0, 1], sizes = [64, 7], strides = [1, 1]} : vector<64x8xf32> to vector<64x7xf32>
    %369 = vector.extract_strided_slice %361 {offsets = [0, 0], sizes = [64, 1], strides = [1, 1]} : vector<64x8xf32> to vector<64x1xf32>
    %370 = tpu.concatenate %368, %369 in 1 : vector<64x7xf32>, vector<64x1xf32> -> vector<64x8xf32>
    %371 = arith.cmpf oge, %370, %305 : vector<64x8xf32>
    %372 = arith.extui %371 : vector<64x8xi1> to vector<64x8xi32>
    %373 = arith.sitofp %372 : vector<64x8xi32> to vector<64x8xf32>
    %374 = arith.addf %365, %373 : vector<64x8xf32>
    %375 = arith.mulf %373, %370 : vector<64x8xf32>
    %376 = arith.addf %367, %375 : vector<64x8xf32>
    %377 = arith.mulf %374, %305 : vector<64x8xf32>
    %cst_82 = arith.constant 1.000000e+00 : f32
    %378 = vector.broadcast %cst_82 : f32 to vector<64x8xf32>
    %379 = arith.addf %378, %377 : vector<64x8xf32>
    %380 = arith.cmpf ogt, %379, %376 : vector<64x8xf32>
    %381 = arith.extui %380 : vector<64x8xi1> to vector<64x8xi32>
    %382 = arith.sitofp %381 : vector<64x8xi32> to vector<64x8xf32>
    %cst_83 = arith.constant dense<0.000000e+00> : vector<64xf32>
    %383 = vector.multi_reduction <add>, %382, %cst_83 [1] : vector<64x8xf32> to vector<64xf32>
    %384 = vector.shape_cast %383 : vector<64xf32> to vector<64x1xf32>
    %cst_84 = arith.constant 0.000000e+00 : f32
    %385 = vector.broadcast %cst_84 : f32 to vector<64x8xf32>
    %386 = arith.select %380, %305, %385 : vector<64x8xi1>, vector<64x8xf32>
    %cst_85 = arith.constant dense<0.000000e+00> : vector<64xf32>
    %387 = vector.multi_reduction <add>, %386, %cst_85 [1] : vector<64x8xf32> to vector<64xf32>
    %388 = vector.shape_cast %387 : vector<64xf32> to vector<64x1xf32>
    %cst_86 = arith.constant 1.000000e+00 : f32
    %389 = vector.broadcast %cst_86 : f32 to vector<64x1xf32>
    %390 = arith.subf %388, %389 : vector<64x1xf32>
    %391 = arith.divf %390, %384 : vector<64x1xf32>
    %392 = vector.broadcast %391 : vector<64x1xf32> to vector<64x8xf32>
    %393 = arith.subf %305, %392 : vector<64x8xf32>
    %cst_87 = arith.constant 0.000000e+00 : f32
    %394 = vector.broadcast %cst_87 : f32 to vector<64x8xf32>
    %395 = arith.maximumf %393, %394 : vector<64x8xf32>
    %396 = vector.shape_cast %395 : vector<64x8xf32> to vector<2x4x8x8xf32>
    %c0_88 = arith.constant 0 : index
    %c0_89 = arith.constant 0 : index
    %c0_90 = arith.constant 0 : index
    %c0_91 = arith.constant 0 : index
    %397 = vector.load %arg19[%c0_88, %c0_89, %c0_90, %c0_91] : memref<2x4x8x8xf32, #tpu.memory_space<vmem>>, vector<2x4x8x8xf32>
    tpu.vector_store %arg19[%c0_88, %c0_89, %c0_90, %c0_91], %396 {strides = array<i32>} : memref<2x4x8x8xf32, #tpu.memory_space<vmem>>, vector<2x4x8x8xf32>,
    %398 = vector.shape_cast %395 : vector<64x8xf32> to vector<8x8x8xf32>
    %399 = arith.truncf %398 : vector<8x8x8xf32> to vector<8x8x8xbf16>
    "tpu.trace_start"() <{level = 10 : i32, message = "nqk,nkd->nqd"}> : () -> ()
    %cst_92 = arith.constant dense<0.000000e+00> : vector<8x8x8xf32>
    %400 = tpu.matmul %399, %301, %cst_92 {dimension_numbers = #tpu.dot_dimension_numbers<[2], [1], [1], [2], [0, 0, 0, 1, 1, 2], [0], [0]>} : vector<8x8x8xbf16>, vector<8x8x8xbf16>, vector<8x8x8xf32> -> vector<8x8x8xf32>
    "tpu.trace_stop"() : () -> ()
    %401 = vector.shape_cast %400 : vector<8x8x8xf32> to vector<2x4x8x8xf32>
    %402 = vector.extract_strided_slice %401 {offsets = [0, 0, 0, 0], sizes = [2, 1, 8, 8], strides = [1, 1, 1, 1]} : vector<2x4x8x8xf32> to vector<2x1x8x8xf32>
    %403 = vector.shape_cast %402 : vector<2x1x8x8xf32> to vector<2x8x8xf32>
    %404 = vector.shape_cast %403 : vector<2x8x8xf32> to vector<16x8xf32>
    %405 = vector.extract_strided_slice %401 {offsets = [0, 1, 0, 0], sizes = [2, 1, 8, 8], strides = [1, 1, 1, 1]} : vector<2x4x8x8xf32> to vector<2x1x8x8xf32>
    %406 = vector.shape_cast %405 : vector<2x1x8x8xf32> to vector<2x8x8xf32>
    %407 = vector.shape_cast %406 : vector<2x8x8xf32> to vector<16x8xf32>
    %408 = vector.extract_strided_slice %401 {offsets = [0, 2, 0, 0], sizes = [2, 1, 8, 8], strides = [1, 1, 1, 1]} : vector<2x4x8x8xf32> to vector<2x1x8x8xf32>
    %409 = vector.shape_cast %408 : vector<2x1x8x8xf32> to vector<2x8x8xf32>
    %410 = vector.shape_cast %409 : vector<2x8x8xf32> to vector<16x8xf32>
    %411 = vector.extract_strided_slice %401 {offsets = [0, 3, 0, 0], sizes = [2, 1, 8, 8], strides = [1, 1, 1, 1]} : vector<2x4x8x8xf32> to vector<2x1x8x8xf32>
    %412 = vector.shape_cast %411 : vector<2x1x8x8xf32> to vector<2x8x8xf32>
    %413 = vector.shape_cast %412 : vector<2x8x8xf32> to vector<16x8xf32>
    %414 = tpu.concatenate %404, %407, %410, %413 in 1 : vector<16x8xf32>, vector<16x8xf32>, vector<16x8xf32>, vector<16x8xf32> -> vector<16x32xf32>
    %415 = arith.truncf %414 : vector<16x32xf32> to vector<16x32xbf16>
    %c1_93 = arith.constant 1 : index
    %c0_94 = arith.constant 0 : index
    %c0_95 = arith.constant 0 : index
    %416 = vector.load %arg5[%c1_93, %c0_94, %c0_95] : memref<2x32x32xbf16, #tpu.memory_space<vmem>>, vector<1x32x32xbf16>
    %417 = vector.shape_cast %416 : vector<1x32x32xbf16> to vector<32x32xbf16>
    %cst_96 = arith.constant dense<0.000000e+00> : vector<16x32xf32>
    %418 = tpu.matmul %415, %417, %cst_96 {dimension_numbers = #tpu.dot_dimension_numbers<[1], [0], [0], [1], [0, 0, 1, 1], [], []>} : vector<16x32xbf16>, vector<32x32xbf16>, vector<16x32xf32> -> vector<16x32xf32>
    %c1_97 = arith.constant 1 : index
    %c0_98 = arith.constant 0 : index
    %c0_99 = arith.constant 0 : index
    %419 = vector.load %arg6[%c1_97, %c0_98, %c0_99] : memref<2x1x32xf32, #tpu.memory_space<vmem>>, vector<1x1x32xf32>
    %420 = vector.shape_cast %419 : vector<1x1x32xf32> to vector<1x32xf32>
    %421 = vector.broadcast %420 : vector<1x32xf32> to vector<16x32xf32>
    %422 = arith.addf %418, %421 : vector<16x32xf32>
    %423 = arith.addf %250, %422 : vector<16x32xf32>
    %c1_100 = arith.constant 1 : index
    %c0_101 = arith.constant 0 : index
    %c0_102 = arith.constant 0 : index
    %424 = vector.load %arg7[%c1_100, %c0_101, %c0_102] : memref<2x1x32xf32, #tpu.memory_space<vmem>>, vector<1x1x32xf32>
    %425 = vector.shape_cast %424 : vector<1x1x32xf32> to vector<1x32xf32>
    %c1_103 = arith.constant 1 : index
    %c0_104 = arith.constant 0 : index
    %c0_105 = arith.constant 0 : index
    %426 = vector.load %arg8[%c1_103, %c0_104, %c0_105] : memref<2x1x32xf32, #tpu.memory_space<vmem>>, vector<1x1x32xf32>
    %427 = vector.shape_cast %426 : vector<1x1x32xf32> to vector<1x32xf32>
    %cst_106 = arith.constant dense<0.000000e+00> : vector<16xf32>
    %428 = vector.multi_reduction <add>, %423, %cst_106 [1] : vector<16x32xf32> to vector<16xf32>
    %429 = vector.shape_cast %428 : vector<16xf32> to vector<16x1xf32>
    %cst_107 = arith.constant 3.200000e+01 : f32
    %430 = vector.broadcast %cst_107 : f32 to vector<16x1xf32>
    %431 = arith.divf %429, %430 : vector<16x1xf32>
    %432 = vector.broadcast %431 : vector<16x1xf32> to vector<16x32xf32>
    %433 = arith.subf %423, %432 : vector<16x32xf32>
    %434 = arith.mulf %433, %433 : vector<16x32xf32>
    %cst_108 = arith.constant dense<0.000000e+00> : vector<16xf32>
    %435 = vector.multi_reduction <add>, %434, %cst_108 [1] : vector<16x32xf32> to vector<16xf32>
    %436 = vector.shape_cast %435 : vector<16xf32> to vector<16x1xf32>
    %cst_109 = arith.constant 3.200000e+01 : f32
    %437 = vector.broadcast %cst_109 : f32 to vector<16x1xf32>
    %438 = arith.divf %436, %437 : vector<16x1xf32>
    %cst_110 = arith.constant 9.99999974E-6 : f32
    %439 = vector.broadcast %cst_110 : f32 to vector<16x1xf32>
    %440 = arith.addf %438, %439 : vector<16x1xf32>
    %441 = math.rsqrt %440 : vector<16x1xf32>
    %442 = vector.broadcast %441 : vector<16x1xf32> to vector<16x32xf32>
    %443 = arith.mulf %433, %442 : vector<16x32xf32>
    %444 = vector.broadcast %425 : vector<1x32xf32> to vector<16x32xf32>
    %445 = arith.mulf %443, %444 : vector<16x32xf32>
    %446 = vector.broadcast %427 : vector<1x32xf32> to vector<16x32xf32>
    %447 = arith.addf %445, %446 : vector<16x32xf32>
    %448 = arith.truncf %447 : vector<16x32xf32> to vector<16x32xbf16>
    %c1_111 = arith.constant 1 : index
    %c0_112 = arith.constant 0 : index
    %c0_113 = arith.constant 0 : index
    %449 = vector.load %arg9[%c1_111, %c0_112, %c0_113] : memref<2x32x64xbf16, #tpu.memory_space<vmem>>, vector<1x32x64xbf16>
    %450 = vector.shape_cast %449 : vector<1x32x64xbf16> to vector<32x64xbf16>
    %cst_114 = arith.constant dense<0.000000e+00> : vector<16x64xf32>
    %451 = tpu.matmul %448, %450, %cst_114 {dimension_numbers = #tpu.dot_dimension_numbers<[1], [0], [0], [1], [0, 0, 1, 1], [], []>} : vector<16x32xbf16>, vector<32x64xbf16>, vector<16x64xf32> -> vector<16x64xf32>
    %c1_115 = arith.constant 1 : index
    %c0_116 = arith.constant 0 : index
    %c0_117 = arith.constant 0 : index
    %452 = vector.load %arg10[%c1_115, %c0_116, %c0_117] : memref<2x1x64xf32, #tpu.memory_space<vmem>>, vector<1x1x64xf32>
    %453 = vector.shape_cast %452 : vector<1x1x64xf32> to vector<1x64xf32>
    %454 = vector.broadcast %453 : vector<1x64xf32> to vector<16x64xf32>
    %455 = arith.addf %451, %454 : vector<16x64xf32>
    %cst_118 = arith.constant 0.000000e+00 : f32
    %456 = vector.broadcast %cst_118 : f32 to vector<16x64xf32>
    %457 = arith.maximumf %455, %456 : vector<16x64xf32>
    %458 = arith.truncf %457 : vector<16x64xf32> to vector<16x64xbf16>
    %c1_119 = arith.constant 1 : index
    %c0_120 = arith.constant 0 : index
    %c0_121 = arith.constant 0 : index
    %459 = vector.load %arg11[%c1_119, %c0_120, %c0_121] : memref<2x64x32xbf16, #tpu.memory_space<vmem>>, vector<1x64x32xbf16>
    %460 = vector.shape_cast %459 : vector<1x64x32xbf16> to vector<64x32xbf16>
    %cst_122 = arith.constant dense<0.000000e+00> : vector<16x32xf32>
    %461 = tpu.matmul %458, %460, %cst_122 {dimension_numbers = #tpu.dot_dimension_numbers<[1], [0], [0], [1], [0, 0, 1, 1], [], []>} : vector<16x64xbf16>, vector<64x32xbf16>, vector<16x32xf32> -> vector<16x32xf32>
    %c1_123 = arith.constant 1 : index
    %c0_124 = arith.constant 0 : index
    %c0_125 = arith.constant 0 : index
    %462 = vector.load %arg12[%c1_123, %c0_124, %c0_125] : memref<2x1x32xf32, #tpu.memory_space<vmem>>, vector<1x1x32xf32>
    %463 = vector.shape_cast %462 : vector<1x1x32xf32> to vector<1x32xf32>
    %464 = vector.broadcast %463 : vector<1x32xf32> to vector<16x32xf32>
    %465 = arith.addf %461, %464 : vector<16x32xf32>
    %466 = arith.addf %447, %465 : vector<16x32xf32>
    %c1_126 = arith.constant 1 : index
    %c0_127 = arith.constant 0 : index
    %c0_128 = arith.constant 0 : index
    %467 = vector.load %arg13[%c1_126, %c0_127, %c0_128] : memref<2x1x32xf32, #tpu.memory_space<vmem>>, vector<1x1x32xf32>
    %468 = vector.shape_cast %467 : vector<1x1x32xf32> to vector<1x32xf32>
    %c1_129 = arith.constant 1 : index
    %c0_130 = arith.constant 0 : index
    %c0_131 = arith.constant 0 : index
    %469 = vector.load %arg14[%c1_129, %c0_130, %c0_131] : memref<2x1x32xf32, #tpu.memory_space<vmem>>, vector<1x1x32xf32>
    %470 = vector.shape_cast %469 : vector<1x1x32xf32> to vector<1x32xf32>
    %cst_132 = arith.constant dense<0.000000e+00> : vector<16xf32>
    %471 = vector.multi_reduction <add>, %466, %cst_132 [1] : vector<16x32xf32> to vector<16xf32>
    %472 = vector.shape_cast %471 : vector<16xf32> to vector<16x1xf32>
    %cst_133 = arith.constant 3.200000e+01 : f32
    %473 = vector.broadcast %cst_133 : f32 to vector<16x1xf32>
    %474 = arith.divf %472, %473 : vector<16x1xf32>
    %475 = vector.broadcast %474 : vector<16x1xf32> to vector<16x32xf32>
    %476 = arith.subf %466, %475 : vector<16x32xf32>
    %477 = arith.mulf %476, %476 : vector<16x32xf32>
    %cst_134 = arith.constant dense<0.000000e+00> : vector<16xf32>
    %478 = vector.multi_reduction <add>, %477, %cst_134 [1] : vector<16x32xf32> to vector<16xf32>
    %479 = vector.shape_cast %478 : vector<16xf32> to vector<16x1xf32>
    %cst_135 = arith.constant 3.200000e+01 : f32
    %480 = vector.broadcast %cst_135 : f32 to vector<16x1xf32>
    %481 = arith.divf %479, %480 : vector<16x1xf32>
    %cst_136 = arith.constant 9.99999974E-6 : f32
    %482 = vector.broadcast %cst_136 : f32 to vector<16x1xf32>
    %483 = arith.addf %481, %482 : vector<16x1xf32>
    %484 = math.rsqrt %483 : vector<16x1xf32>
    %485 = vector.broadcast %484 : vector<16x1xf32> to vector<16x32xf32>
    %486 = arith.mulf %476, %485 : vector<16x32xf32>
    %487 = vector.broadcast %468 : vector<1x32xf32> to vector<16x32xf32>
    %488 = arith.mulf %486, %487 : vector<16x32xf32>
    %489 = vector.broadcast %470 : vector<1x32xf32> to vector<16x32xf32>
    %490 = arith.addf %488, %489 : vector<16x32xf32>
    %491 = vector.shape_cast %490 : vector<16x32xf32> to vector<2x8x32xf32>
    %cst_137 = arith.constant dense<0.000000e+00> : vector<2x32xf32>
    %492 = vector.multi_reduction <add>, %491, %cst_137 [1] : vector<2x8x32xf32> to vector<2x32xf32>
    %cst_138 = arith.constant 8.000000e+00 : f32
    %493 = vector.broadcast %cst_138 : f32 to vector<2x32xf32>
    %494 = arith.divf %492, %493 : vector<2x32xf32>
    %495 = arith.truncf %494 : vector<2x32xf32> to vector<2x32xbf16>
    %c0_139 = arith.constant 0 : index
    %c0_140 = arith.constant 0 : index
    %496 = vector.load %arg15[%c0_139, %c0_140] : memref<32x10xbf16, #tpu.memory_space<vmem>>, vector<32x10xbf16>
    %cst_141 = arith.constant dense<0.000000e+00> : vector<2x10xf32>
    %497 = tpu.matmul %495, %496, %cst_141 {dimension_numbers = #tpu.dot_dimension_numbers<[1], [0], [0], [1], [0, 0, 1, 1], [], []>} : vector<2x32xbf16>, vector<32x10xbf16>, vector<2x10xf32> -> vector<2x10xf32>
    %c0_142 = arith.constant 0 : index
    %c0_143 = arith.constant 0 : index
    %498 = vector.load %arg16[%c0_142, %c0_143] : memref<1x10xf32, #tpu.memory_space<vmem>>, vector<1x10xf32>
    %499 = vector.broadcast %498 : vector<1x10xf32> to vector<2x10xf32>
    %500 = arith.addf %497, %499 : vector<2x10xf32>
    %c0_144 = arith.constant 0 : index
    %c0_145 = arith.constant 0 : index
    %501 = vector.load %arg17[%c0_144, %c0_145] : memref<2x10xf32, #tpu.memory_space<vmem>>, vector<2x10xf32>
    tpu.vector_store %arg17[%c0_144, %c0_145], %500 {strides = array<i32>} : memref<2x10xf32, #tpu.memory_space<vmem>>, vector<2x10xf32>,
    return
  }
}

</mosaic_0001>

<llo_original>
// kernel: transformer_forward.1
$region0: #{transformer_forward.1}
  #allocation0 [shape = 'u32[]', space=smem, size = 0x4, offset = 0x4, fixed_abs, tag = 'smem constant byte address 0x4 - core index']
  #allocation1 [shape = 'u32[144,128]{1,0:T(1,128)}', space=vmem, size = 0x12000, scoped, tag = 'internal scratch']
  %s0 = inlined_call_operand.vmem [shape: f32[2,8,16], index: 0, kind: input, shape index: {}]
  %s1 = inlined_call_operand.vmem [shape: bf16[16,32], index: 1, kind: input, shape index: {}]
  %s2 = inlined_call_operand.vmem [shape: f32[8,32], index: 2, kind: input, shape index: {}]
  %s3 = inlined_call_operand.vmem [shape: bf16[2,32,96], index: 3, kind: input, shape index: {}]
  %s4 = inlined_call_operand.vmem [shape: f32[2,1,96], index: 4, kind: input, shape index: {}]
  %s5 = inlined_call_operand.vmem [shape: bf16[2,32,32], index: 5, kind: input, shape index: {}]
  %s6 = inlined_call_operand.vmem [shape: f32[2,1,32], index: 6, kind: input, shape index: {}]
  %s7 = inlined_call_operand.vmem [shape: f32[2,1,32], index: 7, kind: input, shape index: {}]
  %s8 = inlined_call_operand.vmem [shape: f32[2,1,32], index: 8, kind: input, shape index: {}]
  %s9 = inlined_call_operand.vmem [shape: bf16[2,32,64], index: 9, kind: input, shape index: {}]
  %s10 = inlined_call_operand.hbm [shape: f32[2,1,64], index: 10, kind: input, shape index: {}]
  %s11 = inlined_call_operand.vmem [shape: bf16[2,64,32], index: 11, kind: input, shape index: {}]
  %s12 = inlined_call_operand.hbm [shape: f32[2,1,32], index: 12, kind: input, shape index: {}]
  %s13 = inlined_call_operand.vmem [shape: f32[2,1,32], index: 13, kind: input, shape index: {}]
  %s14 = inlined_call_operand.vmem [shape: f32[2,1,32], index: 14, kind: input, shape index: {}]
  %s15 = inlined_call_operand.vmem [shape: bf16[32,10], index: 15, kind: input, shape index: {}]
  %s16 = inlined_call_operand.vmem [shape: f32[1,10], index: 16, kind: input, shape index: {}]
  %s17 = inlined_call_operand.hbm [shape: f32[2,10], index: 17, kind: output, shape index: {0}]
  %s18 = inlined_call_operand.hbm [shape: f32[2,4,8,8], index: 18, kind: output, shape index: {1}]
  %s19 = inlined_call_operand.hbm [shape: f32[2,4,8,8], index: 19, kind: output, shape index: {2}]
  %20 = xla_tuple %s17, %s18, %s19
  %s21 = sld [smem:[#allocation0]]
  $region102: #{transformer_forward.1} parent=0
    _
  %s23 = ssub.s32 1, %s21
  %s24 = scalar_select 0, %s23, %s21
  $region1: #{transformer_forward.1} parent=0
    #allocation2 [shape = 'u8[1024]{0}', space=vmem, size = 0x400, scoped, tag = 'input window, operand 10, single buffered']
    #allocation3 [shape = 's32[1]{0}', space=sflag, size = 0x4, scoped, tag = 'scoped memory for transformer_forward.1']
    #allocation4 [shape = 's32[1]{0}', space=sflag, size = 0x4, scoped, tag = 'scoped memory for transformer_forward.1']
    #allocation5 [shape = 'u8[1024]{0}', space=vmem, size = 0x400, scoped, tag = 'input window, operand 12, single buffered']
    #allocation6 [shape = 's32[1]{0}', space=sflag, size = 0x4, scoped, tag = 'scoped memory for transformer_forward.1']
    #allocation7 [shape = 'u8[1024]{0}', space=vmem, size = 0x400, scoped, tag = 'output window, operand 0, single buffered']
    #allocation8 [shape = 'u8[32768]{0}', space=vmem, size = 0x8000, scoped, tag = 'output window, operand 1, single buffered']
    #allocation9 [shape = 's32[1]{0}', space=sflag, size = 0x4, scoped, tag = 'scoped memory for transformer_forward.1']
    #allocation10 [shape = 'u8[32768]{0}', space=vmem, size = 0x8000, scoped, tag = 'output window, operand 2, single buffered']
    %25 = vsyncpa [#allocation3], 0
    %26 = vsyncpa [#allocation6], 0
    %27 = vsyncpa [#allocation4], 0
    %28 = vsyncpa [#allocation9], 0
    // Predicated region
    $region2: #{transformer_forward.1} parent=1 // pred_check
      _
    $region3: #{transformer_forward.1} parent=1 // pred_check_branch
      %30 = sbr.rel (0) target = $region5
    $region4: #{transformer_forward.1} parent=1 // pred_region
      _
    $region5: #{transformer_forward.1} parent=1 // pred_fallthru
      _
    // Predicated region
    $region6: #{transformer_forward.1} parent=1 // pred_check
      _
    $region7: #{transformer_forward.1} parent=1 // pred_check_branch
      %32 = sbr.rel (0) target = $region9
    $region8: #{transformer_forward.1} parent=1 // pred_region
      _
    $region9: #{transformer_forward.1} parent=1 // pred_fallthru
      _
    // Predicated region
    $region10: #{transformer_forward.1} parent=1 // pred_check
      _
    $region11: #{transformer_forward.1} parent=1 // pred_check_branch
      %34 = sbr.rel (0) target = $region13
    $region12: #{transformer_forward.1} parent=1 // pred_region
      _
    $region13: #{transformer_forward.1} parent=1 // pred_fallthru
      _
    // Predicated region
    $region14: #{transformer_forward.1} parent=1 // pred_check
      _
    $region15: #{transformer_forward.1} parent=1 // pred_check_branch
      %36 = sbr.rel (0) target = $region17
    $region16: #{transformer_forward.1} parent=1 // pred_region
      _
    $region17: #{transformer_forward.1} parent=1 // pred_fallthru
      _
    // Predicated region
    $region18: #{transformer_forward.1} parent=1 // pred_check
      _
    $region19: #{transformer_forward.1} parent=1 // pred_check_branch
      %38 = sbr.rel (0) target = $region21
    $region20: #{transformer_forward.1} parent=1 // pred_region
      _
    $region21: #{transformer_forward.1} parent=1 // pred_fallthru
      _
    // Predicated region
    $region22: #{transformer_forward.1} parent=1 // pred_check
      _
    $region23: #{transformer_forward.1} parent=1 // pred_check_branch
      %40 = sbr.rel (0) target = $region25
    $region24: #{transformer_forward.1} parent=1 // pred_region
      _
    $region25: #{transformer_forward.1} parent=1 // pred_fallthru
      _
    // Predicated region
    $region26: #{transformer_forward.1} parent=1 // pred_check
      _
    $region27: #{transformer_forward.1} parent=1 // pred_check_branch
      %42 = sbr.rel (0) target = $region29
    $region28: #{transformer_forward.1} parent=1 // pred_region
      _
    $region29: #{transformer_forward.1} parent=1 // pred_fallthru
      _
    // Predicated region
    $region30: #{transformer_forward.1} parent=1 // pred_check
      _
    $region31: #{transformer_forward.1} parent=1 // pred_check_branch
      %44 = sbr.rel (0) target = $region33
    $region32: #{transformer_forward.1} parent=1 // pred_region
      _
    $region33: #{transformer_forward.1} parent=1 // pred_fallthru
      _
    // Predicated region
    $region34: #{transformer_forward.1} parent=1 // pred_check
      _
    $region35: #{transformer_forward.1} parent=1 // pred_check_branch
      %46 = sbr.rel (0) target = $region37
    $region36: #{transformer_forward.1} parent=1 // pred_region
      _
    $region37: #{transformer_forward.1} parent=1 // pred_fallthru
      _
    // Predicated region
    $region38: #{transformer_forward.1} parent=1 // pred_check
      _
    $region39: #{transformer_forward.1} parent=1 // pred_check_branch
      %48 = sbr.rel (0) target = $region41
    $region40: #{transformer_forward.1} parent=1 // pred_region
      _
    $region41: #{transformer_forward.1} parent=1 // pred_fallthru
      _
    // Predicated region
    $region42: #{transformer_forward.1} parent=1 // pred_check
      _
    $region43: #{transformer_forward.1} parent=1 // pred_check_branch
      %50 = sbr.rel (0) target = $region45
    $region44: #{transformer_forward.1} parent=1 // pred_region
      %s52 = ssub.s32 32, 32
      %53 = vsyncadd [#allocation3], %s52
      %s54 = sshll.u32 [#allocation2], 4
      %s55 = int_to_ptr.vmem [resolvable:$true] %s54
      %60 = dma.hbm_to_vmem [thread:$0]  %s10, 32, %s55, [#allocation3], 16, 16, 1
    $region45: #{transformer_forward.1} parent=1 // pred_fallthru
      _
    // Predicated region
    $region46: #{transformer_forward.1} parent=1 // pred_check
      _
    $region47: #{transformer_forward.1} parent=1 // pred_check_branch
      %62 = sbr.rel (0) target = $region49
    $region48: #{transformer_forward.1} parent=1 // pred_region
      _
    $region49: #{transformer_forward.1} parent=1 // pred_fallthru
      _
    // Predicated region
    $region50: #{transformer_forward.1} parent=1 // pred_check
      _
    $region51: #{transformer_forward.1} parent=1 // pred_check_branch
      %64 = sbr.rel (0) target = $region53
    $region52: #{transformer_forward.1} parent=1 // pred_region
      %s66 = ssub.s32 32, 32
      %67 = vsyncadd [#allocation6], %s66
      %s68 = sshll.u32 [#allocation5], 4
      %s69 = int_to_ptr.vmem [resolvable:$true] %s68
      %74 = dma.hbm_to_vmem [thread:$0]  %s12, 32, %s69, [#allocation6], 16, 16, 1
    $region53: #{transformer_forward.1} parent=1 // pred_fallthru
      _
    // Predicated region
    $region54: #{transformer_forward.1} parent=1 // pred_check
      _
    $region55: #{transformer_forward.1} parent=1 // pred_check_branch
      %76 = sbr.rel (0) target = $region57
    $region56: #{transformer_forward.1} parent=1 // pred_region
      _
    $region57: #{transformer_forward.1} parent=1 // pred_fallthru
      _
    // Predicated region
    $region58: #{transformer_forward.1} parent=1 // pred_check
      _
    $region59: #{transformer_forward.1} parent=1 // pred_check_branch
      %78 = sbr.rel (0) target = $region61
    $region60: #{transformer_forward.1} parent=1 // pred_region
      _
    $region61: #{transformer_forward.1} parent=1 // pred_fallthru
      _
    // Predicated region
    $region62: #{transformer_forward.1} parent=1 // pred_check
      _
    $region63: #{transformer_forward.1} parent=1 // pred_check_branch
      %80 = sbr.rel (0) target = $region65
    $region64: #{transformer_forward.1} parent=1 // pred_region
      _
    $region65: #{transformer_forward.1} parent=1 // pred_fallthru
      _
    // Predicated region
    $region66: #{transformer_forward.1} parent=1 // pred_check
      _
    $region67: #{transformer_forward.1} parent=1 // pred_check_branch
      %82 = sbr.rel (0) target = $region69
    $region68: #{transformer_forward.1} parent=1 // pred_region
      _
    $region69: #{transformer_forward.1} parent=1 // pred_fallthru
      _
    // Predicated region
    $region70: #{transformer_forward.1} parent=1 // pred_check
      _
    $region71: #{transformer_forward.1} parent=1 // pred_check_branch
      %84 = sbr.rel (0) target = $region73
    $region72: #{transformer_forward.1} parent=1 // pred_region
      %85 = dma.done [#allocation3], 32
    $region73: #{transformer_forward.1} parent=1 // pred_fallthru
      _
    // Predicated region
    $region74: #{transformer_forward.1} parent=1 // pred_check
      _
    $region75: #{transformer_forward.1} parent=1 // pred_check_branch
      %87 = sbr.rel (0) target = $region77
    $region76: #{transformer_forward.1} parent=1 // pred_region
      %88 = dma.done [#allocation6], 32
    $region77: #{transformer_forward.1} parent=1 // pred_fallthru
      _
    %v90 = vld [vmem:[%s0] sm:$0xff]
    %v91 = vld [vmem:[%s0 + $0x8] sm:$0xff]
    %v92 = vpack.c.bf16 %v91, %v90
    %v93 = vld [vmem:[%s1] sm:$0xf]
    %v94 = vld [vmem:[%s1 + $0x4] sm:$0xf]
    %v97 = vunpack.c.l.b16 %v93
    %v98 = vunpack.c.l.b16 %v94
    %v99 = vpack.c.b16 %v98, %v97
    %vm101 = vcmask 130048
    %v103 = vsel %vm101, %v92, 0
    %105 = vmatprep.subr.bf16.mxu0 0
    %106 = vmatpush1.bf16.msra.mxu0 0
    %107 = vmatprep.subr.bf16.mxu0 0
    %108 = vmatpush1.bf16.msra.mxu0 0
    %109 = vmatprep.subr.bf16.mxu0 0
    %110 = vmatpush1.bf16.msra.mxu0 0
    %111 = vmatprep.subr.bf16.mxu0 0
    %112 = vmatpush1.bf16.msra.mxu0 0
    %113 = vmatprep.subr.bf16.mxu0 0
    %114 = vmatpush1.bf16.msra.mxu0 0
    %115 = vmatprep.subr.bf16.mxu0 0
    %116 = vmatpush1.bf16.msra.mxu0 0
    %117 = vmatprep.subr.bf16.mxu0 0
    %118 = vmatpush1.bf16.msra.mxu0 0
    %119 = vmatprep.subr.bf16.mxu0 0
    %120 = vmatpush1.bf16.msra.mxu0 %v99
    %121 = vmatprep.subr.bf16.mxu0 0
    %122 = vmatpush2.bf16.msra.mxu0 0
    %123 = vmatprep.subr.bf16.mxu0 0
    %124 = vmatpush2.bf16.msra.mxu0 0
    %125 = vmatprep.subr.bf16.mxu0 0
    %126 = vmatpush2.bf16.msra.mxu0 0
    %127 = vmatprep.subr.bf16.mxu0 0
    %128 = vmatpush2.bf16.msra.mxu0 0
    %129 = vmatprep.subr.bf16.mxu0 0
    %130 = vmatpush2.bf16.msra.mxu0 0
    %131 = vmatprep.subr.bf16.mxu0 0
    %132 = vmatpush2.bf16.msra.mxu0 0
    %133 = vmatprep.subr.bf16.mxu0 0
    %134 = vmatpush2.bf16.msra.mxu0 0
    %135 = vmatprep.subr.bf16.mxu0 0
    %136 = vmatpush2.bf16.msra.mxu0 0
    %137 = vmatprep.mubr.bf16.mxu0 0
    %138 = vmatmul.mubr.bf16.gmra.mxu0 %v103
    %v139 = vpop.f32.mrf.mxu0
    %v140 = vadd.f32 0.0, %v139
    %v141 = vpop.f32.mrf.mxu0
    %v142 = vpop.f32.mrf.mxu0
    %v143 = vadd.f32 0.0, %v142
    %v144 = vpop.f32.mrf.mxu0
    %145 = vdwg.mxu0
    %v146 = vld [vmem:[%s2] sm:$0xff]
    %v147 = vadd.f32 %v140, %v146
    %v148 = vadd.f32 %v143, %v146
    %v149 = vpack.c.bf16 %v148, %v147
    %v150 = vld [vmem:[%s3] sm:$0xf]
    %v151 = vld [vmem:[%s3 + $0x4] sm:$0xf]
    %v152 = vld [vmem:[%s3 + $0x8] sm:$0xf]
    %v153 = vld [vmem:[%s3 + $0xc] sm:$0xf]
    %v154 = vld [vmem:[%s4] sm:$0x1]
    %v156 = vlaneseq
    %v157 = vshrl.u32 %v156, 7
    %v158 = vsub.s32 0, %v157
    %v159 = vrot.slane %v154, %v158
    %v165 = vunpack.c.l.b16 %v150
    %v166 = vunpack.c.l.b16 %v151
    %v167 = vunpack.c.l.b16 %v152
    %v168 = vunpack.c.l.b16 %v153
    %v169 = vpack.c.b16 %v166, %v165
    %v170 = vpack.c.b16 %v168, %v167
    %vm173 = vcmask 261120
    %v175 = vsel %vm173, %v149, 0
    %177 = vmatprep.subr.bf16.mxu0 0
    %178 = vmatpush1.bf16.msra.mxu0 0
    %179 = vmatprep.subr.bf16.mxu0 0
    %180 = vmatpush1.bf16.msra.mxu0 0
    %181 = vmatprep.subr.bf16.mxu0 0
    %182 = vmatpush1.bf16.msra.mxu0 0
    %183 = vmatprep.subr.bf16.mxu0 0
    %184 = vmatpush1.bf16.msra.mxu0 0
    %185 = vmatprep.subr.bf16.mxu0 0
    %186 = vmatpush1.bf16.msra.mxu0 0
    %187 = vmatprep.subr.bf16.mxu0 0
    %188 = vmatpush1.bf16.msra.mxu0 0
    %189 = vmatprep.subr.bf16.mxu0 0
    %190 = vmatpush1.bf16.msra.mxu0 %v170
    %191 = vmatprep.subr.bf16.mxu0 0
    %192 = vmatpush1.bf16.msra.mxu0 %v169
    %193 = vmatprep.subr.bf16.mxu0 0
    %194 = vmatpush2.bf16.msra.mxu0 0
    %195 = vmatprep.subr.bf16.mxu0 0
    %196 = vmatpush2.bf16.msra.mxu0 0
    %197 = vmatprep.subr.bf16.mxu0 0
    %198 = vmatpush2.bf16.msra.mxu0 0
    %199 = vmatprep.subr.bf16.mxu0 0
    %200 = vmatpush2.bf16.msra.mxu0 0
    %201 = vmatprep.subr.bf16.mxu0 0
    %202 = vmatpush2.bf16.msra.mxu0 0
    %203 = vmatprep.subr.bf16.mxu0 0
    %204 = vmatpush2.bf16.msra.mxu0 0
    %205 = vmatprep.subr.bf16.mxu0 0
    %206 = vmatpush2.bf16.msra.mxu0 0
    %207 = vmatprep.subr.bf16.mxu0 0
    %208 = vmatpush2.bf16.msra.mxu0 0
    %209 = vmatprep.mubr.bf16.mxu0 0
    %210 = vmatmul.mubr.bf16.gmra.mxu0 %v175
    %v211 = vpop.f32.mrf.mxu0
    %v212 = vadd.f32 %v159, %v211
    %v213 = vpop.f32.mrf.mxu0
    %v214 = vpop.f32.mrf.mxu0
    %v215 = vadd.f32 %v159, %v214
    %v216 = vpop.f32.mrf.mxu0
    %217 = vdwg.mxu0
    %v218 = vpack.c.bf16 %v215, %v212
    %v220 = vunpack.c.l.b16 %v218
    %v221 = vunpack.c.h.b16 %v218
    %v222 = vpack.c.b16 %v220, %v220
    %v223 = vpack.c.b16 %v221, %v221
    %224 = vrot.lane.b32.xlu0 %v222, 120
    %v225 = vpop.permute.xlu0 %224
    %226 = vrot.lane.b32.xlu0 %v223, 120
    %v227 = vpop.permute.xlu0 %226
    %228 = vrot.lane.b32.xlu0 %v222, 112
    %v229 = vpop.permute.xlu0 %228
    %230 = vrot.lane.b32.xlu0 %v223, 112
    %v231 = vpop.permute.xlu0 %230
    %232 = vrot.lane.b32.xlu0 %v222, 104
    %v233 = vpop.permute.xlu0 %232
    %234 = vrot.lane.b32.xlu0 %v223, 104
    %v235 = vpop.permute.xlu0 %234
    %236 = vrot.lane.b32.xlu0 %v222, 96
    %v237 = vpop.permute.xlu0 %236
    %vm238 = vcmask 64512
    %v240 = vsel %vm238, %v222, 0
    %v243 = vsel %vm238, %v237, 0
    %245 = vmatprep.subr.bf16.mxu0 0
    %246 = vmatpush1.bf16.xpose.msra.mxu0 0
    %247 = vmatprep.subr.bf16.mxu0 0
    %248 = vmatpush1.bf16.xpose.msra.mxu0 0
    %249 = vmatprep.subr.bf16.mxu0 0
    %250 = vmatpush1.bf16.xpose.msra.mxu0 0
    %251 = vmatprep.subr.bf16.mxu0 0
    %252 = vmatpush1.bf16.xpose.msra.mxu0 0
    %253 = vmatprep.subr.bf16.mxu0 0
    %254 = vmatpush1.bf16.xpose.msra.mxu0 0
    %255 = vmatprep.subr.bf16.mxu0 0
    %256 = vmatpush1.bf16.xpose.msra.mxu0 0
    %257 = vmatprep.subr.bf16.mxu0 0
    %258 = vmatpush1.bf16.xpose.msra.mxu0 0
    %259 = vmatprep.subr.bf16.mxu0 0
    %260 = vmatpush1.bf16.xpose.msra.mxu0 %v243
    %261 = vmatprep.subr.bf16.mxu0 0
    %262 = vmatpush2.bf16.xpose.msra.mxu0 0
    %263 = vmatprep.subr.bf16.mxu0 0
    %264 = vmatpush2.bf16.xpose.msra.mxu0 0
    %265 = vmatprep.subr.bf16.mxu0 0
    %266 = vmatpush2.bf16.xpose.msra.mxu0 0
    %267 = vmatprep.subr.bf16.mxu0 0
    %268 = vmatpush2.bf16.xpose.msra.mxu0 0
    %269 = vmatprep.subr.bf16.mxu0 0
    %270 = vmatpush2.bf16.xpose.msra.mxu0 0
    %271 = vmatprep.subr.bf16.mxu0 0
    %272 = vmatpush2.bf16.xpose.msra.mxu0 0
    %273 = vmatprep.subr.bf16.mxu0 0
    %274 = vmatpush2.bf16.xpose.msra.mxu0 0
    %275 = vmatprep.subr.bf16.mxu0 0
    %276 = vmatpush2.bf16.xpose.msra.mxu0 0
    %277 = vmatprep.mubr.bf16.mxu0 0
    %278 = vmatmul.mubr.bf16.gmra.mxu0 %v240
    %v279 = vpop.f32.mrf.mxu0
    %v280 = vadd.f32 0.0, %v279
    %v281 = vpop.f32.mrf.mxu0
    %v282 = vpop.f32.mrf.mxu0
    %v283 = vpop.f32.mrf.mxu0
    %284 = vdwg.mxu0
    %v285 = vunpack.c.l.b16 %v225
    %v286 = vpack.c.b16 %v285, %v285
    %287 = vrot.lane.b32.xlu0 %v286, 96
    %v288 = vpop.permute.xlu0 %287
    %v290 = vsel %vm238, %v225, 0
    %v293 = vsel %vm238, %v288, 0
    %295 = vmatprep.subr.bf16.mxu0 0
    %296 = vmatpush1.bf16.xpose.msra.mxu0 0
    %297 = vmatprep.subr.bf16.mxu0 0
    %298 = vmatpush1.bf16.xpose.msra.mxu0 0
    %299 = vmatprep.subr.bf16.mxu0 0
    %300 = vmatpush1.bf16.xpose.msra.mxu0 0
    %301 = vmatprep.subr.bf16.mxu0 0
    %302 = vmatpush1.bf16.xpose.msra.mxu0 0
    %303 = vmatprep.subr.bf16.mxu0 0
    %304 = vmatpush1.bf16.xpose.msra.mxu0 0
    %305 = vmatprep.subr.bf16.mxu0 0
    %306 = vmatpush1.bf16.xpose.msra.mxu0 0
    %307 = vmatprep.subr.bf16.mxu0 0
    %308 = vmatpush1.bf16.xpose.msra.mxu0 0
    %309 = vmatprep.subr.bf16.mxu0 0
    %310 = vmatpush1.bf16.xpose.msra.mxu0 %v293
    %311 = vmatprep.subr.bf16.mxu0 0
    %312 = vmatpush2.bf16.xpose.msra.mxu0 0
    %313 = vmatprep.subr.bf16.mxu0 0
    %314 = vmatpush2.bf16.xpose.msra.mxu0 0
    %315 = vmatprep.subr.bf16.mxu0 0
    %316 = vmatpush2.bf16.xpose.msra.mxu0 0
    %317 = vmatprep.subr.bf16.mxu0 0
    %318 = vmatpush2.bf16.xpose.msra.mxu0 0
    %319 = vmatprep.subr.bf16.mxu0 0
    %320 = vmatpush2.bf16.xpose.msra.mxu0 0
    %321 = vmatprep.subr.bf16.mxu0 0
    %322 = vmatpush2.bf16.xpose.msra.mxu0 0
    %323 = vmatprep.subr.bf16.mxu0 0
    %324 = vmatpush2.bf16.xpose.msra.mxu0 0
    %325 = vmatprep.subr.bf16.mxu0 0
    %326 = vmatpush2.bf16.xpose.msra.mxu0 0
    %327 = vmatprep.mubr.bf16.mxu0 0
    %328 = vmatmul.mubr.bf16.gmra.mxu0 %v290
    %v329 = vpop.f32.mrf.mxu0
    %v330 = vadd.f32 0.0, %v329
    %v331 = vpop.f32.mrf.mxu0
    %v332 = vpop.f32.mrf.mxu0
    %v333 = vpop.f32.mrf.mxu0
    %334 = vdwg.mxu0
    %v335 = vunpack.c.l.b16 %v229
    %v336 = vpack.c.b16 %v335, %v335
    %337 = vrot.lane.b32.xlu0 %v336, 96
    %v338 = vpop.permute.xlu0 %337
    %v340 = vsel %vm238, %v229, 0
    %v343 = vsel %vm238, %v338, 0
    %345 = vmatprep.subr.bf16.mxu0 0
    %346 = vmatpush1.bf16.xpose.msra.mxu0 0
    %347 = vmatprep.subr.bf16.mxu0 0
    %348 = vmatpush1.bf16.xpose.msra.mxu0 0
    %349 = vmatprep.subr.bf16.mxu0 0
    %350 = vmatpush1.bf16.xpose.msra.mxu0 0
    %351 = vmatprep.subr.bf16.mxu0 0
    %352 = vmatpush1.bf16.xpose.msra.mxu0 0
    %353 = vmatprep.subr.bf16.mxu0 0
    %354 = vmatpush1.bf16.xpose.msra.mxu0 0
    %355 = vmatprep.subr.bf16.mxu0 0
    %356 = vmatpush1.bf16.xpose.msra.mxu0 0
    %357 = vmatprep.subr.bf16.mxu0 0
    %358 = vmatpush1.bf16.xpose.msra.mxu0 0
    %359 = vmatprep.subr.bf16.mxu0 0
    %360 = vmatpush1.bf16.xpose.msra.mxu0 %v343
    %361 = vmatprep.subr.bf16.mxu0 0
    %362 = vmatpush2.bf16.xpose.msra.mxu0 0
    %363 = vmatprep.subr.bf16.mxu0 0
    %364 = vmatpush2.bf16.xpose.msra.mxu0 0
    %365 = vmatprep.subr.bf16.mxu0 0
    %366 = vmatpush2.bf16.xpose.msra.mxu0 0
    %367 = vmatprep.subr.bf16.mxu0 0
    %368 = vmatpush2.bf16.xpose.msra.mxu0 0
    %369 = vmatprep.subr.bf16.mxu0 0
    %370 = vmatpush2.bf16.xpose.msra.mxu0 0
    %371 = vmatprep.subr.bf16.mxu0 0
    %372 = vmatpush2.bf16.xpose.msra.mxu0 0
    %373 = vmatprep.subr.bf16.mxu0 0
    %374 = vmatpush2.bf16.xpose.msra.mxu0 0
    %375 = vmatprep.subr.bf16.mxu0 0
    %376 = vmatpush2.bf16.xpose.msra.mxu0 0
    %377 = vmatprep.mubr.bf16.mxu0 0
    %378 = vmatmul.mubr.bf16.gmra.mxu0 %v340
    %v379 = vpop.f32.mrf.mxu0
    %v380 = vadd.f32 0.0, %v379
    %v381 = vpop.f32.mrf.mxu0
    %v382 = vpop.f32.mrf.mxu0
    %v383 = vpop.f32.mrf.mxu0
    %384 = vdwg.mxu0
    %v385 = vunpack.c.l.b16 %v233
    %v386 = vpack.c.b16 %v385, %v385
    %387 = vrot.lane.b32.xlu0 %v386, 96
    %v388 = vpop.permute.xlu0 %387
    %v390 = vsel %vm238, %v233, 0
    %v393 = vsel %vm238, %v388, 0
    %395 = vmatprep.subr.bf16.mxu0 0
    %396 = vmatpush1.bf16.xpose.msra.mxu0 0
    %397 = vmatprep.subr.bf16.mxu0 0
    %398 = vmatpush1.bf16.xpose.msra.mxu0 0
    %399 = vmatprep.subr.bf16.mxu0 0
    %400 = vmatpush1.bf16.xpose.msra.mxu0 0
    %401 = vmatprep.subr.bf16.mxu0 0
    %402 = vmatpush1.bf16.xpose.msra.mxu0 0
    %403 = vmatprep.subr.bf16.mxu0 0
    %404 = vmatpush1.bf16.xpose.msra.mxu0 0
    %405 = vmatprep.subr.bf16.mxu0 0
    %406 = vmatpush1.bf16.xpose.msra.mxu0 0
    %407 = vmatprep.subr.bf16.mxu0 0
    %408 = vmatpush1.bf16.xpose.msra.mxu0 0
    %409 = vmatprep.subr.bf16.mxu0 0
    %410 = vmatpush1.bf16.xpose.msra.mxu0 %v393
    %411 = vmatprep.subr.bf16.mxu0 0
    %412 = vmatpush2.bf16.xpose.msra.mxu0 0
    %413 = vmatprep.subr.bf16.mxu0 0
    %414 = vmatpush2.bf16.xpose.msra.mxu0 0
    %415 = vmatprep.subr.bf16.mxu0 0
    %416 = vmatpush2.bf16.xpose.msra.mxu0 0
    %417 = vmatprep.subr.bf16.mxu0 0
    %418 = vmatpush2.bf16.xpose.msra.mxu0 0
    %419 = vmatprep.subr.bf16.mxu0 0
    %420 = vmatpush2.bf16.xpose.msra.mxu0 0
    %421 = vmatprep.subr.bf16.mxu0 0
    %422 = vmatpush2.bf16.xpose.msra.mxu0 0
    %423 = vmatprep.subr.bf16.mxu0 0
    %424 = vmatpush2.bf16.xpose.msra.mxu0 0
    %425 = vmatprep.subr.bf16.mxu0 0
    %426 = vmatpush2.bf16.xpose.msra.mxu0 0
    %427 = vmatprep.mubr.bf16.mxu0 0
    %428 = vmatmul.mubr.bf16.gmra.mxu0 %v390
    %v429 = vpop.f32.mrf.mxu0
    %v430 = vadd.f32 0.0, %v429
    %v431 = vpop.f32.mrf.mxu0
    %v432 = vpop.f32.mrf.mxu0
    %v433 = vpop.f32.mrf.mxu0
    %434 = vdwg.mxu0
    %435 = vrot.lane.b32.xlu0 %v223, 96
    %v436 = vpop.permute.xlu0 %435
    %v438 = vsel %vm238, %v223, 0
    %v441 = vsel %vm238, %v436, 0
    %443 = vmatprep.subr.bf16.mxu0 0
    %444 = vmatpush1.bf16.xpose.msra.mxu0 0
    %445 = vmatprep.subr.bf16.mxu0 0
    %446 = vmatpush1.bf16.xpose.msra.mxu0 0
    %447 = vmatprep.subr.bf16.mxu0 0
    %448 = vmatpush1.bf16.xpose.msra.mxu0 0
    %449 = vmatprep.subr.bf16.mxu0 0
    %450 = vmatpush1.bf16.xpose.msra.mxu0 0
    %451 = vmatprep.subr.bf16.mxu0 0
    %452 = vmatpush1.bf16.xpose.msra.mxu0 0
    %453 = vmatprep.subr.bf16.mxu0 0
    %454 = vmatpush1.bf16.xpose.msra.mxu0 0
    %455 = vmatprep.subr.bf16.mxu0 0
    %456 = vmatpush1.bf16.xpose.msra.mxu0 0
    %457 = vmatprep.subr.bf16.mxu0 0
    %458 = vmatpush1.bf16.xpose.msra.mxu0 %v441
    %459 = vmatprep.subr.bf16.mxu0 0
    %460 = vmatpush2.bf16.xpose.msra.mxu0 0
    %461 = vmatprep.subr.bf16.mxu0 0
    %462 = vmatpush2.bf16.xpose.msra.mxu0 0
    %463 = vmatprep.subr.bf16.mxu0 0
    %464 = vmatpush2.bf16.xpose.msra.mxu0 0
    %465 = vmatprep.subr.bf16.mxu0 0
    %466 = vmatpush2.bf16.xpose.msra.mxu0 0
    %467 = vmatprep.subr.bf16.mxu0 0
    %468 = vmatpush2.bf16.xpose.msra.mxu0 0
    %469 = vmatprep.subr.bf16.mxu0 0
    %470 = vmatpush2.bf16.xpose.msra.mxu0 0
    %471 = vmatprep.subr.bf16.mxu0 0
    %472 = vmatpush2.bf16.xpose.msra.mxu0 0
    %473 = vmatprep.subr.bf16.mxu0 0
    %474 = vmatpush2.bf16.xpose.msra.mxu0 0
    %475 = vmatprep.mubr.bf16.mxu0 0
    %476 = vmatmul.mubr.bf16.gmra.mxu0 %v438
    %v477 = vpop.f32.mrf.mxu0
    %v478 = vadd.f32 0.0, %v477
    %v479 = vpop.f32.mrf.mxu0
    %v480 = vpop.f32.mrf.mxu0
    %v481 = vpop.f32.mrf.mxu0
    %482 = vdwg.mxu0
    %v483 = vunpack.c.l.b16 %v227
    %v484 = vpack.c.b16 %v483, %v483
    %485 = vrot.lane.b32.xlu0 %v484, 96
    %v486 = vpop.permute.xlu0 %485
    %v488 = vsel %vm238, %v227, 0
    %v491 = vsel %vm238, %v486, 0
    %493 = vmatprep.subr.bf16.mxu0 0
    %494 = vmatpush1.bf16.xpose.msra.mxu0 0
    %495 = vmatprep.subr.bf16.mxu0 0
    %496 = vmatpush1.bf16.xpose.msra.mxu0 0
    %497 = vmatprep.subr.bf16.mxu0 0
    %498 = vmatpush1.bf16.xpose.msra.mxu0 0
    %499 = vmatprep.subr.bf16.mxu0 0
    %500 = vmatpush1.bf16.xpose.msra.mxu0 0
    %501 = vmatprep.subr.bf16.mxu0 0
    %502 = vmatpush1.bf16.xpose.msra.mxu0 0
    %503 = vmatprep.subr.bf16.mxu0 0
    %504 = vmatpush1.bf16.xpose.msra.mxu0 0
    %505 = vmatprep.subr.bf16.mxu0 0
    %506 = vmatpush1.bf16.xpose.msra.mxu0 0
    %507 = vmatprep.subr.bf16.mxu0 0
    %508 = vmatpush1.bf16.xpose.msra.mxu0 %v491
    %509 = vmatprep.subr.bf16.mxu0 0
    %510 = vmatpush2.bf16.xpose.msra.mxu0 0
    %511 = vmatprep.subr.bf16.mxu0 0
    %512 = vmatpush2.bf16.xpose.msra.mxu0 0
    %513 = vmatprep.subr.bf16.mxu0 0
    %514 = vmatpush2.bf16.xpose.msra.mxu0 0
    %515 = vmatprep.subr.bf16.mxu0 0
    %516 = vmatpush2.bf16.xpose.msra.mxu0 0
    %517 = vmatprep.subr.bf16.mxu0 0
    %518 = vmatpush2.bf16.xpose.msra.mxu0 0
    %519 = vmatprep.subr.bf16.mxu0 0
    %520 = vmatpush2.bf16.xpose.msra.mxu0 0
    %521 = vmatprep.subr.bf16.mxu0 0
    %522 = vmatpush2.bf16.xpose.msra.mxu0 0
    %523 = vmatprep.subr.bf16.mxu0 0
    %524 = vmatpush2.bf16.xpose.msra.mxu0 0
    %525 = vmatprep.mubr.bf16.mxu0 0
    %526 = vmatmul.mubr.bf16.gmra.mxu0 %v488
    %v527 = vpop.f32.mrf.mxu0
    %v528 = vadd.f32 0.0, %v527
    %v529 = vpop.f32.mrf.mxu0
    %v530 = vpop.f32.mrf.mxu0
    %v531 = vpop.f32.mrf.mxu0
    %532 = vdwg.mxu0
    %v533 = vunpack.c.l.b16 %v231
    %v534 = vpack.c.b16 %v533, %v533
    %535 = vrot.lane.b32.xlu0 %v534, 96
    %v536 = vpop.permute.xlu0 %535
    %v538 = vsel %vm238, %v231, 0
    %v541 = vsel %vm238, %v536, 0
    %543 = vmatprep.subr.bf16.mxu0 0
    %544 = vmatpush1.bf16.xpose.msra.mxu0 0
    %545 = vmatprep.subr.bf16.mxu0 0
    %546 = vmatpush1.bf16.xpose.msra.mxu0 0
    %547 = vmatprep.subr.bf16.mxu0 0
    %548 = vmatpush1.bf16.xpose.msra.mxu0 0
    %549 = vmatprep.subr.bf16.mxu0 0
    %550 = vmatpush1.bf16.xpose.msra.mxu0 0
    %551 = vmatprep.subr.bf16.mxu0 0
    %552 = vmatpush1.bf16.xpose.msra.mxu0 0
    %553 = vmatprep.subr.bf16.mxu0 0
    %554 = vmatpush1.bf16.xpose.msra.mxu0 0
    %555 = vmatprep.subr.bf16.mxu0 0
    %556 = vmatpush1.bf16.xpose.msra.mxu0 0
    %557 = vmatprep.subr.bf16.mxu0 0
    %558 = vmatpush1.bf16.xpose.msra.mxu0 %v541
    %559 = vmatprep.subr.bf16.mxu0 0
    %560 = vmatpush2.bf16.xpose.msra.mxu0 0
    %561 = vmatprep.subr.bf16.mxu0 0
    %562 = vmatpush2.bf16.xpose.msra.mxu0 0
    %563 = vmatprep.subr.bf16.mxu0 0
    %564 = vmatpush2.bf16.xpose.msra.mxu0 0
    %565 = vmatprep.subr.bf16.mxu0 0
    %566 = vmatpush2.bf16.xpose.msra.mxu0 0
    %567 = vmatprep.subr.bf16.mxu0 0
    %568 = vmatpush2.bf16.xpose.msra.mxu0 0
    %569 = vmatprep.subr.bf16.mxu0 0
    %570 = vmatpush2.bf16.xpose.msra.mxu0 0
    %571 = vmatprep.subr.bf16.mxu0 0
    %572 = vmatpush2.bf16.xpose.msra.mxu0 0
    %573 = vmatprep.subr.bf16.mxu0 0
    %574 = vmatpush2.bf16.xpose.msra.mxu0 0
    %575 = vmatprep.mubr.bf16.mxu0 0
    %576 = vmatmul.mubr.bf16.gmra.mxu0 %v538
    %v577 = vpop.f32.mrf.mxu0
    %v578 = vadd.f32 0.0, %v577
    %v579 = vpop.f32.mrf.mxu0
    %v580 = vpop.f32.mrf.mxu0
    %v581 = vpop.f32.mrf.mxu0
    %582 = vdwg.mxu0
    %v583 = vunpack.c.l.b16 %v235
    %v584 = vpack.c.b16 %v583, %v583
    %585 = vrot.lane.b32.xlu0 %v584, 96
    %v586 = vpop.permute.xlu0 %585
    %v588 = vsel %vm238, %v235, 0
    %v591 = vsel %vm238, %v586, 0
    %593 = vmatprep.subr.bf16.mxu0 0
    %594 = vmatpush1.bf16.xpose.msra.mxu0 0
    %595 = vmatprep.subr.bf16.mxu0 0
    %596 = vmatpush1.bf16.xpose.msra.mxu0 0
    %597 = vmatprep.subr.bf16.mxu0 0
    %598 = vmatpush1.bf16.xpose.msra.mxu0 0
    %599 = vmatprep.subr.bf16.mxu0 0
    %600 = vmatpush1.bf16.xpose.msra.mxu0 0
    %601 = vmatprep.subr.bf16.mxu0 0
    %602 = vmatpush1.bf16.xpose.msra.mxu0 0
    %603 = vmatprep.subr.bf16.mxu0 0
    %604 = vmatpush1.bf16.xpose.msra.mxu0 0
    %605 = vmatprep.subr.bf16.mxu0 0
    %606 = vmatpush1.bf16.xpose.msra.mxu0 0
    %607 = vmatprep.subr.bf16.mxu0 0
    %608 = vmatpush1.bf16.xpose.msra.mxu0 %v591
    %609 = vmatprep.subr.bf16.mxu0 0
    %610 = vmatpush2.bf16.xpose.msra.mxu0 0
    %611 = vmatprep.subr.bf16.mxu0 0
    %612 = vmatpush2.bf16.xpose.msra.mxu0 0
    %613 = vmatprep.subr.bf16.mxu0 0
    %614 = vmatpush2.bf16.xpose.msra.mxu0 0
    %615 = vmatprep.subr.bf16.mxu0 0
    %616 = vmatpush2.bf16.xpose.msra.mxu0 0
    %617 = vmatprep.subr.bf16.mxu0 0
    %618 = vmatpush2.bf16.xpose.msra.mxu0 0
    %619 = vmatprep.subr.bf16.mxu0 0
    %620 = vmatpush2.bf16.xpose.msra.mxu0 0
    %621 = vmatprep.subr.bf16.mxu0 0
    %622 = vmatpush2.bf16.xpose.msra.mxu0 0
    %623 = vmatprep.subr.bf16.mxu0 0
    %624 = vmatpush2.bf16.xpose.msra.mxu0 0
    %625 = vmatprep.mubr.bf16.mxu0 0
    %626 = vmatmul.mubr.bf16.gmra.mxu0 %v588
    %v627 = vpop.f32.mrf.mxu0
    %v628 = vadd.f32 0.0, %v627
    %v629 = vpop.f32.mrf.mxu0
    %v630 = vpop.f32.mrf.mxu0
    %v631 = vpop.f32.mrf.mxu0
    %632 = vdwg.mxu0
    %v633 = vmul.f32 %v280, 0.35355338
    %v634 = vmul.f32 %v330, 0.35355338
    %v635 = vmul.f32 %v380, 0.35355338
    %v636 = vmul.f32 %v430, 0.35355338
    %v637 = vmul.f32 %v478, 0.35355338
    %v638 = vmul.f32 %v528, 0.35355338
    %v639 = vmul.f32 %v578, 0.35355338
    %v640 = vmul.f32 %v628, 0.35355338
    %vm641 = vcmp.ge.f32.partialorder %v633, %v633
    %vm642 = vcmp.ge.f32.partialorder %v634, %v634
    %vm643 = vcmp.ge.f32.partialorder %v635, %v635
    %vm644 = vcmp.ge.f32.partialorder %v636, %v636
    %vm645 = vcmp.ge.f32.partialorder %v637, %v637
    %vm646 = vcmp.ge.f32.partialorder %v638, %v638
    %vm647 = vcmp.ge.f32.partialorder %v639, %v639
    %vm648 = vcmp.ge.f32.partialorder %v640, %v640
    %v649 = vsel %vm641, 1, 0
    %v650 = vsel %vm642, 1, 0
    %v651 = vsel %vm643, 1, 0
    %v652 = vsel %vm644, 1, 0
    %v653 = vsel %vm645, 1, 0
    %v654 = vsel %vm646, 1, 0
    %v655 = vsel %vm647, 1, 0
    %v656 = vsel %vm648, 1, 0
    %v657 = vcvt.s32.f32 %v649
    %v658 = vcvt.s32.f32 %v650
    %v659 = vcvt.s32.f32 %v651
    %v660 = vcvt.s32.f32 %v652
    %v661 = vcvt.s32.f32 %v653
    %v662 = vcvt.s32.f32 %v654
    %v663 = vcvt.s32.f32 %v655
    %v664 = vcvt.s32.f32 %v656
    %v665 = vadd.f32 %v657, 0.0
    %v666 = vadd.f32 %v658, 0.0
    %v667 = vadd.f32 %v659, 0.0
    %v668 = vadd.f32 %v660, 0.0
    %v669 = vadd.f32 %v661, 0.0
    %v670 = vadd.f32 %v662, 0.0
    %v671 = vadd.f32 %v663, 0.0
    %v672 = vadd.f32 %v664, 0.0
    %v673 = vmul.f32 %v657, %v633
    %v674 = vmul.f32 %v658, %v634
    %v675 = vmul.f32 %v659, %v635
    %v676 = vmul.f32 %v660, %v636
    %v677 = vmul.f32 %v661, %v637
    %v678 = vmul.f32 %v662, %v638
    %v679 = vmul.f32 %v663, %v639
    %v680 = vmul.f32 %v664, %v640
    %v681 = vadd.f32 %v673, 0.0
    %v682 = vadd.f32 %v674, 0.0
    %v683 = vadd.f32 %v675, 0.0
    %v684 = vadd.f32 %v676, 0.0
    %v685 = vadd.f32 %v677, 0.0
    %v686 = vadd.f32 %v678, 0.0
    %v687 = vadd.f32 %v679, 0.0
    %v688 = vadd.f32 %v680, 0.0
    %697 = vrot.lane.b32.xlu0 %v633, 127
    %v698 = vpop.permute.xlu0 %697
    %699 = vrot.lane.b32.xlu0 %v634, 127
    %v700 = vpop.permute.xlu0 %699
    %701 = vrot.lane.b32.xlu0 %v635, 127
    %v702 = vpop.permute.xlu0 %701
    %703 = vrot.lane.b32.xlu0 %v636, 127
    %v704 = vpop.permute.xlu0 %703
    %705 = vrot.lane.b32.xlu0 %v637, 127
    %v706 = vpop.permute.xlu0 %705
    %707 = vrot.lane.b32.xlu0 %v638, 127
    %v708 = vpop.permute.xlu0 %707
    %709 = vrot.lane.b32.xlu0 %v639, 127
    %v710 = vpop.permute.xlu0 %709
    %711 = vrot.lane.b32.xlu0 %v640, 127
    %v712 = vpop.permute.xlu0 %711
    %721 = vrot.lane.b32.xlu0 %v633, 7
    %v722 = vpop.permute.xlu0 %721
    %723 = vrot.lane.b32.xlu0 %v634, 7
    %v724 = vpop.permute.xlu0 %723
    %725 = vrot.lane.b32.xlu0 %v635, 7
    %v726 = vpop.permute.xlu0 %725
    %727 = vrot.lane.b32.xlu0 %v636, 7
    %v728 = vpop.permute.xlu0 %727
    %729 = vrot.lane.b32.xlu0 %v637, 7
    %v730 = vpop.permute.xlu0 %729
    %731 = vrot.lane.b32.xlu0 %v638, 7
    %v732 = vpop.permute.xlu0 %731
    %733 = vrot.lane.b32.xlu0 %v639, 7
    %v734 = vpop.permute.xlu0 %733
    %735 = vrot.lane.b32.xlu0 %v640, 7
    %v736 = vpop.permute.xlu0 %735
    %vm745 = vcmask 56320
    %v746 = vsel %vm745, %v698, %v722
    %v747 = vsel %vm745, %v700, %v724
    %v748 = vsel %vm745, %v702, %v726
    %v749 = vsel %vm745, %v704, %v728
    %v750 = vsel %vm745, %v706, %v730
    %v751 = vsel %vm745, %v708, %v732
    %v752 = vsel %vm745, %v710, %v734
    %v753 = vsel %vm745, %v712, %v736
    %vm754 = vcmp.ge.f32.partialorder %v746, %v633
    %vm755 = vcmp.ge.f32.partialorder %v747, %v634
    %vm756 = vcmp.ge.f32.partialorder %v748, %v635
    %vm757 = vcmp.ge.f32.partialorder %v749, %v636
    %vm758 = vcmp.ge.f32.partialorder %v750, %v637
    %vm759 = vcmp.ge.f32.partialorder %v751, %v638
    %vm760 = vcmp.ge.f32.partialorder %v752, %v639
    %vm761 = vcmp.ge.f32.partialorder %v753, %v640
    %v762 = vsel %vm754, 1, 0
    %v763 = vsel %vm755, 1, 0
    %v764 = vsel %vm756, 1, 0
    %v765 = vsel %vm757, 1, 0
    %v766 = vsel %vm758, 1, 0
    %v767 = vsel %vm759, 1, 0
    %v768 = vsel %vm760, 1, 0
    %v769 = vsel %vm761, 1, 0
    %v770 = vcvt.s32.f32 %v762
    %v771 = vcvt.s32.f32 %v763
    %v772 = vcvt.s32.f32 %v764
    %v773 = vcvt.s32.f32 %v765
    %v774 = vcvt.s32.f32 %v766
    %v775 = vcvt.s32.f32 %v767
    %v776 = vcvt.s32.f32 %v768
    %v777 = vcvt.s32.f32 %v769
    %v778 = vadd.f32 %v665, %v770
    %v779 = vadd.f32 %v666, %v771
    %v780 = vadd.f32 %v667, %v772
    %v781 = vadd.f32 %v668, %v773
    %v782 = vadd.f32 %v669, %v774
    %v783 = vadd.f32 %v670, %v775
    %v784 = vadd.f32 %v671, %v776
    %v785 = vadd.f32 %v672, %v777
    %v786 = vmul.f32 %v770, %v746
    %v787 = vmul.f32 %v771, %v747
    %v788 = vmul.f32 %v772, %v748
    %v789 = vmul.f32 %v773, %v749
    %v790 = vmul.f32 %v774, %v750
    %v791 = vmul.f32 %v775, %v751
    %v792 = vmul.f32 %v776, %v752
    %v793 = vmul.f32 %v777, %v753
    %v794 = vadd.f32 %v681, %v786
    %v795 = vadd.f32 %v682, %v787
    %v796 = vadd.f32 %v683, %v788
    %v797 = vadd.f32 %v684, %v789
    %v798 = vadd.f32 %v685, %v790
    %v799 = vadd.f32 %v686, %v791
    %v800 = vadd.f32 %v687, %v792
    %v801 = vadd.f32 %v688, %v793
    %810 = vrot.lane.b32.xlu0 %v746, 127
    %v811 = vpop.permute.xlu0 %810
    %812 = vrot.lane.b32.xlu0 %v747, 127
    %v813 = vpop.permute.xlu0 %812
    %814 = vrot.lane.b32.xlu0 %v748, 127
    %v815 = vpop.permute.xlu0 %814
    %816 = vrot.lane.b32.xlu0 %v749, 127
    %v817 = vpop.permute.xlu0 %816
    %818 = vrot.lane.b32.xlu0 %v750, 127
    %v819 = vpop.permute.xlu0 %818
    %820 = vrot.lane.b32.xlu0 %v751, 127
    %v821 = vpop.permute.xlu0 %820
    %822 = vrot.lane.b32.xlu0 %v752, 127
    %v823 = vpop.permute.xlu0 %822
    %824 = vrot.lane.b32.xlu0 %v753, 127
    %v825 = vpop.permute.xlu0 %824
    %834 = vrot.lane.b32.xlu0 %v746, 7
    %v835 = vpop.permute.xlu0 %834
    %836 = vrot.lane.b32.xlu0 %v747, 7
    %v837 = vpop.permute.xlu0 %836
    %838 = vrot.lane.b32.xlu0 %v748, 7
    %v839 = vpop.permute.xlu0 %838
    %840 = vrot.lane.b32.xlu0 %v749, 7
    %v841 = vpop.permute.xlu0 %840
    %842 = vrot.lane.b32.xlu0 %v750, 7
    %v843 = vpop.permute.xlu0 %842
    %844 = vrot.lane.b32.xlu0 %v751, 7
    %v845 = vpop.permute.xlu0 %844
    %846 = vrot.lane.b32.xlu0 %v752, 7
    %v847 = vpop.permute.xlu0 %846
    %848 = vrot.lane.b32.xlu0 %v753, 7
    %v849 = vpop.permute.xlu0 %848
    %v858 = vsel %vm745, %v811, %v835
    %v859 = vsel %vm745, %v813, %v837
    %v860 = vsel %vm745, %v815, %v839
    %v861 = vsel %vm745, %v817, %v841
    %v862 = vsel %vm745, %v819, %v843
    %v863 = vsel %vm745, %v821, %v845
    %v864 = vsel %vm745, %v823, %v847
    %v865 = vsel %vm745, %v825, %v849
    %vm866 = vcmp.ge.f32.partialorder %v858, %v633
    %vm867 = vcmp.ge.f32.partialorder %v859, %v634
    %vm868 = vcmp.ge.f32.partialorder %v860, %v635
    %vm869 = vcmp.ge.f32.partialorder %v861, %v636
    %vm870 = vcmp.ge.f32.partialorder %v862, %v637
    %vm871 = vcmp.ge.f32.partialorder %v863, %v638
    %vm872 = vcmp.ge.f32.partialorder %v864, %v639
    %vm873 = vcmp.ge.f32.partialorder %v865, %v640
    %v874 = vsel %vm866, 1, 0
    %v875 = vsel %vm867, 1, 0
    %v876 = vsel %vm868, 1, 0
    %v877 = vsel %vm869, 1, 0
    %v878 = vsel %vm870, 1, 0
    %v879 = vsel %vm871, 1, 0
    %v880 = vsel %vm872, 1, 0
    %v881 = vsel %vm873, 1, 0
    %v882 = vcvt.s32.f32 %v874
    %v883 = vcvt.s32.f32 %v875
    %v884 = vcvt.s32.f32 %v876
    %v885 = vcvt.s32.f32 %v877
    %v886 = vcvt.s32.f32 %v878
    %v887 = vcvt.s32.f32 %v879
    %v888 = vcvt.s32.f32 %v880
    %v889 = vcvt.s32.f32 %v881
    %v890 = vadd.f32 %v778, %v882
    %v891 = vadd.f32 %v779, %v883
    %v892 = vadd.f32 %v780, %v884
    %v893 = vadd.f32 %v781, %v885
    %v894 = vadd.f32 %v782, %v886
    %v895 = vadd.f32 %v783, %v887
    %v896 = vadd.f32 %v784, %v888
    %v897 = vadd.f32 %v785, %v889
    %v898 = vmul.f32 %v882, %v858
    %v899 = vmul.f32 %v883, %v859
    %v900 = vmul.f32 %v884, %v860
    %v901 = vmul.f32 %v885, %v861
    %v902 = vmul.f32 %v886, %v862
    %v903 = vmul.f32 %v887, %v863
    %v904 = vmul.f32 %v888, %v864
    %v905 = vmul.f32 %v889, %v865
    %v906 = vadd.f32 %v794, %v898
    %v907 = vadd.f32 %v795, %v899
    %v908 = vadd.f32 %v796, %v900
    %v909 = vadd.f32 %v797, %v901
    %v910 = vadd.f32 %v798, %v902
    %v911 = vadd.f32 %v799, %v903
    %v912 = vadd.f32 %v800, %v904
    %v913 = vadd.f32 %v801, %v905
    %922 = vrot.lane.b32.xlu0 %v858, 127
    %v923 = vpop.permute.xlu0 %922
    %924 = vrot.lane.b32.xlu0 %v859, 127
    %v925 = vpop.permute.xlu0 %924
    %926 = vrot.lane.b32.xlu0 %v860, 127
    %v927 = vpop.permute.xlu0 %926
    %928 = vrot.lane.b32.xlu0 %v861, 127
    %v929 = vpop.permute.xlu0 %928
    %930 = vrot.lane.b32.xlu0 %v862, 127
    %v931 = vpop.permute.xlu0 %930
    %932 = vrot.lane.b32.xlu0 %v863, 127
    %v933 = vpop.permute.xlu0 %932
    %934 = vrot.lane.b32.xlu0 %v864, 127
    %v935 = vpop.permute.xlu0 %934
    %936 = vrot.lane.b32.xlu0 %v865, 127
    %v937 = vpop.permute.xlu0 %936
    %946 = vrot.lane.b32.xlu0 %v858, 7
    %v947 = vpop.permute.xlu0 %946
    %948 = vrot.lane.b32.xlu0 %v859, 7
    %v949 = vpop.permute.xlu0 %948
    %950 = vrot.lane.b32.xlu0 %v860, 7
    %v951 = vpop.permute.xlu0 %950
    %952 = vrot.lane.b32.xlu0 %v861, 7
    %v953 = vpop.permute.xlu0 %952
    %954 = vrot.lane.b32.xlu0 %v862, 7
    %v955 = vpop.permute.xlu0 %954
    %956 = vrot.lane.b32.xlu0 %v863, 7
    %v957 = vpop.permute.xlu0 %956
    %958 = vrot.lane.b32.xlu0 %v864, 7
    %v959 = vpop.permute.xlu0 %958
    %960 = vrot.lane.b32.xlu0 %v865, 7
    %v961 = vpop.permute.xlu0 %960
    %v970 = vsel %vm745, %v923, %v947
    %v971 = vsel %vm745, %v925, %v949
    %v972 = vsel %vm745, %v927, %v951
    %v973 = vsel %vm745, %v929, %v953
    %v974 = vsel %vm745, %v931, %v955
    %v975 = vsel %vm745, %v933, %v957
    %v976 = vsel %vm745, %v935, %v959
    %v977 = vsel %vm745, %v937, %v961
    %vm978 = vcmp.ge.f32.partialorder %v970, %v633
    %vm979 = vcmp.ge.f32.partialorder %v971, %v634
    %vm980 = vcmp.ge.f32.partialorder %v972, %v635
    %vm981 = vcmp.ge.f32.partialorder %v973, %v636
    %vm982 = vcmp.ge.f32.partialorder %v974, %v637
    %vm983 = vcmp.ge.f32.partialorder %v975, %v638
    %vm984 = vcmp.ge.f32.partialorder %v976, %v639
    %vm985 = vcmp.ge.f32.partialorder %v977, %v640
    %v986 = vsel %vm978, 1, 0
    %v987 = vsel %vm979, 1, 0
    %v988 = vsel %vm980, 1, 0
    %v989 = vsel %vm981, 1, 0
    %v990 = vsel %vm982, 1, 0
    %v991 = vsel %vm983, 1, 0
    %v992 = vsel %vm984, 1, 0
    %v993 = vsel %vm985, 1, 0
    %v994 = vcvt.s32.f32 %v986
    %v995 = vcvt.s32.f32 %v987
    %v996 = vcvt.s32.f32 %v988
    %v997 = vcvt.s32.f32 %v989
    %v998 = vcvt.s32.f32 %v990
    %v999 = vcvt.s32.f32 %v991
    %v1000 = vcvt.s32.f32 %v992
    %v1001 = vcvt.s32.f32 %v993
    %v1002 = vadd.f32 %v890, %v994
    %v1003 = vadd.f32 %v891, %v995
    %v1004 = vadd.f32 %v892, %v996
    %v1005 = vadd.f32 %v893, %v997
    %v1006 = vadd.f32 %v894, %v998
    %v1007 = vadd.f32 %v895, %v999
    %v1008 = vadd.f32 %v896, %v1000
    %v1009 = vadd.f32 %v897, %v1001
    %v1010 = vmul.f32 %v994, %v970
    %v1011 = vmul.f32 %v995, %v971
    %v1012 = vmul.f32 %v996, %v972
    %v1013 = vmul.f32 %v997, %v973
    %v1014 = vmul.f32 %v998, %v974
    %v1015 = vmul.f32 %v999, %v975
    %v1016 = vmul.f32 %v1000, %v976
    %v1017 = vmul.f32 %v1001, %v977
    %v1018 = vadd.f32 %v906, %v1010
    %v1019 = vadd.f32 %v907, %v1011
    %v1020 = vadd.f32 %v908, %v1012
    %v1021 = vadd.f32 %v909, %v1013
    %v1022 = vadd.f32 %v910, %v1014
    %v1023 = vadd.f32 %v911, %v1015
    %v1024 = vadd.f32 %v912, %v1016
    %v1025 = vadd.f32 %v913, %v1017
    %1034 = vrot.lane.b32.xlu0 %v970, 127
    %v1035 = vpop.permute.xlu0 %1034
    %1036 = vrot.lane.b32.xlu0 %v971, 127
    %v1037 = vpop.permute.xlu0 %1036
    %1038 = vrot.lane.b32.xlu0 %v972, 127
    %v1039 = vpop.permute.xlu0 %1038
    %1040 = vrot.lane.b32.xlu0 %v973, 127
    %v1041 = vpop.permute.xlu0 %1040
    %1042 = vrot.lane.b32.xlu0 %v974, 127
    %v1043 = vpop.permute.xlu0 %1042
    %1044 = vrot.lane.b32.xlu0 %v975, 127
    %v1045 = vpop.permute.xlu0 %1044
    %1046 = vrot.lane.b32.xlu0 %v976, 127
    %v1047 = vpop.permute.xlu0 %1046
    %1048 = vrot.lane.b32.xlu0 %v977, 127
    %v1049 = vpop.permute.xlu0 %1048
    %1058 = vrot.lane.b32.xlu0 %v970, 7
    %v1059 = vpop.permute.xlu0 %1058
    %1060 = vrot.lane.b32.xlu0 %v971, 7
    %v1061 = vpop.permute.xlu0 %1060
    %1062 = vrot.lane.b32.xlu0 %v972, 7
    %v1063 = vpop.permute.xlu0 %1062
    %1064 = vrot.lane.b32.xlu0 %v973, 7
    %v1065 = vpop.permute.xlu0 %1064
    %1066 = vrot.lane.b32.xlu0 %v974, 7
    %v1067 = vpop.permute.xlu0 %1066
    %1068 = vrot.lane.b32.xlu0 %v975, 7
    %v1069 = vpop.permute.xlu0 %1068
    %1070 = vrot.lane.b32.xlu0 %v976, 7
    %v1071 = vpop.permute.xlu0 %1070
    %1072 = vrot.lane.b32.xlu0 %v977, 7
    %v1073 = vpop.permute.xlu0 %1072
    %v1082 = vsel %vm745, %v1035, %v1059
    %v1083 = vsel %vm745, %v1037, %v1061
    %v1084 = vsel %vm745, %v1039, %v1063
    %v1085 = vsel %vm745, %v1041, %v1065
    %v1086 = vsel %vm745, %v1043, %v1067
    %v1087 = vsel %vm745, %v1045, %v1069
    %v1088 = vsel %vm745, %v1047, %v1071
    %v1089 = vsel %vm745, %v1049, %v1073
    %vm1090 = vcmp.ge.f32.partialorder %v1082, %v633
    %vm1091 = vcmp.ge.f32.partialorder %v1083, %v634
    %vm1092 = vcmp.ge.f32.partialorder %v1084, %v635
    %vm1093 = vcmp.ge.f32.partialorder %v1085, %v636
    %vm1094 = vcmp.ge.f32.partialorder %v1086, %v637
    %vm1095 = vcmp.ge.f32.partialorder %v1087, %v638
    %vm1096 = vcmp.ge.f32.partialorder %v1088, %v639
    %vm1097 = vcmp.ge.f32.partialorder %v1089, %v640
    %v1098 = vsel %vm1090, 1, 0
    %v1099 = vsel %vm1091, 1, 0
    %v1100 = vsel %vm1092, 1, 0
    %v1101 = vsel %vm1093, 1, 0
    %v1102 = vsel %vm1094, 1, 0
    %v1103 = vsel %vm1095, 1, 0
    %v1104 = vsel %vm1096, 1, 0
    %v1105 = vsel %vm1097, 1, 0
    %v1106 = vcvt.s32.f32 %v1098
    %v1107 = vcvt.s32.f32 %v1099
    %v1108 = vcvt.s32.f32 %v1100
    %v1109 = vcvt.s32.f32 %v1101
    %v1110 = vcvt.s32.f32 %v1102
    %v1111 = vcvt.s32.f32 %v1103
    %v1112 = vcvt.s32.f32 %v1104
    %v1113 = vcvt.s32.f32 %v1105
    %v1114 = vadd.f32 %v1002, %v1106
    %v1115 = vadd.f32 %v1003, %v1107
    %v1116 = vadd.f32 %v1004, %v1108
    %v1117 = vadd.f32 %v1005, %v1109
    %v1118 = vadd.f32 %v1006, %v1110
    %v1119 = vadd.f32 %v1007, %v1111
    %v1120 = vadd.f32 %v1008, %v1112
    %v1121 = vadd.f32 %v1009, %v1113
    %v1122 = vmul.f32 %v1106, %v1082
    %v1123 = vmul.f32 %v1107, %v1083
    %v1124 = vmul.f32 %v1108, %v1084
    %v1125 = vmul.f32 %v1109, %v1085
    %v1126 = vmul.f32 %v1110, %v1086
    %v1127 = vmul.f32 %v1111, %v1087
    %v1128 = vmul.f32 %v1112, %v1088
    %v1129 = vmul.f32 %v1113, %v1089
    %v1130 = vadd.f32 %v1018, %v1122
    %v1131 = vadd.f32 %v1019, %v1123
    %v1132 = vadd.f32 %v1020, %v1124
    %v1133 = vadd.f32 %v1021, %v1125
    %v1134 = vadd.f32 %v1022, %v1126
    %v1135 = vadd.f32 %v1023, %v1127
    %v1136 = vadd.f32 %v1024, %v1128
    %v1137 = vadd.f32 %v1025, %v1129
    %1146 = vrot.lane.b32.xlu0 %v1082, 127
    %v1147 = vpop.permute.xlu0 %1146
    %1148 = vrot.lane.b32.xlu0 %v1083, 127
    %v1149 = vpop.permute.xlu0 %1148
    %1150 = vrot.lane.b32.xlu0 %v1084, 127
    %v1151 = vpop.permute.xlu0 %1150
    %1152 = vrot.lane.b32.xlu0 %v1085, 127
    %v1153 = vpop.permute.xlu0 %1152
    %1154 = vrot.lane.b32.xlu0 %v1086, 127
    %v1155 = vpop.permute.xlu0 %1154
    %1156 = vrot.lane.b32.xlu0 %v1087, 127
    %v1157 = vpop.permute.xlu0 %1156
    %1158 = vrot.lane.b32.xlu0 %v1088, 127
    %v1159 = vpop.permute.xlu0 %1158
    %1160 = vrot.lane.b32.xlu0 %v1089, 127
    %v1161 = vpop.permute.xlu0 %1160
    %1170 = vrot.lane.b32.xlu0 %v1082, 7
    %v1171 = vpop.permute.xlu0 %1170
    %1172 = vrot.lane.b32.xlu0 %v1083, 7
    %v1173 = vpop.permute.xlu0 %1172
    %1174 = vrot.lane.b32.xlu0 %v1084, 7
    %v1175 = vpop.permute.xlu0 %1174
    %1176 = vrot.lane.b32.xlu0 %v1085, 7
    %v1177 = vpop.permute.xlu0 %1176
    %1178 = vrot.lane.b32.xlu0 %v1086, 7
    %v1179 = vpop.permute.xlu0 %1178
    %1180 = vrot.lane.b32.xlu0 %v1087, 7
    %v1181 = vpop.permute.xlu0 %1180
    %1182 = vrot.lane.b32.xlu0 %v1088, 7
    %v1183 = vpop.permute.xlu0 %1182
    %1184 = vrot.lane.b32.xlu0 %v1089, 7
    %v1185 = vpop.permute.xlu0 %1184
    %v1194 = vsel %vm745, %v1147, %v1171
    %v1195 = vsel %vm745, %v1149, %v1173
    %v1196 = vsel %vm745, %v1151, %v1175
    %v1197 = vsel %vm745, %v1153, %v1177
    %v1198 = vsel %vm745, %v1155, %v1179
    %v1199 = vsel %vm745, %v1157, %v1181
    %v1200 = vsel %vm745, %v1159, %v1183
    %v1201 = vsel %vm745, %v1161, %v1185
    %vm1202 = vcmp.ge.f32.partialorder %v1194, %v633
    %vm1203 = vcmp.ge.f32.partialorder %v1195, %v634
    %vm1204 = vcmp.ge.f32.partialorder %v1196, %v635
    %vm1205 = vcmp.ge.f32.partialorder %v1197, %v636
    %vm1206 = vcmp.ge.f32.partialorder %v1198, %v637
    %vm1207 = vcmp.ge.f32.partialorder %v1199, %v638
    %vm1208 = vcmp.ge.f32.partialorder %v1200, %v639
    %vm1209 = vcmp.ge.f32.partialorder %v1201, %v640
    %v1210 = vsel %vm1202, 1, 0
    %v1211 = vsel %vm1203, 1, 0
    %v1212 = vsel %vm1204, 1, 0
    %v1213 = vsel %vm1205, 1, 0
    %v1214 = vsel %vm1206, 1, 0
    %v1215 = vsel %vm1207, 1, 0
    %v1216 = vsel %vm1208, 1, 0
    %v1217 = vsel %vm1209, 1, 0
    %v1218 = vcvt.s32.f32 %v1210
    %v1219 = vcvt.s32.f32 %v1211
    %v1220 = vcvt.s32.f32 %v1212
    %v1221 = vcvt.s32.f32 %v1213
    %v1222 = vcvt.s32.f32 %v1214
    %v1223 = vcvt.s32.f32 %v1215
    %v1224 = vcvt.s32.f32 %v1216
    %v1225 = vcvt.s32.f32 %v1217
    %v1226 = vadd.f32 %v1114, %v1218
    %v1227 = vadd.f32 %v1115, %v1219
    %v1228 = vadd.f32 %v1116, %v1220
    %v1229 = vadd.f32 %v1117, %v1221
    %v1230 = vadd.f32 %v1118, %v1222
    %v1231 = vadd.f32 %v1119, %v1223
    %v1232 = vadd.f32 %v1120, %v1224
    %v1233 = vadd.f32 %v1121, %v1225
    %v1234 = vmul.f32 %v1218, %v1194
    %v1235 = vmul.f32 %v1219, %v1195
    %v1236 = vmul.f32 %v1220, %v1196
    %v1237 = vmul.f32 %v1221, %v1197
    %v1238 = vmul.f32 %v1222, %v1198
    %v1239 = vmul.f32 %v1223, %v1199
    %v1240 = vmul.f32 %v1224, %v1200
    %v1241 = vmul.f32 %v1225, %v1201
    %v1242 = vadd.f32 %v1130, %v1234
    %v1243 = vadd.f32 %v1131, %v1235
    %v1244 = vadd.f32 %v1132, %v1236
    %v1245 = vadd.f32 %v1133, %v1237
    %v1246 = vadd.f32 %v1134, %v1238
    %v1247 = vadd.f32 %v1135, %v1239
    %v1248 = vadd.f32 %v1136, %v1240
    %v1249 = vadd.f32 %v1137, %v1241
    %1258 = vrot.lane.b32.xlu0 %v1194, 127
    %v1259 = vpop.permute.xlu0 %1258
    %1260 = vrot.lane.b32.xlu0 %v1195, 127
    %v1261 = vpop.permute.xlu0 %1260
    %1262 = vrot.lane.b32.xlu0 %v1196, 127
    %v1263 = vpop.permute.xlu0 %1262
    %1264 = vrot.lane.b32.xlu0 %v1197, 127
    %v1265 = vpop.permute.xlu0 %1264
    %1266 = vrot.lane.b32.xlu0 %v1198, 127
    %v1267 = vpop.permute.xlu0 %1266
    %1268 = vrot.lane.b32.xlu0 %v1199, 127
    %v1269 = vpop.permute.xlu0 %1268
    %1270 = vrot.lane.b32.xlu0 %v1200, 127
    %v1271 = vpop.permute.xlu0 %1270
    %1272 = vrot.lane.b32.xlu0 %v1201, 127
    %v1273 = vpop.permute.xlu0 %1272
    %1282 = vrot.lane.b32.xlu0 %v1194, 7
    %v1283 = vpop.permute.xlu0 %1282
    %1284 = vrot.lane.b32.xlu0 %v1195, 7
    %v1285 = vpop.permute.xlu0 %1284
    %1286 = vrot.lane.b32.xlu0 %v1196, 7
    %v1287 = vpop.permute.xlu0 %1286
    %1288 = vrot.lane.b32.xlu0 %v1197, 7
    %v1289 = vpop.permute.xlu0 %1288
    %1290 = vrot.lane.b32.xlu0 %v1198, 7
    %v1291 = vpop.permute.xlu0 %1290
    %1292 = vrot.lane.b32.xlu0 %v1199, 7
    %v1293 = vpop.permute.xlu0 %1292
    %1294 = vrot.lane.b32.xlu0 %v1200, 7
    %v1295 = vpop.permute.xlu0 %1294
    %1296 = vrot.lane.b32.xlu0 %v1201, 7
    %v1297 = vpop.permute.xlu0 %1296
    %v1306 = vsel %vm745, %v1259, %v1283
    %v1307 = vsel %vm745, %v1261, %v1285
    %v1308 = vsel %vm745, %v1263, %v1287
    %v1309 = vsel %vm745, %v1265, %v1289
    %v1310 = vsel %vm745, %v1267, %v1291
    %v1311 = vsel %vm745, %v1269, %v1293
    %v1312 = vsel %vm745, %v1271, %v1295
    %v1313 = vsel %vm745, %v1273, %v1297
    %vm1314 = vcmp.ge.f32.partialorder %v1306, %v633
    %vm1315 = vcmp.ge.f32.partialorder %v1307, %v634
    %vm1316 = vcmp.ge.f32.partialorder %v1308, %v635
    %vm1317 = vcmp.ge.f32.partialorder %v1309, %v636
    %vm1318 = vcmp.ge.f32.partialorder %v1310, %v637
    %vm1319 = vcmp.ge.f32.partialorder %v1311, %v638
    %vm1320 = vcmp.ge.f32.partialorder %v1312, %v639
    %vm1321 = vcmp.ge.f32.partialorder %v1313, %v640
    %v1322 = vsel %vm1314, 1, 0
    %v1323 = vsel %vm1315, 1, 0
    %v1324 = vsel %vm1316, 1, 0
    %v1325 = vsel %vm1317, 1, 0
    %v1326 = vsel %vm1318, 1, 0
    %v1327 = vsel %vm1319, 1, 0
    %v1328 = vsel %vm1320, 1, 0
    %v1329 = vsel %vm1321, 1, 0
    %v1330 = vcvt.s32.f32 %v1322
    %v1331 = vcvt.s32.f32 %v1323
    %v1332 = vcvt.s32.f32 %v1324
    %v1333 = vcvt.s32.f32 %v1325
    %v1334 = vcvt.s32.f32 %v1326
    %v1335 = vcvt.s32.f32 %v1327
    %v1336 = vcvt.s32.f32 %v1328
    %v1337 = vcvt.s32.f32 %v1329
    %v1338 = vadd.f32 %v1226, %v1330
    %v1339 = vadd.f32 %v1227, %v1331
    %v1340 = vadd.f32 %v1228, %v1332
    %v1341 = vadd.f32 %v1229, %v1333
    %v1342 = vadd.f32 %v1230, %v1334
    %v1343 = vadd.f32 %v1231, %v1335
    %v1344 = vadd.f32 %v1232, %v1336
    %v1345 = vadd.f32 %v1233, %v1337
    %v1346 = vmul.f32 %v1330, %v1306
    %v1347 = vmul.f32 %v1331, %v1307
    %v1348 = vmul.f32 %v1332, %v1308
    %v1349 = vmul.f32 %v1333, %v1309
    %v1350 = vmul.f32 %v1334, %v1310
    %v1351 = vmul.f32 %v1335, %v1311
    %v1352 = vmul.f32 %v1336, %v1312
    %v1353 = vmul.f32 %v1337, %v1313
    %v1354 = vadd.f32 %v1242, %v1346
    %v1355 = vadd.f32 %v1243, %v1347
    %v1356 = vadd.f32 %v1244, %v1348
    %v1357 = vadd.f32 %v1245, %v1349
    %v1358 = vadd.f32 %v1246, %v1350
    %v1359 = vadd.f32 %v1247, %v1351
    %v1360 = vadd.f32 %v1248, %v1352
    %v1361 = vadd.f32 %v1249, %v1353
    %1370 = vrot.lane.b32.xlu0 %v1306, 127
    %v1371 = vpop.permute.xlu0 %1370
    %1372 = vrot.lane.b32.xlu0 %v1307, 127
    %v1373 = vpop.permute.xlu0 %1372
    %1374 = vrot.lane.b32.xlu0 %v1308, 127
    %v1375 = vpop.permute.xlu0 %1374
    %1376 = vrot.lane.b32.xlu0 %v1309, 127
    %v1377 = vpop.permute.xlu0 %1376
    %1378 = vrot.lane.b32.xlu0 %v1310, 127
    %v1379 = vpop.permute.xlu0 %1378
    %1380 = vrot.lane.b32.xlu0 %v1311, 127
    %v1381 = vpop.permute.xlu0 %1380
    %1382 = vrot.lane.b32.xlu0 %v1312, 127
    %v1383 = vpop.permute.xlu0 %1382
    %1384 = vrot.lane.b32.xlu0 %v1313, 127
    %v1385 = vpop.permute.xlu0 %1384
    %1394 = vrot.lane.b32.xlu0 %v1306, 7
    %v1395 = vpop.permute.xlu0 %1394
    %1396 = vrot.lane.b32.xlu0 %v1307, 7
    %v1397 = vpop.permute.xlu0 %1396
    %1398 = vrot.lane.b32.xlu0 %v1308, 7
    %v1399 = vpop.permute.xlu0 %1398
    %1400 = vrot.lane.b32.xlu0 %v1309, 7
    %v1401 = vpop.permute.xlu0 %1400
    %1402 = vrot.lane.b32.xlu0 %v1310, 7
    %v1403 = vpop.permute.xlu0 %1402
    %1404 = vrot.lane.b32.xlu0 %v1311, 7
    %v1405 = vpop.permute.xlu0 %1404
    %1406 = vrot.lane.b32.xlu0 %v1312, 7
    %v1407 = vpop.permute.xlu0 %1406
    %1408 = vrot.lane.b32.xlu0 %v1313, 7
    %v1409 = vpop.permute.xlu0 %1408
    %v1418 = vsel %vm745, %v1371, %v1395
    %v1419 = vsel %vm745, %v1373, %v1397
    %v1420 = vsel %vm745, %v1375, %v1399
    %v1421 = vsel %vm745, %v1377, %v1401
    %v1422 = vsel %vm745, %v1379, %v1403
    %v1423 = vsel %vm745, %v1381, %v1405
    %v1424 = vsel %vm745, %v1383, %v1407
    %v1425 = vsel %vm745, %v1385, %v1409
    %vm1426 = vcmp.ge.f32.partialorder %v1418, %v633
    %vm1427 = vcmp.ge.f32.partialorder %v1419, %v634
    %vm1428 = vcmp.ge.f32.partialorder %v1420, %v635
    %vm1429 = vcmp.ge.f32.partialorder %v1421, %v636
    %vm1430 = vcmp.ge.f32.partialorder %v1422, %v637
    %vm1431 = vcmp.ge.f32.partialorder %v1423, %v638
    %vm1432 = vcmp.ge.f32.partialorder %v1424, %v639
    %vm1433 = vcmp.ge.f32.partialorder %v1425, %v640
    %v1434 = vsel %vm1426, 1, 0
    %v1435 = vsel %vm1427, 1, 0
    %v1436 = vsel %vm1428, 1, 0
    %v1437 = vsel %vm1429, 1, 0
    %v1438 = vsel %vm1430, 1, 0
    %v1439 = vsel %vm1431, 1, 0
    %v1440 = vsel %vm1432, 1, 0
    %v1441 = vsel %vm1433, 1, 0
    %v1442 = vcvt.s32.f32 %v1434
    %v1443 = vcvt.s32.f32 %v1435
    %v1444 = vcvt.s32.f32 %v1436
    %v1445 = vcvt.s32.f32 %v1437
    %v1446 = vcvt.s32.f32 %v1438
    %v1447 = vcvt.s32.f32 %v1439
    %v1448 = vcvt.s32.f32 %v1440
    %v1449 = vcvt.s32.f32 %v1441
    %v1450 = vadd.f32 %v1338, %v1442
    %v1451 = vadd.f32 %v1339, %v1443
    %v1452 = vadd.f32 %v1340, %v1444
    %v1453 = vadd.f32 %v1341, %v1445
    %v1454 = vadd.f32 %v1342, %v1446
    %v1455 = vadd.f32 %v1343, %v1447
    %v1456 = vadd.f32 %v1344, %v1448
    %v1457 = vadd.f32 %v1345, %v1449
    %v1458 = vmul.f32 %v1442, %v1418
    %v1459 = vmul.f32 %v1443, %v1419
    %v1460 = vmul.f32 %v1444, %v1420
    %v1461 = vmul.f32 %v1445, %v1421
    %v1462 = vmul.f32 %v1446, %v1422
    %v1463 = vmul.f32 %v1447, %v1423
    %v1464 = vmul.f32 %v1448, %v1424
    %v1465 = vmul.f32 %v1449, %v1425
    %v1466 = vadd.f32 %v1354, %v1458
    %v1467 = vadd.f32 %v1355, %v1459
    %v1468 = vadd.f32 %v1356, %v1460
    %v1469 = vadd.f32 %v1357, %v1461
    %v1470 = vadd.f32 %v1358, %v1462
    %v1471 = vadd.f32 %v1359, %v1463
    %v1472 = vadd.f32 %v1360, %v1464
    %v1473 = vadd.f32 %v1361, %v1465
    %v1474 = vmul.f32 %v1450, %v633
    %v1475 = vmul.f32 %v1451, %v634
    %v1476 = vmul.f32 %v1452, %v635
    %v1477 = vmul.f32 %v1453, %v636
    %v1478 = vmul.f32 %v1454, %v637
    %v1479 = vmul.f32 %v1455, %v638
    %v1480 = vmul.f32 %v1456, %v639
    %v1481 = vmul.f32 %v1457, %v640
    %v1482 = vadd.f32 %v1474, 1.0
    %v1483 = vadd.f32 %v1475, 1.0
    %v1484 = vadd.f32 %v1476, 1.0
    %v1485 = vadd.f32 %v1477, 1.0
    %v1486 = vadd.f32 %v1478, 1.0
    %v1487 = vadd.f32 %v1479, 1.0
    %v1488 = vadd.f32 %v1480, 1.0
    %v1489 = vadd.f32 %v1481, 1.0
    %vm1490 = vcmp.gt.f32.partialorder %v1482, %v1466
    %vm1491 = vcmp.gt.f32.partialorder %v1483, %v1467
    %vm1492 = vcmp.gt.f32.partialorder %v1484, %v1468
    %vm1493 = vcmp.gt.f32.partialorder %v1485, %v1469
    %vm1494 = vcmp.gt.f32.partialorder %v1486, %v1470
    %vm1495 = vcmp.gt.f32.partialorder %v1487, %v1471
    %vm1496 = vcmp.gt.f32.partialorder %v1488, %v1472
    %vm1497 = vcmp.gt.f32.partialorder %v1489, %v1473
    %v1498 = vsel %vm1490, 1, 0
    %v1499 = vsel %vm1491, 1, 0
    %v1500 = vsel %vm1492, 1, 0
    %v1501 = vsel %vm1493, 1, 0
    %v1502 = vsel %vm1494, 1, 0
    %v1503 = vsel %vm1495, 1, 0
    %v1504 = vsel %vm1496, 1, 0
    %v1505 = vsel %vm1497, 1, 0
    %v1506 = vcvt.s32.f32 %v1498
    %v1507 = vcvt.s32.f32 %v1499
    %v1508 = vcvt.s32.f32 %v1500
    %v1509 = vcvt.s32.f32 %v1501
    %v1510 = vcvt.s32.f32 %v1502
    %v1511 = vcvt.s32.f32 %v1503
    %v1512 = vcvt.s32.f32 %v1504
    %v1513 = vcvt.s32.f32 %v1505
    %v1514 = vsel %vm238, %v1506, 0.0
    %1515 = vadd.xlane.f32.xlu0 %v1514
    %v1516 = vpop.xlane.xlu0 %1515
    %v1517 = vsel %vm238, %v1507, 0.0
    %1518 = vadd.xlane.f32.xlu0 %v1517
    %v1519 = vpop.xlane.xlu0 %1518
    %v1520 = vsel %vm238, %v1508, 0.0
    %1521 = vadd.xlane.f32.xlu0 %v1520
    %v1522 = vpop.xlane.xlu0 %1521
    %v1523 = vsel %vm238, %v1509, 0.0
    %1524 = vadd.xlane.f32.xlu0 %v1523
    %v1525 = vpop.xlane.xlu0 %1524
    %v1526 = vsel %vm238, %v1510, 0.0
    %1527 = vadd.xlane.f32.xlu0 %v1526
    %v1528 = vpop.xlane.xlu0 %1527
    %v1529 = vsel %vm238, %v1511, 0.0
    %1530 = vadd.xlane.f32.xlu0 %v1529
    %v1531 = vpop.xlane.xlu0 %1530
    %v1532 = vsel %vm238, %v1512, 0.0
    %1533 = vadd.xlane.f32.xlu0 %v1532
    %v1534 = vpop.xlane.xlu0 %1533
    %v1535 = vsel %vm238, %v1513, 0.0
    %1536 = vadd.xlane.f32.xlu0 %v1535
    %v1537 = vpop.xlane.xlu0 %1536
    %v1538 = vsel %vm1490, %v633, 0.0
    %v1539 = vsel %vm1491, %v634, 0.0
    %v1540 = vsel %vm1492, %v635, 0.0
    %v1541 = vsel %vm1493, %v636, 0.0
    %v1542 = vsel %vm1494, %v637, 0.0
    %v1543 = vsel %vm1495, %v638, 0.0
    %v1544 = vsel %vm1496, %v639, 0.0
    %v1545 = vsel %vm1497, %v640, 0.0
    %v1546 = vsel %vm238, %v1538, 0.0
    %1547 = vadd.xlane.f32.xlu0 %v1546
    %v1548 = vpop.xlane.xlu0 %1547
    %v1549 = vsel %vm238, %v1539, 0.0
    %1550 = vadd.xlane.f32.xlu0 %v1549
    %v1551 = vpop.xlane.xlu0 %1550
    %v1552 = vsel %vm238, %v1540, 0.0
    %1553 = vadd.xlane.f32.xlu0 %v1552
    %v1554 = vpop.xlane.xlu0 %1553
    %v1555 = vsel %vm238, %v1541, 0.0
    %1556 = vadd.xlane.f32.xlu0 %v1555
    %v1557 = vpop.xlane.xlu0 %1556
    %v1558 = vsel %vm238, %v1542, 0.0
    %1559 = vadd.xlane.f32.xlu0 %v1558
    %v1560 = vpop.xlane.xlu0 %1559
    %v1561 = vsel %vm238, %v1543, 0.0
    %1562 = vadd.xlane.f32.xlu0 %v1561
    %v1563 = vpop.xlane.xlu0 %1562
    %v1564 = vsel %vm238, %v1544, 0.0
    %1565 = vadd.xlane.f32.xlu0 %v1564
    %v1566 = vpop.xlane.xlu0 %1565
    %v1567 = vsel %vm238, %v1545, 0.0
    %1568 = vadd.xlane.f32.xlu0 %v1567
    %v1569 = vpop.xlane.xlu0 %1568
    %v1570 = vsub.f32 %v1548, 1.0
    %v1571 = vsub.f32 %v1551, 1.0
    %v1572 = vsub.f32 %v1554, 1.0
    %v1573 = vsub.f32 %v1557, 1.0
    %v1574 = vsub.f32 %v1560, 1.0
    %v1575 = vsub.f32 %v1563, 1.0
    %v1576 = vsub.f32 %v1566, 1.0
    %v1577 = vsub.f32 %v1569, 1.0
    %v1578 = vrcp.pop %v1516
    %v1579 = vmul.f32 %v1570, %v1578
    %v1580 = vrcp.pop %v1519
    %v1581 = vmul.f32 %v1571, %v1580
    %v1582 = vrcp.pop %v1522
    %v1583 = vmul.f32 %v1572, %v1582
    %v1584 = vrcp.pop %v1525
    %v1585 = vmul.f32 %v1573, %v1584
    %v1586 = vrcp.pop %v1528
    %v1587 = vmul.f32 %v1574, %v1586
    %v1588 = vrcp.pop %v1531
    %v1589 = vmul.f32 %v1575, %v1588
    %v1590 = vrcp.pop %v1534
    %v1591 = vmul.f32 %v1576, %v1590
    %v1592 = vrcp.pop %v1537
    %v1593 = vmul.f32 %v1577, %v1592
    %v1594 = vsub.f32 %v633, %v1579
    %v1595 = vsub.f32 %v634, %v1581
    %v1596 = vsub.f32 %v635, %v1583
    %v1597 = vsub.f32 %v636, %v1585
    %v1598 = vsub.f32 %v637, %v1587
    %v1599 = vsub.f32 %v638, %v1589
    %v1600 = vsub.f32 %v639, %v1591
    %v1601 = vsub.f32 %v640, %v1593
    %v1602 = vmax.f32 %v1594, 0.0
    %v1603 = vmax.f32 %v1595, 0.0
    %v1604 = vmax.f32 %v1596, 0.0
    %v1605 = vmax.f32 %v1597, 0.0
    %v1606 = vmax.f32 %v1598, 0.0
    %v1607 = vmax.f32 %v1599, 0.0
    %v1608 = vmax.f32 %v1600, 0.0
    %v1609 = vmax.f32 %v1601, 0.0
    %1610 = vst.msk [vmem:[#allocation8] sm:$0xff] %vm238, %v1602
    %1611 = vst.msk [vmem:[#allocation8 + $0x8] sm:$0xff] %vm238, %v1603
    %1612 = vst.msk [vmem:[#allocation8 + $0x10] sm:$0xff] %vm238, %v1604
    %1613 = vst.msk [vmem:[#allocation8 + $0x18] sm:$0xff] %vm238, %v1605
    %1614 = vst.msk [vmem:[#allocation8 + $0x20] sm:$0xff] %vm238, %v1606
    %1615 = vst.msk [vmem:[#allocation8 + $0x28] sm:$0xff] %vm238, %v1607
    %1616 = vst.msk [vmem:[#allocation8 + $0x30] sm:$0xff] %vm238, %v1608
    %1617 = vst.msk [vmem:[#allocation8 + $0x38] sm:$0xff] %vm238, %v1609
    %v1618 = vpack.c.bf16 %v1602, %v1602
    %v1619 = vpack.c.bf16 %v1603, %v1603
    %v1620 = vpack.c.bf16 %v1604, %v1604
    %v1621 = vpack.c.bf16 %v1605, %v1605
    %v1622 = vpack.c.bf16 %v1606, %v1606
    %v1623 = vpack.c.bf16 %v1607, %v1607
    %v1624 = vpack.c.bf16 %v1608, %v1608
    %v1625 = vpack.c.bf16 %v1609, %v1609
    %1626 = vrot.lane.b32.xlu0 %v222, 64
    %v1627 = vpop.permute.xlu0 %1626
    %v1629 = vsel %vm238, %v1618, 0
    %vm1631 = vcmask 1043456
    %v1633 = vsel %vm1631, %v1627, 0
    %1635 = vmatprep.subr.bf16.mxu0 0
    %1636 = vmatpush1.bf16.msra.mxu0 0
    %1637 = vmatprep.subr.bf16.mxu0 0
    %1638 = vmatpush1.bf16.msra.mxu0 0
    %1639 = vmatprep.subr.bf16.mxu0 0
    %1640 = vmatpush1.bf16.msra.mxu0 0
    %1641 = vmatprep.subr.bf16.mxu0 0
    %1642 = vmatpush1.bf16.msra.mxu0 0
    %1643 = vmatprep.subr.bf16.mxu0 0
    %1644 = vmatpush1.bf16.msra.mxu0 0
    %1645 = vmatprep.subr.bf16.mxu0 0
    %1646 = vmatpush1.bf16.msra.mxu0 0
    %1647 = vmatprep.subr.bf16.mxu0 0
    %1648 = vmatpush1.bf16.msra.mxu0 0
    %1649 = vmatprep.subr.bf16.mxu0 0
    %1650 = vmatpush1.bf16.msra.mxu0 %v1633
    %1651 = vmatprep.subr.bf16.mxu0 0
    %1652 = vmatpush2.bf16.msra.mxu0 0
    %1653 = vmatprep.subr.bf16.mxu0 0
    %1654 = vmatpush2.bf16.msra.mxu0 0
    %1655 = vmatprep.subr.bf16.mxu0 0
    %1656 = vmatpush2.bf16.msra.mxu0 0
    %1657 = vmatprep.subr.bf16.mxu0 0
    %1658 = vmatpush2.bf16.msra.mxu0 0
    %1659 = vmatprep.subr.bf16.mxu0 0
    %1660 = vmatpush2.bf16.msra.mxu0 0
    %1661 = vmatprep.subr.bf16.mxu0 0
    %1662 = vmatpush2.bf16.msra.mxu0 0
    %1663 = vmatprep.subr.bf16.mxu0 0
    %1664 = vmatpush2.bf16.msra.mxu0 0
    %1665 = vmatprep.subr.bf16.mxu0 0
    %1666 = vmatpush2.bf16.msra.mxu0 0
    %1667 = vmatprep.mubr.bf16.mxu0 0
    %1668 = vmatmul.mubr.bf16.gmra.mxu0 %v1629
    %v1669 = vpop.f32.mrf.mxu0
    %v1670 = vadd.f32 0.0, %v1669
    %v1671 = vpop.f32.mrf.mxu0
    %v1672 = vpop.f32.mrf.mxu0
    %v1673 = vpop.f32.mrf.mxu0
    %1674 = vdwg.mxu0
    %1675 = vrot.lane.b32.xlu0 %v286, 64
    %v1676 = vpop.permute.xlu0 %1675
    %v1678 = vsel %vm238, %v1619, 0
    %v1681 = vsel %vm1631, %v1676, 0
    %1683 = vmatprep.subr.bf16.mxu0 0
    %1684 = vmatpush1.bf16.msra.mxu0 0
    %1685 = vmatprep.subr.bf16.mxu0 0
    %1686 = vmatpush1.bf16.msra.mxu0 0
    %1687 = vmatprep.subr.bf16.mxu0 0
    %1688 = vmatpush1.bf16.msra.mxu0 0
    %1689 = vmatprep.subr.bf16.mxu0 0
    %1690 = vmatpush1.bf16.msra.mxu0 0
    %1691 = vmatprep.subr.bf16.mxu0 0
    %1692 = vmatpush1.bf16.msra.mxu0 0
    %1693 = vmatprep.subr.bf16.mxu0 0
    %1694 = vmatpush1.bf16.msra.mxu0 0
    %1695 = vmatprep.subr.bf16.mxu0 0
    %1696 = vmatpush1.bf16.msra.mxu0 0
    %1697 = vmatprep.subr.bf16.mxu0 0
    %1698 = vmatpush1.bf16.msra.mxu0 %v1681
    %1699 = vmatprep.subr.bf16.mxu0 0
    %1700 = vmatpush2.bf16.msra.mxu0 0
    %1701 = vmatprep.subr.bf16.mxu0 0
    %1702 = vmatpush2.bf16.msra.mxu0 0
    %1703 = vmatprep.subr.bf16.mxu0 0
    %1704 = vmatpush2.bf16.msra.mxu0 0
    %1705 = vmatprep.subr.bf16.mxu0 0
    %1706 = vmatpush2.bf16.msra.mxu0 0
    %1707 = vmatprep.subr.bf16.mxu0 0
    %1708 = vmatpush2.bf16.msra.mxu0 0
    %1709 = vmatprep.subr.bf16.mxu0 0
    %1710 = vmatpush2.bf16.msra.mxu0 0
    %1711 = vmatprep.subr.bf16.mxu0 0
    %1712 = vmatpush2.bf16.msra.mxu0 0
    %1713 = vmatprep.subr.bf16.mxu0 0
    %1714 = vmatpush2.bf16.msra.mxu0 0
    %1715 = vmatprep.mubr.bf16.mxu0 0
    %1716 = vmatmul.mubr.bf16.gmra.mxu0 %v1678
    %v1717 = vpop.f32.mrf.mxu0
    %v1718 = vadd.f32 0.0, %v1717
    %v1719 = vpop.f32.mrf.mxu0
    %v1720 = vpop.f32.mrf.mxu0
    %v1721 = vpop.f32.mrf.mxu0
    %1722 = vdwg.mxu0
    %1723 = vrot.lane.b32.xlu0 %v336, 64
    %v1724 = vpop.permute.xlu0 %1723
    %v1726 = vsel %vm238, %v1620, 0
    %v1729 = vsel %vm1631, %v1724, 0
    %1731 = vmatprep.subr.bf16.mxu0 0
    %1732 = vmatpush1.bf16.msra.mxu0 0
    %1733 = vmatprep.subr.bf16.mxu0 0
    %1734 = vmatpush1.bf16.msra.mxu0 0
    %1735 = vmatprep.subr.bf16.mxu0 0
    %1736 = vmatpush1.bf16.msra.mxu0 0
    %1737 = vmatprep.subr.bf16.mxu0 0
    %1738 = vmatpush1.bf16.msra.mxu0 0
    %1739 = vmatprep.subr.bf16.mxu0 0
    %1740 = vmatpush1.bf16.msra.mxu0 0
    %1741 = vmatprep.subr.bf16.mxu0 0
    %1742 = vmatpush1.bf16.msra.mxu0 0
    %1743 = vmatprep.subr.bf16.mxu0 0
    %1744 = vmatpush1.bf16.msra.mxu0 0
    %1745 = vmatprep.subr.bf16.mxu0 0
    %1746 = vmatpush1.bf16.msra.mxu0 %v1729
    %1747 = vmatprep.subr.bf16.mxu0 0
    %1748 = vmatpush2.bf16.msra.mxu0 0
    %1749 = vmatprep.subr.bf16.mxu0 0
    %1750 = vmatpush2.bf16.msra.mxu0 0
    %1751 = vmatprep.subr.bf16.mxu0 0
    %1752 = vmatpush2.bf16.msra.mxu0 0
    %1753 = vmatprep.subr.bf16.mxu0 0
    %1754 = vmatpush2.bf16.msra.mxu0 0
    %1755 = vmatprep.subr.bf16.mxu0 0
    %1756 = vmatpush2.bf16.msra.mxu0 0
    %1757 = vmatprep.subr.bf16.mxu0 0
    %1758 = vmatpush2.bf16.msra.mxu0 0
    %1759 = vmatprep.subr.bf16.mxu0 0
    %1760 = vmatpush2.bf16.msra.mxu0 0
    %1761 = vmatprep.subr.bf16.mxu0 0
    %1762 = vmatpush2.bf16.msra.mxu0 0
    %1763 = vmatprep.mubr.bf16.mxu0 0
    %1764 = vmatmul.mubr.bf16.gmra.mxu0 %v1726
    %v1765 = vpop.f32.mrf.mxu0
    %v1766 = vadd.f32 0.0, %v1765
    %v1767 = vpop.f32.mrf.mxu0
    %v1768 = vpop.f32.mrf.mxu0
    %v1769 = vpop.f32.mrf.mxu0
    %1770 = vdwg.mxu0
    %1771 = vrot.lane.b32.xlu0 %v386, 64
    %v1772 = vpop.permute.xlu0 %1771
    %v1774 = vsel %vm238, %v1621, 0
    %v1777 = vsel %vm1631, %v1772, 0
    %1779 = vmatprep.subr.bf16.mxu0 0
    %1780 = vmatpush1.bf16.msra.mxu0 0
    %1781 = vmatprep.subr.bf16.mxu0 0
    %1782 = vmatpush1.bf16.msra.mxu0 0
    %1783 = vmatprep.subr.bf16.mxu0 0
    %1784 = vmatpush1.bf16.msra.mxu0 0
    %1785 = vmatprep.subr.bf16.mxu0 0
    %1786 = vmatpush1.bf16.msra.mxu0 0
    %1787 = vmatprep.subr.bf16.mxu0 0
    %1788 = vmatpush1.bf16.msra.mxu0 0
    %1789 = vmatprep.subr.bf16.mxu0 0
    %1790 = vmatpush1.bf16.msra.mxu0 0
    %1791 = vmatprep.subr.bf16.mxu0 0
    %1792 = vmatpush1.bf16.msra.mxu0 0
    %1793 = vmatprep.subr.bf16.mxu0 0
    %1794 = vmatpush1.bf16.msra.mxu0 %v1777
    %1795 = vmatprep.subr.bf16.mxu0 0
    %1796 = vmatpush2.bf16.msra.mxu0 0
    %1797 = vmatprep.subr.bf16.mxu0 0
    %1798 = vmatpush2.bf16.msra.mxu0 0
    %1799 = vmatprep.subr.bf16.mxu0 0
    %1800 = vmatpush2.bf16.msra.mxu0 0
    %1801 = vmatprep.subr.bf16.mxu0 0
    %1802 = vmatpush2.bf16.msra.mxu0 0
    %1803 = vmatprep.subr.bf16.mxu0 0
    %1804 = vmatpush2.bf16.msra.mxu0 0
    %1805 = vmatprep.subr.bf16.mxu0 0
    %1806 = vmatpush2.bf16.msra.mxu0 0
    %1807 = vmatprep.subr.bf16.mxu0 0
    %1808 = vmatpush2.bf16.msra.mxu0 0
    %1809 = vmatprep.subr.bf16.mxu0 0
    %1810 = vmatpush2.bf16.msra.mxu0 0
    %1811 = vmatprep.mubr.bf16.mxu0 0
    %1812 = vmatmul.mubr.bf16.gmra.mxu0 %v1774
    %v1813 = vpop.f32.mrf.mxu0
    %v1814 = vadd.f32 0.0, %v1813
    %v1815 = vpop.f32.mrf.mxu0
    %v1816 = vpop.f32.mrf.mxu0
    %v1817 = vpop.f32.mrf.mxu0
    %1818 = vdwg.mxu0
    %1819 = vrot.lane.b32.xlu0 %v223, 64
    %v1820 = vpop.permute.xlu0 %1819
    %v1822 = vsel %vm238, %v1622, 0
    %v1825 = vsel %vm1631, %v1820, 0
    %1827 = vmatprep.subr.bf16.mxu0 0
    %1828 = vmatpush1.bf16.msra.mxu0 0
    %1829 = vmatprep.subr.bf16.mxu0 0
    %1830 = vmatpush1.bf16.msra.mxu0 0
    %1831 = vmatprep.subr.bf16.mxu0 0
    %1832 = vmatpush1.bf16.msra.mxu0 0
    %1833 = vmatprep.subr.bf16.mxu0 0
    %1834 = vmatpush1.bf16.msra.mxu0 0
    %1835 = vmatprep.subr.bf16.mxu0 0
    %1836 = vmatpush1.bf16.msra.mxu0 0
    %1837 = vmatprep.subr.bf16.mxu0 0
    %1838 = vmatpush1.bf16.msra.mxu0 0
    %1839 = vmatprep.subr.bf16.mxu0 0
    %1840 = vmatpush1.bf16.msra.mxu0 0
    %1841 = vmatprep.subr.bf16.mxu0 0
    %1842 = vmatpush1.bf16.msra.mxu0 %v1825
    %1843 = vmatprep.subr.bf16.mxu0 0
    %1844 = vmatpush2.bf16.msra.mxu0 0
    %1845 = vmatprep.subr.bf16.mxu0 0
    %1846 = vmatpush2.bf16.msra.mxu0 0
    %1847 = vmatprep.subr.bf16.mxu0 0
    %1848 = vmatpush2.bf16.msra.mxu0 0
    %1849 = vmatprep.subr.bf16.mxu0 0
    %1850 = vmatpush2.bf16.msra.mxu0 0
    %1851 = vmatprep.subr.bf16.mxu0 0
    %1852 = vmatpush2.bf16.msra.mxu0 0
    %1853 = vmatprep.subr.bf16.mxu0 0
    %1854 = vmatpush2.bf16.msra.mxu0 0
    %1855 = vmatprep.subr.bf16.mxu0 0
    %1856 = vmatpush2.bf16.msra.mxu0 0
    %1857 = vmatprep.subr.bf16.mxu0 0
    %1858 = vmatpush2.bf16.msra.mxu0 0
    %1859 = vmatprep.mubr.bf16.mxu0 0
    %1860 = vmatmul.mubr.bf16.gmra.mxu0 %v1822
    %v1861 = vpop.f32.mrf.mxu0
    %v1862 = vadd.f32 0.0, %v1861
    %v1863 = vpop.f32.mrf.mxu0
    %v1864 = vpop.f32.mrf.mxu0
    %v1865 = vpop.f32.mrf.mxu0
    %1866 = vdwg.mxu0
    %1867 = vrot.lane.b32.xlu0 %v484, 64
    %v1868 = vpop.permute.xlu0 %1867
    %v1870 = vsel %vm238, %v1623, 0
    %v1873 = vsel %vm1631, %v1868, 0
    %1875 = vmatprep.subr.bf16.mxu0 0
    %1876 = vmatpush1.bf16.msra.mxu0 0
    %1877 = vmatprep.subr.bf16.mxu0 0
    %1878 = vmatpush1.bf16.msra.mxu0 0
    %1879 = vmatprep.subr.bf16.mxu0 0
    %1880 = vmatpush1.bf16.msra.mxu0 0
    %1881 = vmatprep.subr.bf16.mxu0 0
    %1882 = vmatpush1.bf16.msra.mxu0 0
    %1883 = vmatprep.subr.bf16.mxu0 0
    %1884 = vmatpush1.bf16.msra.mxu0 0
    %1885 = vmatprep.subr.bf16.mxu0 0
    %1886 = vmatpush1.bf16.msra.mxu0 0
    %1887 = vmatprep.subr.bf16.mxu0 0
    %1888 = vmatpush1.bf16.msra.mxu0 0
    %1889 = vmatprep.subr.bf16.mxu0 0
    %1890 = vmatpush1.bf16.msra.mxu0 %v1873
    %1891 = vmatprep.subr.bf16.mxu0 0
    %1892 = vmatpush2.bf16.msra.mxu0 0
    %1893 = vmatprep.subr.bf16.mxu0 0
    %1894 = vmatpush2.bf16.msra.mxu0 0
    %1895 = vmatprep.subr.bf16.mxu0 0
    %1896 = vmatpush2.bf16.msra.mxu0 0
    %1897 = vmatprep.subr.bf16.mxu0 0
    %1898 = vmatpush2.bf16.msra.mxu0 0
    %1899 = vmatprep.subr.bf16.mxu0 0
    %1900 = vmatpush2.bf16.msra.mxu0 0
    %1901 = vmatprep.subr.bf16.mxu0 0
    %1902 = vmatpush2.bf16.msra.mxu0 0
    %1903 = vmatprep.subr.bf16.mxu0 0
    %1904 = vmatpush2.bf16.msra.mxu0 0
    %1905 = vmatprep.subr.bf16.mxu0 0
    %1906 = vmatpush2.bf16.msra.mxu0 0
    %1907 = vmatprep.mubr.bf16.mxu0 0
    %1908 = vmatmul.mubr.bf16.gmra.mxu0 %v1870
    %v1909 = vpop.f32.mrf.mxu0
    %v1910 = vadd.f32 0.0, %v1909
    %v1911 = vpop.f32.mrf.mxu0
    %v1912 = vpop.f32.mrf.mxu0
    %v1913 = vpop.f32.mrf.mxu0
    %1914 = vdwg.mxu0
    %1915 = vrot.lane.b32.xlu0 %v534, 64
    %v1916 = vpop.permute.xlu0 %1915
    %v1918 = vsel %vm238, %v1624, 0
    %v1921 = vsel %vm1631, %v1916, 0
    %1923 = vmatprep.subr.bf16.mxu0 0
    %1924 = vmatpush1.bf16.msra.mxu0 0
    %1925 = vmatprep.subr.bf16.mxu0 0
    %1926 = vmatpush1.bf16.msra.mxu0 0
    %1927 = vmatprep.subr.bf16.mxu0 0
    %1928 = vmatpush1.bf16.msra.mxu0 0
    %1929 = vmatprep.subr.bf16.mxu0 0
    %1930 = vmatpush1.bf16.msra.mxu0 0
    %1931 = vmatprep.subr.bf16.mxu0 0
    %1932 = vmatpush1.bf16.msra.mxu0 0
    %1933 = vmatprep.subr.bf16.mxu0 0
    %1934 = vmatpush1.bf16.msra.mxu0 0
    %1935 = vmatprep.subr.bf16.mxu0 0
    %1936 = vmatpush1.bf16.msra.mxu0 0
    %1937 = vmatprep.subr.bf16.mxu0 0
    %1938 = vmatpush1.bf16.msra.mxu0 %v1921
    %1939 = vmatprep.subr.bf16.mxu0 0
    %1940 = vmatpush2.bf16.msra.mxu0 0
    %1941 = vmatprep.subr.bf16.mxu0 0
    %1942 = vmatpush2.bf16.msra.mxu0 0
    %1943 = vmatprep.subr.bf16.mxu0 0
    %1944 = vmatpush2.bf16.msra.mxu0 0
    %1945 = vmatprep.subr.bf16.mxu0 0
    %1946 = vmatpush2.bf16.msra.mxu0 0
    %1947 = vmatprep.subr.bf16.mxu0 0
    %1948 = vmatpush2.bf16.msra.mxu0 0
    %1949 = vmatprep.subr.bf16.mxu0 0
    %1950 = vmatpush2.bf16.msra.mxu0 0
    %1951 = vmatprep.subr.bf16.mxu0 0
    %1952 = vmatpush2.bf16.msra.mxu0 0
    %1953 = vmatprep.subr.bf16.mxu0 0
    %1954 = vmatpush2.bf16.msra.mxu0 0
    %1955 = vmatprep.mubr.bf16.mxu0 0
    %1956 = vmatmul.mubr.bf16.gmra.mxu0 %v1918
    %v1957 = vpop.f32.mrf.mxu0
    %v1958 = vadd.f32 0.0, %v1957
    %v1959 = vpop.f32.mrf.mxu0
    %v1960 = vpop.f32.mrf.mxu0
    %v1961 = vpop.f32.mrf.mxu0
    %1962 = vdwg.mxu0
    %1963 = vrot.lane.b32.xlu0 %v584, 64
    %v1964 = vpop.permute.xlu0 %1963
    %v1966 = vsel %vm238, %v1625, 0
    %v1969 = vsel %vm1631, %v1964, 0
    %1971 = vmatprep.subr.bf16.mxu0 0
    %1972 = vmatpush1.bf16.msra.mxu0 0
    %1973 = vmatprep.subr.bf16.mxu0 0
    %1974 = vmatpush1.bf16.msra.mxu0 0
    %1975 = vmatprep.subr.bf16.mxu0 0
    %1976 = vmatpush1.bf16.msra.mxu0 0
    %1977 = vmatprep.subr.bf16.mxu0 0
    %1978 = vmatpush1.bf16.msra.mxu0 0
    %1979 = vmatprep.subr.bf16.mxu0 0
    %1980 = vmatpush1.bf16.msra.mxu0 0
    %1981 = vmatprep.subr.bf16.mxu0 0
    %1982 = vmatpush1.bf16.msra.mxu0 0
    %1983 = vmatprep.subr.bf16.mxu0 0
    %1984 = vmatpush1.bf16.msra.mxu0 0
    %1985 = vmatprep.subr.bf16.mxu0 0
    %1986 = vmatpush1.bf16.msra.mxu0 %v1969
    %1987 = vmatprep.subr.bf16.mxu0 0
    %1988 = vmatpush2.bf16.msra.mxu0 0
    %1989 = vmatprep.subr.bf16.mxu0 0
    %1990 = vmatpush2.bf16.msra.mxu0 0
    %1991 = vmatprep.subr.bf16.mxu0 0
    %1992 = vmatpush2.bf16.msra.mxu0 0
    %1993 = vmatprep.subr.bf16.mxu0 0
    %1994 = vmatpush2.bf16.msra.mxu0 0
    %1995 = vmatprep.subr.bf16.mxu0 0
    %1996 = vmatpush2.bf16.msra.mxu0 0
    %1997 = vmatprep.subr.bf16.mxu0 0
    %1998 = vmatpush2.bf16.msra.mxu0 0
    %1999 = vmatprep.subr.bf16.mxu0 0
    %2000 = vmatpush2.bf16.msra.mxu0 0
    %2001 = vmatprep.subr.bf16.mxu0 0
    %2002 = vmatpush2.bf16.msra.mxu0 0
    %2003 = vmatprep.mubr.bf16.mxu0 0
    %2004 = vmatmul.mubr.bf16.gmra.mxu0 %v1966
    %v2005 = vpop.f32.mrf.mxu0
    %v2006 = vadd.f32 0.0, %v2005
    %v2007 = vpop.f32.mrf.mxu0
    %v2008 = vpop.f32.mrf.mxu0
    %v2009 = vpop.f32.mrf.mxu0
    %2010 = vdwg.mxu0
    %2013 = vrot.lane.b32.xlu0 %v1718, 8
    %v2014 = vpop.permute.xlu0 %2013
    %2015 = vrot.lane.b32.xlu0 %v1910, 8
    %v2016 = vpop.permute.xlu0 %2015
    %2021 = vrot.lane.b32.xlu0 %v1766, 16
    %v2022 = vpop.permute.xlu0 %2021
    %2023 = vrot.lane.b32.xlu0 %v1958, 16
    %v2024 = vpop.permute.xlu0 %2023
    %2029 = vrot.lane.b32.xlu0 %v1814, 24
    %v2030 = vpop.permute.xlu0 %2029
    %2031 = vrot.lane.b32.xlu0 %v2006, 24
    %v2032 = vpop.permute.xlu0 %2031
    %v2035 = vsel %vm238, %v1670, %v2014
    %v2036 = vsel %vm238, %v1862, %v2016
    %v2037 = vsel %vm101, %v2035, %v2022
    %v2038 = vsel %vm101, %v2036, %v2024
    %vm2039 = vcmask 195584
    %v2040 = vsel %vm2039, %v2037, %v2030
    %v2041 = vsel %vm2039, %v2038, %v2032
    %v2042 = vpack.c.bf16 %v2041, %v2040
    %v2043 = vld [vmem:[%s5] sm:$0xf]
    %v2044 = vld [vmem:[%s5 + $0x4] sm:$0xf]
    %v2045 = vld [vmem:[%s5 + $0x8] sm:$0xf]
    %v2046 = vld [vmem:[%s5 + $0xc] sm:$0xf]
    %v2047 = vld [vmem:[%s6] sm:$0x1]
    %v2049 = vlaneseq
    %v2050 = vshrl.u32 %v2049, 7
    %v2051 = vsub.s32 0, %v2050
    %v2052 = vrot.slane %v2047, %v2051
    %v2058 = vunpack.c.l.b16 %v2043
    %v2059 = vunpack.c.l.b16 %v2044
    %v2060 = vunpack.c.l.b16 %v2045
    %v2061 = vunpack.c.l.b16 %v2046
    %v2062 = vpack.c.b16 %v2059, %v2058
    %v2063 = vpack.c.b16 %v2061, %v2060
    %v2067 = vsel %vm173, %v2042, 0
    %2069 = vmatprep.subr.bf16.mxu0 0
    %2070 = vmatpush1.bf16.msra.mxu0 0
    %2071 = vmatprep.subr.bf16.mxu0 0
    %2072 = vmatpush1.bf16.msra.mxu0 0
    %2073 = vmatprep.subr.bf16.mxu0 0
    %2074 = vmatpush1.bf16.msra.mxu0 0
    %2075 = vmatprep.subr.bf16.mxu0 0
    %2076 = vmatpush1.bf16.msra.mxu0 0
    %2077 = vmatprep.subr.bf16.mxu0 0
    %2078 = vmatpush1.bf16.msra.mxu0 0
    %2079 = vmatprep.subr.bf16.mxu0 0
    %2080 = vmatpush1.bf16.msra.mxu0 0
    %2081 = vmatprep.subr.bf16.mxu0 0
    %2082 = vmatpush1.bf16.msra.mxu0 %v2063
    %2083 = vmatprep.subr.bf16.mxu0 0
    %2084 = vmatpush1.bf16.msra.mxu0 %v2062
    %2085 = vmatprep.subr.bf16.mxu0 0
    %2086 = vmatpush2.bf16.msra.mxu0 0
    %2087 = vmatprep.subr.bf16.mxu0 0
    %2088 = vmatpush2.bf16.msra.mxu0 0
    %2089 = vmatprep.subr.bf16.mxu0 0
    %2090 = vmatpush2.bf16.msra.mxu0 0
    %2091 = vmatprep.subr.bf16.mxu0 0
    %2092 = vmatpush2.bf16.msra.mxu0 0
    %2093 = vmatprep.subr.bf16.mxu0 0
    %2094 = vmatpush2.bf16.msra.mxu0 0
    %2095 = vmatprep.subr.bf16.mxu0 0
    %2096 = vmatpush2.bf16.msra.mxu0 0
    %2097 = vmatprep.subr.bf16.mxu0 0
    %2098 = vmatpush2.bf16.msra.mxu0 0
    %2099 = vmatprep.subr.bf16.mxu0 0
    %2100 = vmatpush2.bf16.msra.mxu0 0
    %2101 = vmatprep.mubr.bf16.mxu0 0
    %2102 = vmatmul.mubr.bf16.gmra.mxu0 %v2067
    %v2103 = vpop.f32.mrf.mxu0
    %v2104 = vadd.f32 %v2052, %v2103
    %v2105 = vpop.f32.mrf.mxu0
    %v2106 = vpop.f32.mrf.mxu0
    %v2107 = vadd.f32 %v2052, %v2106
    %v2108 = vpop.f32.mrf.mxu0
    %2109 = vdwg.mxu0
    %v2110 = vadd.f32 %v147, %v2104
    %v2111 = vadd.f32 %v148, %v2107
    %v2112 = vld [vmem:[%s7] sm:$0x1]
    %v2113 = vld [vmem:[%s8] sm:$0x1]
    %v2114 = vsel %vm173, %v2110, 0.0
    %2115 = vadd.xlane.f32.xlu0 %v2114
    %v2116 = vpop.xlane.xlu0 %2115
    %v2117 = vsel %vm173, %v2111, 0.0
    %2118 = vadd.xlane.f32.xlu0 %v2117
    %v2119 = vpop.xlane.xlu0 %2118
    %v2120 = vrcp.pop 32.0
    %v2121 = vmul.f32 %v2116, %v2120
    %v2122 = vmul.f32 %v2119, %v2120
    %v2123 = vsub.f32 %v2110, %v2121
    %v2124 = vsub.f32 %v2111, %v2122
    %v2125 = vmul.f32 %v2123, %v2123
    %v2126 = vmul.f32 %v2124, %v2124
    %v2127 = vsel %vm173, %v2125, 0.0
    %2128 = vadd.xlane.f32.xlu0 %v2127
    %v2129 = vpop.xlane.xlu0 %2128
    %v2130 = vsel %vm173, %v2126, 0.0
    %2131 = vadd.xlane.f32.xlu0 %v2130
    %v2132 = vpop.xlane.xlu0 %2131
    %v2133 = vmul.f32 %v2129, %v2120
    %v2134 = vmul.f32 %v2132, %v2120
    %v2135 = vadd.f32 %v2133, 1e-05
    %v2136 = vadd.f32 %v2134, 1e-05
    %v2137 = vrsqrt.pop %v2135
    %v2138 = vrsqrt.pop %v2136
    %v2139 = vmul.f32 %v2123, %v2137
    %v2140 = vmul.f32 %v2124, %v2138
    %v2142 = vlaneseq
    %v2143 = vshrl.u32 %v2142, 7
    %v2144 = vsub.s32 0, %v2143
    %v2145 = vrot.slane %v2112, %v2144
    %v2147 = vmul.f32 %v2139, %v2145
    %v2148 = vmul.f32 %v2140, %v2145
    %v2150 = vlaneseq
    %v2151 = vshrl.u32 %v2150, 7
    %v2152 = vsub.s32 0, %v2151
    %v2153 = vrot.slane %v2113, %v2152
    %v2155 = vadd.f32 %v2147, %v2153
    %v2156 = vadd.f32 %v2148, %v2153
    %v2157 = vpack.c.bf16 %v2156, %v2155
    %v2158 = vld [vmem:[%s9] sm:$0xf]
    %v2159 = vld [vmem:[%s9 + $0x4] sm:$0xf]
    %v2160 = vld [vmem:[%s9 + $0x8] sm:$0xf]
    %v2161 = vld [vmem:[%s9 + $0xc] sm:$0xf]
    %v2162 = vld [vmem:[#allocation2] sm:$0x1]
    %v2164 = vlaneseq
    %v2165 = vshrl.u32 %v2164, 7
    %v2166 = vsub.s32 0, %v2165
    %v2167 = vrot.slane %v2162, %v2166
    %v2173 = vunpack.c.l.b16 %v2158
    %v2174 = vunpack.c.l.b16 %v2159
    %v2175 = vunpack.c.l.b16 %v2160
    %v2176 = vunpack.c.l.b16 %v2161
    %v2177 = vpack.c.b16 %v2174, %v2173
    %v2178 = vpack.c.b16 %v2176, %v2175
    %v2182 = vsel %vm173, %v2157, 0
    %2184 = vmatprep.subr.bf16.mxu0 0
    %2185 = vmatpush1.bf16.msra.mxu0 0
    %2186 = vmatprep.subr.bf16.mxu0 0
    %2187 = vmatpush1.bf16.msra.mxu0 0
    %2188 = vmatprep.subr.bf16.mxu0 0
    %2189 = vmatpush1.bf16.msra.mxu0 0
    %2190 = vmatprep.subr.bf16.mxu0 0
    %2191 = vmatpush1.bf16.msra.mxu0 0
    %2192 = vmatprep.subr.bf16.mxu0 0
    %2193 = vmatpush1.bf16.msra.mxu0 0
    %2194 = vmatprep.subr.bf16.mxu0 0
    %2195 = vmatpush1.bf16.msra.mxu0 0
    %2196 = vmatprep.subr.bf16.mxu0 0
    %2197 = vmatpush1.bf16.msra.mxu0 %v2178
    %2198 = vmatprep.subr.bf16.mxu0 0
    %2199 = vmatpush1.bf16.msra.mxu0 %v2177
    %2200 = vmatprep.subr.bf16.mxu0 0
    %2201 = vmatpush2.bf16.msra.mxu0 0
    %2202 = vmatprep.subr.bf16.mxu0 0
    %2203 = vmatpush2.bf16.msra.mxu0 0
    %2204 = vmatprep.subr.bf16.mxu0 0
    %2205 = vmatpush2.bf16.msra.mxu0 0
    %2206 = vmatprep.subr.bf16.mxu0 0
    %2207 = vmatpush2.bf16.msra.mxu0 0
    %2208 = vmatprep.subr.bf16.mxu0 0
    %2209 = vmatpush2.bf16.msra.mxu0 0
    %2210 = vmatprep.subr.bf16.mxu0 0
    %2211 = vmatpush2.bf16.msra.mxu0 0
    %2212 = vmatprep.subr.bf16.mxu0 0
    %2213 = vmatpush2.bf16.msra.mxu0 0
    %2214 = vmatprep.subr.bf16.mxu0 0
    %2215 = vmatpush2.bf16.msra.mxu0 0
    %2216 = vmatprep.mubr.bf16.mxu0 0
    %2217 = vmatmul.mubr.bf16.gmra.mxu0 %v2182
    %v2218 = vpop.f32.mrf.mxu0
    %v2219 = vadd.f32 %v2167, %v2218
    %v2220 = vpop.f32.mrf.mxu0
    %v2221 = vpop.f32.mrf.mxu0
    %v2222 = vadd.f32 %v2167, %v2221
    %v2223 = vpop.f32.mrf.mxu0
    %2224 = vdwg.mxu0
    %v2225 = vmax.f32 %v2219, 0.0
    %v2226 = vmax.f32 %v2222, 0.0
    %v2227 = vpack.c.bf16 %v2226, %v2225
    %v2228 = vld [vmem:[%s11] sm:$0xf]
    %v2229 = vld [vmem:[%s11 + $0x4] sm:$0xf]
    %v2230 = vld [vmem:[%s11 + $0x8] sm:$0xf]
    %v2231 = vld [vmem:[%s11 + $0xc] sm:$0xf]
    %v2232 = vld [vmem:[%s11 + $0x10] sm:$0xf]
    %v2233 = vld [vmem:[%s11 + $0x14] sm:$0xf]
    %v2234 = vld [vmem:[%s11 + $0x18] sm:$0xf]
    %v2235 = vld [vmem:[%s11 + $0x1c] sm:$0xf]
    %v2236 = vld [vmem:[#allocation5] sm:$0x1]
    %v2238 = vlaneseq
    %v2239 = vshrl.u32 %v2238, 7
    %v2240 = vsub.s32 0, %v2239
    %v2241 = vrot.slane %v2236, %v2240
    %v2251 = vunpack.c.l.b16 %v2228
    %v2252 = vunpack.c.l.b16 %v2229
    %v2253 = vunpack.c.l.b16 %v2230
    %v2254 = vunpack.c.l.b16 %v2231
    %v2255 = vunpack.c.l.b16 %v2232
    %v2256 = vunpack.c.l.b16 %v2233
    %v2257 = vunpack.c.l.b16 %v2234
    %v2258 = vunpack.c.l.b16 %v2235
    %v2259 = vpack.c.b16 %v2252, %v2251
    %v2260 = vpack.c.b16 %v2254, %v2253
    %v2261 = vpack.c.b16 %v2256, %v2255
    %v2262 = vpack.c.b16 %v2258, %v2257
    %vm2267 = vcmask 523264
    %v2269 = vsel %vm2267, %v2227, 0
    %2271 = vmatprep.subr.bf16.mxu0 0
    %2272 = vmatpush1.bf16.msra.mxu0 0
    %2273 = vmatprep.subr.bf16.mxu0 0
    %2274 = vmatpush1.bf16.msra.mxu0 0
    %2275 = vmatprep.subr.bf16.mxu0 0
    %2276 = vmatpush1.bf16.msra.mxu0 0
    %2277 = vmatprep.subr.bf16.mxu0 0
    %2278 = vmatpush1.bf16.msra.mxu0 0
    %2279 = vmatprep.subr.bf16.mxu0 0
    %2280 = vmatpush1.bf16.msra.mxu0 %v2262
    %2281 = vmatprep.subr.bf16.mxu0 0
    %2282 = vmatpush1.bf16.msra.mxu0 %v2261
    %2283 = vmatprep.subr.bf16.mxu0 0
    %2284 = vmatpush1.bf16.msra.mxu0 %v2260
    %2285 = vmatprep.subr.bf16.mxu0 0
    %2286 = vmatpush1.bf16.msra.mxu0 %v2259
    %2287 = vmatprep.subr.bf16.mxu0 0
    %2288 = vmatpush2.bf16.msra.mxu0 0
    %2289 = vmatprep.subr.bf16.mxu0 0
    %2290 = vmatpush2.bf16.msra.mxu0 0
    %2291 = vmatprep.subr.bf16.mxu0 0
    %2292 = vmatpush2.bf16.msra.mxu0 0
    %2293 = vmatprep.subr.bf16.mxu0 0
    %2294 = vmatpush2.bf16.msra.mxu0 0
    %2295 = vmatprep.subr.bf16.mxu0 0
    %2296 = vmatpush2.bf16.msra.mxu0 0
    %2297 = vmatprep.subr.bf16.mxu0 0
    %2298 = vmatpush2.bf16.msra.mxu0 0
    %2299 = vmatprep.subr.bf16.mxu0 0
    %2300 = vmatpush2.bf16.msra.mxu0 0
    %2301 = vmatprep.subr.bf16.mxu0 0
    %2302 = vmatpush2.bf16.msra.mxu0 0
    %2303 = vmatprep.mubr.bf16.mxu0 0
    %2304 = vmatmul.mubr.bf16.gmra.mxu0 %v2269
    %v2305 = vpop.f32.mrf.mxu0
    %v2306 = vadd.f32 %v2241, %v2305
    %v2307 = vpop.f32.mrf.mxu0
    %v2308 = vpop.f32.mrf.mxu0
    %v2309 = vadd.f32 %v2241, %v2308
    %v2310 = vpop.f32.mrf.mxu0
    %2311 = vdwg.mxu0
    %v2312 = vadd.f32 %v2155, %v2306
    %v2313 = vadd.f32 %v2156, %v2309
    %v2314 = vld [vmem:[%s13] sm:$0x1]
    %v2315 = vld [vmem:[%s14] sm:$0x1]
    %v2316 = vsel %vm173, %v2312, 0.0
    %2317 = vadd.xlane.f32.xlu0 %v2316
    %v2318 = vpop.xlane.xlu0 %2317
    %v2319 = vsel %vm173, %v2313, 0.0
    %2320 = vadd.xlane.f32.xlu0 %v2319
    %v2321 = vpop.xlane.xlu0 %2320
    %v2322 = vmul.f32 %v2318, %v2120
    %v2323 = vmul.f32 %v2321, %v2120
    %v2324 = vsub.f32 %v2312, %v2322
    %v2325 = vsub.f32 %v2313, %v2323
    %v2326 = vmul.f32 %v2324, %v2324
    %v2327 = vmul.f32 %v2325, %v2325
    %v2328 = vsel %vm173, %v2326, 0.0
    %2329 = vadd.xlane.f32.xlu0 %v2328
    %v2330 = vpop.xlane.xlu0 %2329
    %v2331 = vsel %vm173, %v2327, 0.0
    %2332 = vadd.xlane.f32.xlu0 %v2331
    %v2333 = vpop.xlane.xlu0 %2332
    %v2334 = vmul.f32 %v2330, %v2120
    %v2335 = vmul.f32 %v2333, %v2120
    %v2336 = vadd.f32 %v2334, 1e-05
    %v2337 = vadd.f32 %v2335, 1e-05
    %v2338 = vrsqrt.pop %v2336
    %v2339 = vrsqrt.pop %v2337
    %v2340 = vmul.f32 %v2324, %v2338
    %v2341 = vmul.f32 %v2325, %v2339
    %v2343 = vlaneseq
    %v2344 = vshrl.u32 %v2343, 7
    %v2345 = vsub.s32 0, %v2344
    %v2346 = vrot.slane %v2314, %v2345
    %v2348 = vmul.f32 %v2340, %v2346
    %v2349 = vmul.f32 %v2341, %v2346
    %v2351 = vlaneseq
    %v2352 = vshrl.u32 %v2351, 7
    %v2353 = vsub.s32 0, %v2352
    %v2354 = vrot.slane %v2315, %v2353
    %v2356 = vadd.f32 %v2348, %v2354
    %v2357 = vadd.f32 %v2349, %v2354
    %v2358 = vpack.c.bf16 %v2357, %v2356
    %s2359 = scalar_lea.vmem %s3, 16
    %v2360 = vld [vmem:[%s2359] sm:$0xf]
    %v2361 = vld [vmem:[%s2359 + $0x4] sm:$0xf]
    %v2362 = vld [vmem:[%s2359 + $0x8] sm:$0xf]
    %v2363 = vld [vmem:[%s2359 + $0xc] sm:$0xf]
    %s2364 = scalar_lea.vmem %s4, 1
    %v2365 = vld [vmem:[%s2364] sm:$0x1]
    %v2367 = vlaneseq
    %v2368 = vshrl.u32 %v2367, 7
    %v2369 = vsub.s32 0, %v2368
    %v2370 = vrot.slane %v2365, %v2369
    %v2376 = vunpack.c.l.b16 %v2360
    %v2377 = vunpack.c.l.b16 %v2361
    %v2378 = vunpack.c.l.b16 %v2362
    %v2379 = vunpack.c.l.b16 %v2363
    %v2380 = vpack.c.b16 %v2377, %v2376
    %v2381 = vpack.c.b16 %v2379, %v2378
    %v2385 = vsel %vm173, %v2358, 0
    %2387 = vmatprep.subr.bf16.mxu0 0
    %2388 = vmatpush1.bf16.msra.mxu0 0
    %2389 = vmatprep.subr.bf16.mxu0 0
    %2390 = vmatpush1.bf16.msra.mxu0 0
    %2391 = vmatprep.subr.bf16.mxu0 0
    %2392 = vmatpush1.bf16.msra.mxu0 0
    %2393 = vmatprep.subr.bf16.mxu0 0
    %2394 = vmatpush1.bf16.msra.mxu0 0
    %2395 = vmatprep.subr.bf16.mxu0 0
    %2396 = vmatpush1.bf16.msra.mxu0 0
    %2397 = vmatprep.subr.bf16.mxu0 0
    %2398 = vmatpush1.bf16.msra.mxu0 0
    %2399 = vmatprep.subr.bf16.mxu0 0
    %2400 = vmatpush1.bf16.msra.mxu0 %v2381
    %2401 = vmatprep.subr.bf16.mxu0 0
    %2402 = vmatpush1.bf16.msra.mxu0 %v2380
    %2403 = vmatprep.subr.bf16.mxu0 0
    %2404 = vmatpush2.bf16.msra.mxu0 0
    %2405 = vmatprep.subr.bf16.mxu0 0
    %2406 = vmatpush2.bf16.msra.mxu0 0
    %2407 = vmatprep.subr.bf16.mxu0 0
    %2408 = vmatpush2.bf16.msra.mxu0 0
    %2409 = vmatprep.subr.bf16.mxu0 0
    %2410 = vmatpush2.bf16.msra.mxu0 0
    %2411 = vmatprep.subr.bf16.mxu0 0
    %2412 = vmatpush2.bf16.msra.mxu0 0
    %2413 = vmatprep.subr.bf16.mxu0 0
    %2414 = vmatpush2.bf16.msra.mxu0 0
    %2415 = vmatprep.subr.bf16.mxu0 0
    %2416 = vmatpush2.bf16.msra.mxu0 0
    %2417 = vmatprep.subr.bf16.mxu0 0
    %2418 = vmatpush2.bf16.msra.mxu0 0
    %2419 = vmatprep.mubr.bf16.mxu0 0
    %2420 = vmatmul.mubr.bf16.gmra.mxu0 %v2385
    %v2421 = vpop.f32.mrf.mxu0
    %v2422 = vadd.f32 %v2370, %v2421
    %v2423 = vpop.f32.mrf.mxu0
    %v2424 = vpop.f32.mrf.mxu0
    %v2425 = vadd.f32 %v2370, %v2424
    %v2426 = vpop.f32.mrf.mxu0
    %2427 = vdwg.mxu0
    %v2428 = vpack.c.bf16 %v2425, %v2422
    %v2430 = vunpack.c.l.b16 %v2428
    %v2431 = vunpack.c.h.b16 %v2428
    %v2432 = vpack.c.b16 %v2430, %v2430
    %v2433 = vpack.c.b16 %v2431, %v2431
    %2434 = vrot.lane.b32.xlu0 %v2432, 120
    %v2435 = vpop.permute.xlu0 %2434
    %2436 = vrot.lane.b32.xlu0 %v2433, 120
    %v2437 = vpop.permute.xlu0 %2436
    %2438 = vrot.lane.b32.xlu0 %v2432, 112
    %v2439 = vpop.permute.xlu0 %2438
    %2440 = vrot.lane.b32.xlu0 %v2433, 112
    %v2441 = vpop.permute.xlu0 %2440
    %2442 = vrot.lane.b32.xlu0 %v2432, 104
    %v2443 = vpop.permute.xlu0 %2442
    %2444 = vrot.lane.b32.xlu0 %v2433, 104
    %v2445 = vpop.permute.xlu0 %2444
    %2446 = vrot.lane.b32.xlu0 %v2432, 96
    %v2447 = vpop.permute.xlu0 %2446
    %v2449 = vsel %vm238, %v2432, 0
    %v2452 = vsel %vm238, %v2447, 0
    %2454 = vmatprep.subr.bf16.mxu0 0
    %2455 = vmatpush1.bf16.xpose.msra.mxu0 0
    %2456 = vmatprep.subr.bf16.mxu0 0
    %2457 = vmatpush1.bf16.xpose.msra.mxu0 0
    %2458 = vmatprep.subr.bf16.mxu0 0
    %2459 = vmatpush1.bf16.xpose.msra.mxu0 0
    %2460 = vmatprep.subr.bf16.mxu0 0
    %2461 = vmatpush1.bf16.xpose.msra.mxu0 0
    %2462 = vmatprep.subr.bf16.mxu0 0
    %2463 = vmatpush1.bf16.xpose.msra.mxu0 0
    %2464 = vmatprep.subr.bf16.mxu0 0
    %2465 = vmatpush1.bf16.xpose.msra.mxu0 0
    %2466 = vmatprep.subr.bf16.mxu0 0
    %2467 = vmatpush1.bf16.xpose.msra.mxu0 0
    %2468 = vmatprep.subr.bf16.mxu0 0
    %2469 = vmatpush1.bf16.xpose.msra.mxu0 %v2452
    %2470 = vmatprep.subr.bf16.mxu0 0
    %2471 = vmatpush2.bf16.xpose.msra.mxu0 0
    %2472 = vmatprep.subr.bf16.mxu0 0
    %2473 = vmatpush2.bf16.xpose.msra.mxu0 0
    %2474 = vmatprep.subr.bf16.mxu0 0
    %2475 = vmatpush2.bf16.xpose.msra.mxu0 0
    %2476 = vmatprep.subr.bf16.mxu0 0
    %2477 = vmatpush2.bf16.xpose.msra.mxu0 0
    %2478 = vmatprep.subr.bf16.mxu0 0
    %2479 = vmatpush2.bf16.xpose.msra.mxu0 0
    %2480 = vmatprep.subr.bf16.mxu0 0
    %2481 = vmatpush2.bf16.xpose.msra.mxu0 0
    %2482 = vmatprep.subr.bf16.mxu0 0
    %2483 = vmatpush2.bf16.xpose.msra.mxu0 0
    %2484 = vmatprep.subr.bf16.mxu0 0
    %2485 = vmatpush2.bf16.xpose.msra.mxu0 0
    %2486 = vmatprep.mubr.bf16.mxu0 0
    %2487 = vmatmul.mubr.bf16.gmra.mxu0 %v2449
    %v2488 = vpop.f32.mrf.mxu0
    %v2489 = vadd.f32 0.0, %v2488
    %v2490 = vpop.f32.mrf.mxu0
    %v2491 = vpop.f32.mrf.mxu0
    %v2492 = vpop.f32.mrf.mxu0
    %2493 = vdwg.mxu0
    %v2494 = vunpack.c.l.b16 %v2435
    %v2495 = vpack.c.b16 %v2494, %v2494
    %2496 = vrot.lane.b32.xlu0 %v2495, 96
    %v2497 = vpop.permute.xlu0 %2496
    %v2499 = vsel %vm238, %v2435, 0
    %v2502 = vsel %vm238, %v2497, 0
    %2504 = vmatprep.subr.bf16.mxu0 0
    %2505 = vmatpush1.bf16.xpose.msra.mxu0 0
    %2506 = vmatprep.subr.bf16.mxu0 0
    %2507 = vmatpush1.bf16.xpose.msra.mxu0 0
    %2508 = vmatprep.subr.bf16.mxu0 0
    %2509 = vmatpush1.bf16.xpose.msra.mxu0 0
    %2510 = vmatprep.subr.bf16.mxu0 0
    %2511 = vmatpush1.bf16.xpose.msra.mxu0 0
    %2512 = vmatprep.subr.bf16.mxu0 0
    %2513 = vmatpush1.bf16.xpose.msra.mxu0 0
    %2514 = vmatprep.subr.bf16.mxu0 0
    %2515 = vmatpush1.bf16.xpose.msra.mxu0 0
    %2516 = vmatprep.subr.bf16.mxu0 0
    %2517 = vmatpush1.bf16.xpose.msra.mxu0 0
    %2518 = vmatprep.subr.bf16.mxu0 0
    %2519 = vmatpush1.bf16.xpose.msra.mxu0 %v2502
    %2520 = vmatprep.subr.bf16.mxu0 0
    %2521 = vmatpush2.bf16.xpose.msra.mxu0 0
    %2522 = vmatprep.subr.bf16.mxu0 0
    %2523 = vmatpush2.bf16.xpose.msra.mxu0 0
    %2524 = vmatprep.subr.bf16.mxu0 0
    %2525 = vmatpush2.bf16.xpose.msra.mxu0 0
    %2526 = vmatprep.subr.bf16.mxu0 0
    %2527 = vmatpush2.bf16.xpose.msra.mxu0 0
    %2528 = vmatprep.subr.bf16.mxu0 0
    %2529 = vmatpush2.bf16.xpose.msra.mxu0 0
    %2530 = vmatprep.subr.bf16.mxu0 0
    %2531 = vmatpush2.bf16.xpose.msra.mxu0 0
    %2532 = vmatprep.subr.bf16.mxu0 0
    %2533 = vmatpush2.bf16.xpose.msra.mxu0 0
    %2534 = vmatprep.subr.bf16.mxu0 0
    %2535 = vmatpush2.bf16.xpose.msra.mxu0 0
    %2536 = vmatprep.mubr.bf16.mxu0 0
    %2537 = vmatmul.mubr.bf16.gmra.mxu0 %v2499
    %v2538 = vpop.f32.mrf.mxu0
    %v2539 = vadd.f32 0.0, %v2538
    %v2540 = vpop.f32.mrf.mxu0
    %v2541 = vpop.f32.mrf.mxu0
    %v2542 = vpop.f32.mrf.mxu0
    %2543 = vdwg.mxu0
    %v2544 = vunpack.c.l.b16 %v2439
    %v2545 = vpack.c.b16 %v2544, %v2544
    %2546 = vrot.lane.b32.xlu0 %v2545, 96
    %v2547 = vpop.permute.xlu0 %2546
    %v2549 = vsel %vm238, %v2439, 0
    %v2552 = vsel %vm238, %v2547, 0
    %2554 = vmatprep.subr.bf16.mxu0 0
    %2555 = vmatpush1.bf16.xpose.msra.mxu0 0
    %2556 = vmatprep.subr.bf16.mxu0 0
    %2557 = vmatpush1.bf16.xpose.msra.mxu0 0
    %2558 = vmatprep.subr.bf16.mxu0 0
    %2559 = vmatpush1.bf16.xpose.msra.mxu0 0
    %2560 = vmatprep.subr.bf16.mxu0 0
    %2561 = vmatpush1.bf16.xpose.msra.mxu0 0
    %2562 = vmatprep.subr.bf16.mxu0 0
    %2563 = vmatpush1.bf16.xpose.msra.mxu0 0
    %2564 = vmatprep.subr.bf16.mxu0 0
    %2565 = vmatpush1.bf16.xpose.msra.mxu0 0
    %2566 = vmatprep.subr.bf16.mxu0 0
    %2567 = vmatpush1.bf16.xpose.msra.mxu0 0
    %2568 = vmatprep.subr.bf16.mxu0 0
    %2569 = vmatpush1.bf16.xpose.msra.mxu0 %v2552
    %2570 = vmatprep.subr.bf16.mxu0 0
    %2571 = vmatpush2.bf16.xpose.msra.mxu0 0
    %2572 = vmatprep.subr.bf16.mxu0 0
    %2573 = vmatpush2.bf16.xpose.msra.mxu0 0
    %2574 = vmatprep.subr.bf16.mxu0 0
    %2575 = vmatpush2.bf16.xpose.msra.mxu0 0
    %2576 = vmatprep.subr.bf16.mxu0 0
    %2577 = vmatpush2.bf16.xpose.msra.mxu0 0
    %2578 = vmatprep.subr.bf16.mxu0 0
    %2579 = vmatpush2.bf16.xpose.msra.mxu0 0
    %2580 = vmatprep.subr.bf16.mxu0 0
    %2581 = vmatpush2.bf16.xpose.msra.mxu0 0
    %2582 = vmatprep.subr.bf16.mxu0 0
    %2583 = vmatpush2.bf16.xpose.msra.mxu0 0
    %2584 = vmatprep.subr.bf16.mxu0 0
    %2585 = vmatpush2.bf16.xpose.msra.mxu0 0
    %2586 = vmatprep.mubr.bf16.mxu0 0
    %2587 = vmatmul.mubr.bf16.gmra.mxu0 %v2549
    %v2588 = vpop.f32.mrf.mxu0
    %v2589 = vadd.f32 0.0, %v2588
    %v2590 = vpop.f32.mrf.mxu0
    %v2591 = vpop.f32.mrf.mxu0
    %v2592 = vpop.f32.mrf.mxu0
    %2593 = vdwg.mxu0
    %v2594 = vunpack.c.l.b16 %v2443
    %v2595 = vpack.c.b16 %v2594, %v2594
    %2596 = vrot.lane.b32.xlu0 %v2595, 96
    %v2597 = vpop.permute.xlu0 %2596
    %v2599 = vsel %vm238, %v2443, 0
    %v2602 = vsel %vm238, %v2597, 0
    %2604 = vmatprep.subr.bf16.mxu0 0
    %2605 = vmatpush1.bf16.xpose.msra.mxu0 0
    %2606 = vmatprep.subr.bf16.mxu0 0
    %2607 = vmatpush1.bf16.xpose.msra.mxu0 0
    %2608 = vmatprep.subr.bf16.mxu0 0
    %2609 = vmatpush1.bf16.xpose.msra.mxu0 0
    %2610 = vmatprep.subr.bf16.mxu0 0
    %2611 = vmatpush1.bf16.xpose.msra.mxu0 0
    %2612 = vmatprep.subr.bf16.mxu0 0
    %2613 = vmatpush1.bf16.xpose.msra.mxu0 0
    %2614 = vmatprep.subr.bf16.mxu0 0
    %2615 = vmatpush1.bf16.xpose.msra.mxu0 0
    %2616 = vmatprep.subr.bf16.mxu0 0
    %2617 = vmatpush1.bf16.xpose.msra.mxu0 0
    %2618 = vmatprep.subr.bf16.mxu0 0
    %2619 = vmatpush1.bf16.xpose.msra.mxu0 %v2602
    %2620 = vmatprep.subr.bf16.mxu0 0
    %2621 = vmatpush2.bf16.xpose.msra.mxu0 0
    %2622 = vmatprep.subr.bf16.mxu0 0
    %2623 = vmatpush2.bf16.xpose.msra.mxu0 0
    %2624 = vmatprep.subr.bf16.mxu0 0
    %2625 = vmatpush2.bf16.xpose.msra.mxu0 0
    %2626 = vmatprep.subr.bf16.mxu0 0
    %2627 = vmatpush2.bf16.xpose.msra.mxu0 0
    %2628 = vmatprep.subr.bf16.mxu0 0
    %2629 = vmatpush2.bf16.xpose.msra.mxu0 0
    %2630 = vmatprep.subr.bf16.mxu0 0
    %2631 = vmatpush2.bf16.xpose.msra.mxu0 0
    %2632 = vmatprep.subr.bf16.mxu0 0
    %2633 = vmatpush2.bf16.xpose.msra.mxu0 0
    %2634 = vmatprep.subr.bf16.mxu0 0
    %2635 = vmatpush2.bf16.xpose.msra.mxu0 0
    %2636 = vmatprep.mubr.bf16.mxu0 0
    %2637 = vmatmul.mubr.bf16.gmra.mxu0 %v2599
    %v2638 = vpop.f32.mrf.mxu0
    %v2639 = vadd.f32 0.0, %v2638
    %v2640 = vpop.f32.mrf.mxu0
    %v2641 = vpop.f32.mrf.mxu0
    %v2642 = vpop.f32.mrf.mxu0
    %2643 = vdwg.mxu0
    %2644 = vrot.lane.b32.xlu0 %v2433, 96
    %v2645 = vpop.permute.xlu0 %2644
    %v2647 = vsel %vm238, %v2433, 0
    %v2650 = vsel %vm238, %v2645, 0
    %2652 = vmatprep.subr.bf16.mxu0 0
    %2653 = vmatpush1.bf16.xpose.msra.mxu0 0
    %2654 = vmatprep.subr.bf16.mxu0 0
    %2655 = vmatpush1.bf16.xpose.msra.mxu0 0
    %2656 = vmatprep.subr.bf16.mxu0 0
    %2657 = vmatpush1.bf16.xpose.msra.mxu0 0
    %2658 = vmatprep.subr.bf16.mxu0 0
    %2659 = vmatpush1.bf16.xpose.msra.mxu0 0
    %2660 = vmatprep.subr.bf16.mxu0 0
    %2661 = vmatpush1.bf16.xpose.msra.mxu0 0
    %2662 = vmatprep.subr.bf16.mxu0 0
    %2663 = vmatpush1.bf16.xpose.msra.mxu0 0
    %2664 = vmatprep.subr.bf16.mxu0 0
    %2665 = vmatpush1.bf16.xpose.msra.mxu0 0
    %2666 = vmatprep.subr.bf16.mxu0 0
    %2667 = vmatpush1.bf16.xpose.msra.mxu0 %v2650
    %2668 = vmatprep.subr.bf16.mxu0 0
    %2669 = vmatpush2.bf16.xpose.msra.mxu0 0
    %2670 = vmatprep.subr.bf16.mxu0 0
    %2671 = vmatpush2.bf16.xpose.msra.mxu0 0
    %2672 = vmatprep.subr.bf16.mxu0 0
    %2673 = vmatpush2.bf16.xpose.msra.mxu0 0
    %2674 = vmatprep.subr.bf16.mxu0 0
    %2675 = vmatpush2.bf16.xpose.msra.mxu0 0
    %2676 = vmatprep.subr.bf16.mxu0 0
    %2677 = vmatpush2.bf16.xpose.msra.mxu0 0
    %2678 = vmatprep.subr.bf16.mxu0 0
    %2679 = vmatpush2.bf16.xpose.msra.mxu0 0
    %2680 = vmatprep.subr.bf16.mxu0 0
    %2681 = vmatpush2.bf16.xpose.msra.mxu0 0
    %2682 = vmatprep.subr.bf16.mxu0 0
    %2683 = vmatpush2.bf16.xpose.msra.mxu0 0
    %2684 = vmatprep.mubr.bf16.mxu0 0
    %2685 = vmatmul.mubr.bf16.gmra.mxu0 %v2647
    %v2686 = vpop.f32.mrf.mxu0
    %v2687 = vadd.f32 0.0, %v2686
    %v2688 = vpop.f32.mrf.mxu0
    %v2689 = vpop.f32.mrf.mxu0
    %v2690 = vpop.f32.mrf.mxu0
    %2691 = vdwg.mxu0
    %v2692 = vunpack.c.l.b16 %v2437
    %v2693 = vpack.c.b16 %v2692, %v2692
    %2694 = vrot.lane.b32.xlu0 %v2693, 96
    %v2695 = vpop.permute.xlu0 %2694
    %v2697 = vsel %vm238, %v2437, 0
    %v2700 = vsel %vm238, %v2695, 0
    %2702 = vmatprep.subr.bf16.mxu0 0
    %2703 = vmatpush1.bf16.xpose.msra.mxu0 0
    %2704 = vmatprep.subr.bf16.mxu0 0
    %2705 = vmatpush1.bf16.xpose.msra.mxu0 0
    %2706 = vmatprep.subr.bf16.mxu0 0
    %2707 = vmatpush1.bf16.xpose.msra.mxu0 0
    %2708 = vmatprep.subr.bf16.mxu0 0
    %2709 = vmatpush1.bf16.xpose.msra.mxu0 0
    %2710 = vmatprep.subr.bf16.mxu0 0
    %2711 = vmatpush1.bf16.xpose.msra.mxu0 0
    %2712 = vmatprep.subr.bf16.mxu0 0
    %2713 = vmatpush1.bf16.xpose.msra.mxu0 0
    %2714 = vmatprep.subr.bf16.mxu0 0
    %2715 = vmatpush1.bf16.xpose.msra.mxu0 0
    %2716 = vmatprep.subr.bf16.mxu0 0
    %2717 = vmatpush1.bf16.xpose.msra.mxu0 %v2700
    %2718 = vmatprep.subr.bf16.mxu0 0
    %2719 = vmatpush2.bf16.xpose.msra.mxu0 0
    %2720 = vmatprep.subr.bf16.mxu0 0
    %2721 = vmatpush2.bf16.xpose.msra.mxu0 0
    %2722 = vmatprep.subr.bf16.mxu0 0
    %2723 = vmatpush2.bf16.xpose.msra.mxu0 0
    %2724 = vmatprep.subr.bf16.mxu0 0
    %2725 = vmatpush2.bf16.xpose.msra.mxu0 0
    %2726 = vmatprep.subr.bf16.mxu0 0
    %2727 = vmatpush2.bf16.xpose.msra.mxu0 0
    %2728 = vmatprep.subr.bf16.mxu0 0
    %2729 = vmatpush2.bf16.xpose.msra.mxu0 0
    %2730 = vmatprep.subr.bf16.mxu0 0
    %2731 = vmatpush2.bf16.xpose.msra.mxu0 0
    %2732 = vmatprep.subr.bf16.mxu0 0
    %2733 = vmatpush2.bf16.xpose.msra.mxu0 0
    %2734 = vmatprep.mubr.bf16.mxu0 0
    %2735 = vmatmul.mubr.bf16.gmra.mxu0 %v2697
    %v2736 = vpop.f32.mrf.mxu0
    %v2737 = vadd.f32 0.0, %v2736
    %v2738 = vpop.f32.mrf.mxu0
    %v2739 = vpop.f32.mrf.mxu0
    %v2740 = vpop.f32.mrf.mxu0
    %2741 = vdwg.mxu0
    %v2742 = vunpack.c.l.b16 %v2441
    %v2743 = vpack.c.b16 %v2742, %v2742
    %2744 = vrot.lane.b32.xlu0 %v2743, 96
    %v2745 = vpop.permute.xlu0 %2744
    %v2747 = vsel %vm238, %v2441, 0
    %v2750 = vsel %vm238, %v2745, 0
    %2752 = vmatprep.subr.bf16.mxu0 0
    %2753 = vmatpush1.bf16.xpose.msra.mxu0 0
    %2754 = vmatprep.subr.bf16.mxu0 0
    %2755 = vmatpush1.bf16.xpose.msra.mxu0 0
    %2756 = vmatprep.subr.bf16.mxu0 0
    %2757 = vmatpush1.bf16.xpose.msra.mxu0 0
    %2758 = vmatprep.subr.bf16.mxu0 0
    %2759 = vmatpush1.bf16.xpose.msra.mxu0 0
    %2760 = vmatprep.subr.bf16.mxu0 0
    %2761 = vmatpush1.bf16.xpose.msra.mxu0 0
    %2762 = vmatprep.subr.bf16.mxu0 0
    %2763 = vmatpush1.bf16.xpose.msra.mxu0 0
    %2764 = vmatprep.subr.bf16.mxu0 0
    %2765 = vmatpush1.bf16.xpose.msra.mxu0 0
    %2766 = vmatprep.subr.bf16.mxu0 0
    %2767 = vmatpush1.bf16.xpose.msra.mxu0 %v2750
    %2768 = vmatprep.subr.bf16.mxu0 0
    %2769 = vmatpush2.bf16.xpose.msra.mxu0 0
    %2770 = vmatprep.subr.bf16.mxu0 0
    %2771 = vmatpush2.bf16.xpose.msra.mxu0 0
    %2772 = vmatprep.subr.bf16.mxu0 0
    %2773 = vmatpush2.bf16.xpose.msra.mxu0 0
    %2774 = vmatprep.subr.bf16.mxu0 0
    %2775 = vmatpush2.bf16.xpose.msra.mxu0 0
    %2776 = vmatprep.subr.bf16.mxu0 0
    %2777 = vmatpush2.bf16.xpose.msra.mxu0 0
    %2778 = vmatprep.subr.bf16.mxu0 0
    %2779 = vmatpush2.bf16.xpose.msra.mxu0 0
    %2780 = vmatprep.subr.bf16.mxu0 0
    %2781 = vmatpush2.bf16.xpose.msra.mxu0 0
    %2782 = vmatprep.subr.bf16.mxu0 0
    %2783 = vmatpush2.bf16.xpose.msra.mxu0 0
    %2784 = vmatprep.mubr.bf16.mxu0 0
    %2785 = vmatmul.mubr.bf16.gmra.mxu0 %v2747
    %v2786 = vpop.f32.mrf.mxu0
    %v2787 = vadd.f32 0.0, %v2786
    %v2788 = vpop.f32.mrf.mxu0
    %v2789 = vpop.f32.mrf.mxu0
    %v2790 = vpop.f32.mrf.mxu0
    %2791 = vdwg.mxu0
    %v2792 = vunpack.c.l.b16 %v2445
    %v2793 = vpack.c.b16 %v2792, %v2792
    %2794 = vrot.lane.b32.xlu0 %v2793, 96
    %v2795 = vpop.permute.xlu0 %2794
    %v2797 = vsel %vm238, %v2445, 0
    %v2800 = vsel %vm238, %v2795, 0
    %2802 = vmatprep.subr.bf16.mxu0 0
    %2803 = vmatpush1.bf16.xpose.msra.mxu0 0
    %2804 = vmatprep.subr.bf16.mxu0 0
    %2805 = vmatpush1.bf16.xpose.msra.mxu0 0
    %2806 = vmatprep.subr.bf16.mxu0 0
    %2807 = vmatpush1.bf16.xpose.msra.mxu0 0
    %2808 = vmatprep.subr.bf16.mxu0 0
    %2809 = vmatpush1.bf16.xpose.msra.mxu0 0
    %2810 = vmatprep.subr.bf16.mxu0 0
    %2811 = vmatpush1.bf16.xpose.msra.mxu0 0
    %2812 = vmatprep.subr.bf16.mxu0 0
    %2813 = vmatpush1.bf16.xpose.msra.mxu0 0
    %2814 = vmatprep.subr.bf16.mxu0 0
    %2815 = vmatpush1.bf16.xpose.msra.mxu0 0
    %2816 = vmatprep.subr.bf16.mxu0 0
    %2817 = vmatpush1.bf16.xpose.msra.mxu0 %v2800
    %2818 = vmatprep.subr.bf16.mxu0 0
    %2819 = vmatpush2.bf16.xpose.msra.mxu0 0
    %2820 = vmatprep.subr.bf16.mxu0 0
    %2821 = vmatpush2.bf16.xpose.msra.mxu0 0
    %2822 = vmatprep.subr.bf16.mxu0 0
    %2823 = vmatpush2.bf16.xpose.msra.mxu0 0
    %2824 = vmatprep.subr.bf16.mxu0 0
    %2825 = vmatpush2.bf16.xpose.msra.mxu0 0
    %2826 = vmatprep.subr.bf16.mxu0 0
    %2827 = vmatpush2.bf16.xpose.msra.mxu0 0
    %2828 = vmatprep.subr.bf16.mxu0 0
    %2829 = vmatpush2.bf16.xpose.msra.mxu0 0
    %2830 = vmatprep.subr.bf16.mxu0 0
    %2831 = vmatpush2.bf16.xpose.msra.mxu0 0
    %2832 = vmatprep.subr.bf16.mxu0 0
    %2833 = vmatpush2.bf16.xpose.msra.mxu0 0
    %2834 = vmatprep.mubr.bf16.mxu0 0
    %2835 = vmatmul.mubr.bf16.gmra.mxu0 %v2797
    %v2836 = vpop.f32.mrf.mxu0
    %v2837 = vadd.f32 0.0, %v2836
    %v2838 = vpop.f32.mrf.mxu0
    %v2839 = vpop.f32.mrf.mxu0
    %v2840 = vpop.f32.mrf.mxu0
    %2841 = vdwg.mxu0
    %v2842 = vmul.f32 %v2489, 0.35355338
    %v2843 = vmul.f32 %v2539, 0.35355338
    %v2844 = vmul.f32 %v2589, 0.35355338
    %v2845 = vmul.f32 %v2639, 0.35355338
    %v2846 = vmul.f32 %v2687, 0.35355338
    %v2847 = vmul.f32 %v2737, 0.35355338
    %v2848 = vmul.f32 %v2787, 0.35355338
    %v2849 = vmul.f32 %v2837, 0.35355338
    %vm2850 = vcmp.ge.f32.partialorder %v2842, %v2842
    %vm2851 = vcmp.ge.f32.partialorder %v2843, %v2843
    %vm2852 = vcmp.ge.f32.partialorder %v2844, %v2844
    %vm2853 = vcmp.ge.f32.partialorder %v2845, %v2845
    %vm2854 = vcmp.ge.f32.partialorder %v2846, %v2846
    %vm2855 = vcmp.ge.f32.partialorder %v2847, %v2847
    %vm2856 = vcmp.ge.f32.partialorder %v2848, %v2848
    %vm2857 = vcmp.ge.f32.partialorder %v2849, %v2849
    %v2858 = vsel %vm2850, 1, 0
    %v2859 = vsel %vm2851, 1, 0
    %v2860 = vsel %vm2852, 1, 0
    %v2861 = vsel %vm2853, 1, 0
    %v2862 = vsel %vm2854, 1, 0
    %v2863 = vsel %vm2855, 1, 0
    %v2864 = vsel %vm2856, 1, 0
    %v2865 = vsel %vm2857, 1, 0
    %v2866 = vcvt.s32.f32 %v2858
    %v2867 = vcvt.s32.f32 %v2859
    %v2868 = vcvt.s32.f32 %v2860
    %v2869 = vcvt.s32.f32 %v2861
    %v2870 = vcvt.s32.f32 %v2862
    %v2871 = vcvt.s32.f32 %v2863
    %v2872 = vcvt.s32.f32 %v2864
    %v2873 = vcvt.s32.f32 %v2865
    %v2874 = vadd.f32 %v2866, 0.0
    %v2875 = vadd.f32 %v2867, 0.0
    %v2876 = vadd.f32 %v2868, 0.0
    %v2877 = vadd.f32 %v2869, 0.0
    %v2878 = vadd.f32 %v2870, 0.0
    %v2879 = vadd.f32 %v2871, 0.0
    %v2880 = vadd.f32 %v2872, 0.0
    %v2881 = vadd.f32 %v2873, 0.0
    %v2882 = vmul.f32 %v2866, %v2842
    %v2883 = vmul.f32 %v2867, %v2843
    %v2884 = vmul.f32 %v2868, %v2844
    %v2885 = vmul.f32 %v2869, %v2845
    %v2886 = vmul.f32 %v2870, %v2846
    %v2887 = vmul.f32 %v2871, %v2847
    %v2888 = vmul.f32 %v2872, %v2848
    %v2889 = vmul.f32 %v2873, %v2849
    %v2890 = vadd.f32 %v2882, 0.0
    %v2891 = vadd.f32 %v2883, 0.0
    %v2892 = vadd.f32 %v2884, 0.0
    %v2893 = vadd.f32 %v2885, 0.0
    %v2894 = vadd.f32 %v2886, 0.0
    %v2895 = vadd.f32 %v2887, 0.0
    %v2896 = vadd.f32 %v2888, 0.0
    %v2897 = vadd.f32 %v2889, 0.0
    %2906 = vrot.lane.b32.xlu0 %v2842, 127
    %v2907 = vpop.permute.xlu0 %2906
    %2908 = vrot.lane.b32.xlu0 %v2843, 127
    %v2909 = vpop.permute.xlu0 %2908
    %2910 = vrot.lane.b32.xlu0 %v2844, 127
    %v2911 = vpop.permute.xlu0 %2910
    %2912 = vrot.lane.b32.xlu0 %v2845, 127
    %v2913 = vpop.permute.xlu0 %2912
    %2914 = vrot.lane.b32.xlu0 %v2846, 127
    %v2915 = vpop.permute.xlu0 %2914
    %2916 = vrot.lane.b32.xlu0 %v2847, 127
    %v2917 = vpop.permute.xlu0 %2916
    %2918 = vrot.lane.b32.xlu0 %v2848, 127
    %v2919 = vpop.permute.xlu0 %2918
    %2920 = vrot.lane.b32.xlu0 %v2849, 127
    %v2921 = vpop.permute.xlu0 %2920
    %2930 = vrot.lane.b32.xlu0 %v2842, 7
    %v2931 = vpop.permute.xlu0 %2930
    %2932 = vrot.lane.b32.xlu0 %v2843, 7
    %v2933 = vpop.permute.xlu0 %2932
    %2934 = vrot.lane.b32.xlu0 %v2844, 7
    %v2935 = vpop.permute.xlu0 %2934
    %2936 = vrot.lane.b32.xlu0 %v2845, 7
    %v2937 = vpop.permute.xlu0 %2936
    %2938 = vrot.lane.b32.xlu0 %v2846, 7
    %v2939 = vpop.permute.xlu0 %2938
    %2940 = vrot.lane.b32.xlu0 %v2847, 7
    %v2941 = vpop.permute.xlu0 %2940
    %2942 = vrot.lane.b32.xlu0 %v2848, 7
    %v2943 = vpop.permute.xlu0 %2942
    %2944 = vrot.lane.b32.xlu0 %v2849, 7
    %v2945 = vpop.permute.xlu0 %2944
    %v2954 = vsel %vm745, %v2907, %v2931
    %v2955 = vsel %vm745, %v2909, %v2933
    %v2956 = vsel %vm745, %v2911, %v2935
    %v2957 = vsel %vm745, %v2913, %v2937
    %v2958 = vsel %vm745, %v2915, %v2939
    %v2959 = vsel %vm745, %v2917, %v2941
    %v2960 = vsel %vm745, %v2919, %v2943
    %v2961 = vsel %vm745, %v2921, %v2945
    %vm2962 = vcmp.ge.f32.partialorder %v2954, %v2842
    %vm2963 = vcmp.ge.f32.partialorder %v2955, %v2843
    %vm2964 = vcmp.ge.f32.partialorder %v2956, %v2844
    %vm2965 = vcmp.ge.f32.partialorder %v2957, %v2845
    %vm2966 = vcmp.ge.f32.partialorder %v2958, %v2846
    %vm2967 = vcmp.ge.f32.partialorder %v2959, %v2847
    %vm2968 = vcmp.ge.f32.partialorder %v2960, %v2848
    %vm2969 = vcmp.ge.f32.partialorder %v2961, %v2849
    %v2970 = vsel %vm2962, 1, 0
    %v2971 = vsel %vm2963, 1, 0
    %v2972 = vsel %vm2964, 1, 0
    %v2973 = vsel %vm2965, 1, 0
    %v2974 = vsel %vm2966, 1, 0
    %v2975 = vsel %vm2967, 1, 0
    %v2976 = vsel %vm2968, 1, 0
    %v2977 = vsel %vm2969, 1, 0
    %v2978 = vcvt.s32.f32 %v2970
    %v2979 = vcvt.s32.f32 %v2971
    %v2980 = vcvt.s32.f32 %v2972
    %v2981 = vcvt.s32.f32 %v2973
    %v2982 = vcvt.s32.f32 %v2974
    %v2983 = vcvt.s32.f32 %v2975
    %v2984 = vcvt.s32.f32 %v2976
    %v2985 = vcvt.s32.f32 %v2977
    %v2986 = vadd.f32 %v2874, %v2978
    %v2987 = vadd.f32 %v2875, %v2979
    %v2988 = vadd.f32 %v2876, %v2980
    %v2989 = vadd.f32 %v2877, %v2981
    %v2990 = vadd.f32 %v2878, %v2982
    %v2991 = vadd.f32 %v2879, %v2983
    %v2992 = vadd.f32 %v2880, %v2984
    %v2993 = vadd.f32 %v2881, %v2985
    %v2994 = vmul.f32 %v2978, %v2954
    %v2995 = vmul.f32 %v2979, %v2955
    %v2996 = vmul.f32 %v2980, %v2956
    %v2997 = vmul.f32 %v2981, %v2957
    %v2998 = vmul.f32 %v2982, %v2958
    %v2999 = vmul.f32 %v2983, %v2959
    %v3000 = vmul.f32 %v2984, %v2960
    %v3001 = vmul.f32 %v2985, %v2961
    %v3002 = vadd.f32 %v2890, %v2994
    %v3003 = vadd.f32 %v2891, %v2995
    %v3004 = vadd.f32 %v2892, %v2996
    %v3005 = vadd.f32 %v2893, %v2997
    %v3006 = vadd.f32 %v2894, %v2998
    %v3007 = vadd.f32 %v2895, %v2999
    %v3008 = vadd.f32 %v2896, %v3000
    %v3009 = vadd.f32 %v2897, %v3001
    %3018 = vrot.lane.b32.xlu0 %v2954, 127
    %v3019 = vpop.permute.xlu0 %3018
    %3020 = vrot.lane.b32.xlu0 %v2955, 127
    %v3021 = vpop.permute.xlu0 %3020
    %3022 = vrot.lane.b32.xlu0 %v2956, 127
    %v3023 = vpop.permute.xlu0 %3022
    %3024 = vrot.lane.b32.xlu0 %v2957, 127
    %v3025 = vpop.permute.xlu0 %3024
    %3026 = vrot.lane.b32.xlu0 %v2958, 127
    %v3027 = vpop.permute.xlu0 %3026
    %3028 = vrot.lane.b32.xlu0 %v2959, 127
    %v3029 = vpop.permute.xlu0 %3028
    %3030 = vrot.lane.b32.xlu0 %v2960, 127
    %v3031 = vpop.permute.xlu0 %3030
    %3032 = vrot.lane.b32.xlu0 %v2961, 127
    %v3033 = vpop.permute.xlu0 %3032
    %3042 = vrot.lane.b32.xlu0 %v2954, 7
    %v3043 = vpop.permute.xlu0 %3042
    %3044 = vrot.lane.b32.xlu0 %v2955, 7
    %v3045 = vpop.permute.xlu0 %3044
    %3046 = vrot.lane.b32.xlu0 %v2956, 7
    %v3047 = vpop.permute.xlu0 %3046
    %3048 = vrot.lane.b32.xlu0 %v2957, 7
    %v3049 = vpop.permute.xlu0 %3048
    %3050 = vrot.lane.b32.xlu0 %v2958, 7
    %v3051 = vpop.permute.xlu0 %3050
    %3052 = vrot.lane.b32.xlu0 %v2959, 7
    %v3053 = vpop.permute.xlu0 %3052
    %3054 = vrot.lane.b32.xlu0 %v2960, 7
    %v3055 = vpop.permute.xlu0 %3054
    %3056 = vrot.lane.b32.xlu0 %v2961, 7
    %v3057 = vpop.permute.xlu0 %3056
    %v3066 = vsel %vm745, %v3019, %v3043
    %v3067 = vsel %vm745, %v3021, %v3045
    %v3068 = vsel %vm745, %v3023, %v3047
    %v3069 = vsel %vm745, %v3025, %v3049
    %v3070 = vsel %vm745, %v3027, %v3051
    %v3071 = vsel %vm745, %v3029, %v3053
    %v3072 = vsel %vm745, %v3031, %v3055
    %v3073 = vsel %vm745, %v3033, %v3057
    %vm3074 = vcmp.ge.f32.partialorder %v3066, %v2842
    %vm3075 = vcmp.ge.f32.partialorder %v3067, %v2843
    %vm3076 = vcmp.ge.f32.partialorder %v3068, %v2844
    %vm3077 = vcmp.ge.f32.partialorder %v3069, %v2845
    %vm3078 = vcmp.ge.f32.partialorder %v3070, %v2846
    %vm3079 = vcmp.ge.f32.partialorder %v3071, %v2847
    %vm3080 = vcmp.ge.f32.partialorder %v3072, %v2848
    %vm3081 = vcmp.ge.f32.partialorder %v3073, %v2849
    %v3082 = vsel %vm3074, 1, 0
    %v3083 = vsel %vm3075, 1, 0
    %v3084 = vsel %vm3076, 1, 0
    %v3085 = vsel %vm3077, 1, 0
    %v3086 = vsel %vm3078, 1, 0
    %v3087 = vsel %vm3079, 1, 0
    %v3088 = vsel %vm3080, 1, 0
    %v3089 = vsel %vm3081, 1, 0
    %v3090 = vcvt.s32.f32 %v3082
    %v3091 = vcvt.s32.f32 %v3083
    %v3092 = vcvt.s32.f32 %v3084
    %v3093 = vcvt.s32.f32 %v3085
    %v3094 = vcvt.s32.f32 %v3086
    %v3095 = vcvt.s32.f32 %v3087
    %v3096 = vcvt.s32.f32 %v3088
    %v3097 = vcvt.s32.f32 %v3089
    %v3098 = vadd.f32 %v2986, %v3090
    %v3099 = vadd.f32 %v2987, %v3091
    %v3100 = vadd.f32 %v2988, %v3092
    %v3101 = vadd.f32 %v2989, %v3093
    %v3102 = vadd.f32 %v2990, %v3094
    %v3103 = vadd.f32 %v2991, %v3095
    %v3104 = vadd.f32 %v2992, %v3096
    %v3105 = vadd.f32 %v2993, %v3097
    %v3106 = vmul.f32 %v3090, %v3066
    %v3107 = vmul.f32 %v3091, %v3067
    %v3108 = vmul.f32 %v3092, %v3068
    %v3109 = vmul.f32 %v3093, %v3069
    %v3110 = vmul.f32 %v3094, %v3070
    %v3111 = vmul.f32 %v3095, %v3071
    %v3112 = vmul.f32 %v3096, %v3072
    %v3113 = vmul.f32 %v3097, %v3073
    %v3114 = vadd.f32 %v3002, %v3106
    %v3115 = vadd.f32 %v3003, %v3107
    %v3116 = vadd.f32 %v3004, %v3108
    %v3117 = vadd.f32 %v3005, %v3109
    %v3118 = vadd.f32 %v3006, %v3110
    %v3119 = vadd.f32 %v3007, %v3111
    %v3120 = vadd.f32 %v3008, %v3112
    %v3121 = vadd.f32 %v3009, %v3113
    %3130 = vrot.lane.b32.xlu0 %v3066, 127
    %v3131 = vpop.permute.xlu0 %3130
    %3132 = vrot.lane.b32.xlu0 %v3067, 127
    %v3133 = vpop.permute.xlu0 %3132
    %3134 = vrot.lane.b32.xlu0 %v3068, 127
    %v3135 = vpop.permute.xlu0 %3134
    %3136 = vrot.lane.b32.xlu0 %v3069, 127
    %v3137 = vpop.permute.xlu0 %3136
    %3138 = vrot.lane.b32.xlu0 %v3070, 127
    %v3139 = vpop.permute.xlu0 %3138
    %3140 = vrot.lane.b32.xlu0 %v3071, 127
    %v3141 = vpop.permute.xlu0 %3140
    %3142 = vrot.lane.b32.xlu0 %v3072, 127
    %v3143 = vpop.permute.xlu0 %3142
    %3144 = vrot.lane.b32.xlu0 %v3073, 127
    %v3145 = vpop.permute.xlu0 %3144
    %3154 = vrot.lane.b32.xlu0 %v3066, 7
    %v3155 = vpop.permute.xlu0 %3154
    %3156 = vrot.lane.b32.xlu0 %v3067, 7
    %v3157 = vpop.permute.xlu0 %3156
    %3158 = vrot.lane.b32.xlu0 %v3068, 7
    %v3159 = vpop.permute.xlu0 %3158
    %3160 = vrot.lane.b32.xlu0 %v3069, 7
    %v3161 = vpop.permute.xlu0 %3160
    %3162 = vrot.lane.b32.xlu0 %v3070, 7
    %v3163 = vpop.permute.xlu0 %3162
    %3164 = vrot.lane.b32.xlu0 %v3071, 7
    %v3165 = vpop.permute.xlu0 %3164
    %3166 = vrot.lane.b32.xlu0 %v3072, 7
    %v3167 = vpop.permute.xlu0 %3166
    %3168 = vrot.lane.b32.xlu0 %v3073, 7
    %v3169 = vpop.permute.xlu0 %3168
    %v3178 = vsel %vm745, %v3131, %v3155
    %v3179 = vsel %vm745, %v3133, %v3157
    %v3180 = vsel %vm745, %v3135, %v3159
    %v3181 = vsel %vm745, %v3137, %v3161
    %v3182 = vsel %vm745, %v3139, %v3163
    %v3183 = vsel %vm745, %v3141, %v3165
    %v3184 = vsel %vm745, %v3143, %v3167
    %v3185 = vsel %vm745, %v3145, %v3169
    %vm3186 = vcmp.ge.f32.partialorder %v3178, %v2842
    %vm3187 = vcmp.ge.f32.partialorder %v3179, %v2843
    %vm3188 = vcmp.ge.f32.partialorder %v3180, %v2844
    %vm3189 = vcmp.ge.f32.partialorder %v3181, %v2845
    %vm3190 = vcmp.ge.f32.partialorder %v3182, %v2846
    %vm3191 = vcmp.ge.f32.partialorder %v3183, %v2847
    %vm3192 = vcmp.ge.f32.partialorder %v3184, %v2848
    %vm3193 = vcmp.ge.f32.partialorder %v3185, %v2849
    %v3194 = vsel %vm3186, 1, 0
    %v3195 = vsel %vm3187, 1, 0
    %v3196 = vsel %vm3188, 1, 0
    %v3197 = vsel %vm3189, 1, 0
    %v3198 = vsel %vm3190, 1, 0
    %v3199 = vsel %vm3191, 1, 0
    %v3200 = vsel %vm3192, 1, 0
    %v3201 = vsel %vm3193, 1, 0
    %v3202 = vcvt.s32.f32 %v3194
    %v3203 = vcvt.s32.f32 %v3195
    %v3204 = vcvt.s32.f32 %v3196
    %v3205 = vcvt.s32.f32 %v3197
    %v3206 = vcvt.s32.f32 %v3198
    %v3207 = vcvt.s32.f32 %v3199
    %v3208 = vcvt.s32.f32 %v3200
    %v3209 = vcvt.s32.f32 %v3201
    %v3210 = vadd.f32 %v3098, %v3202
    %v3211 = vadd.f32 %v3099, %v3203
    %v3212 = vadd.f32 %v3100, %v3204
    %v3213 = vadd.f32 %v3101, %v3205
    %v3214 = vadd.f32 %v3102, %v3206
    %v3215 = vadd.f32 %v3103, %v3207
    %v3216 = vadd.f32 %v3104, %v3208
    %v3217 = vadd.f32 %v3105, %v3209
    %v3218 = vmul.f32 %v3202, %v3178
    %v3219 = vmul.f32 %v3203, %v3179
    %v3220 = vmul.f32 %v3204, %v3180
    %v3221 = vmul.f32 %v3205, %v3181
    %v3222 = vmul.f32 %v3206, %v3182
    %v3223 = vmul.f32 %v3207, %v3183
    %v3224 = vmul.f32 %v3208, %v3184
    %v3225 = vmul.f32 %v3209, %v3185
    %v3226 = vadd.f32 %v3114, %v3218
    %v3227 = vadd.f32 %v3115, %v3219
    %v3228 = vadd.f32 %v3116, %v3220
    %v3229 = vadd.f32 %v3117, %v3221
    %v3230 = vadd.f32 %v3118, %v3222
    %v3231 = vadd.f32 %v3119, %v3223
    %v3232 = vadd.f32 %v3120, %v3224
    %v3233 = vadd.f32 %v3121, %v3225
    %3242 = vrot.lane.b32.xlu0 %v3178, 127
    %v3243 = vpop.permute.xlu0 %3242
    %3244 = vrot.lane.b32.xlu0 %v3179, 127
    %v3245 = vpop.permute.xlu0 %3244
    %3246 = vrot.lane.b32.xlu0 %v3180, 127
    %v3247 = vpop.permute.xlu0 %3246
    %3248 = vrot.lane.b32.xlu0 %v3181, 127
    %v3249 = vpop.permute.xlu0 %3248
    %3250 = vrot.lane.b32.xlu0 %v3182, 127
    %v3251 = vpop.permute.xlu0 %3250
    %3252 = vrot.lane.b32.xlu0 %v3183, 127
    %v3253 = vpop.permute.xlu0 %3252
    %3254 = vrot.lane.b32.xlu0 %v3184, 127
    %v3255 = vpop.permute.xlu0 %3254
    %3256 = vrot.lane.b32.xlu0 %v3185, 127
    %v3257 = vpop.permute.xlu0 %3256
    %3266 = vrot.lane.b32.xlu0 %v3178, 7
    %v3267 = vpop.permute.xlu0 %3266
    %3268 = vrot.lane.b32.xlu0 %v3179, 7
    %v3269 = vpop.permute.xlu0 %3268
    %3270 = vrot.lane.b32.xlu0 %v3180, 7
    %v3271 = vpop.permute.xlu0 %3270
    %3272 = vrot.lane.b32.xlu0 %v3181, 7
    %v3273 = vpop.permute.xlu0 %3272
    %3274 = vrot.lane.b32.xlu0 %v3182, 7
    %v3275 = vpop.permute.xlu0 %3274
    %3276 = vrot.lane.b32.xlu0 %v3183, 7
    %v3277 = vpop.permute.xlu0 %3276
    %3278 = vrot.lane.b32.xlu0 %v3184, 7
    %v3279 = vpop.permute.xlu0 %3278
    %3280 = vrot.lane.b32.xlu0 %v3185, 7
    %v3281 = vpop.permute.xlu0 %3280
    %v3290 = vsel %vm745, %v3243, %v3267
    %v3291 = vsel %vm745, %v3245, %v3269
    %v3292 = vsel %vm745, %v3247, %v3271
    %v3293 = vsel %vm745, %v3249, %v3273
    %v3294 = vsel %vm745, %v3251, %v3275
    %v3295 = vsel %vm745, %v3253, %v3277
    %v3296 = vsel %vm745, %v3255, %v3279
    %v3297 = vsel %vm745, %v3257, %v3281
    %vm3298 = vcmp.ge.f32.partialorder %v3290, %v2842
    %vm3299 = vcmp.ge.f32.partialorder %v3291, %v2843
    %vm3300 = vcmp.ge.f32.partialorder %v3292, %v2844
    %vm3301 = vcmp.ge.f32.partialorder %v3293, %v2845
    %vm3302 = vcmp.ge.f32.partialorder %v3294, %v2846
    %vm3303 = vcmp.ge.f32.partialorder %v3295, %v2847
    %vm3304 = vcmp.ge.f32.partialorder %v3296, %v2848
    %vm3305 = vcmp.ge.f32.partialorder %v3297, %v2849
    %v3306 = vsel %vm3298, 1, 0
    %v3307 = vsel %vm3299, 1, 0
    %v3308 = vsel %vm3300, 1, 0
    %v3309 = vsel %vm3301, 1, 0
    %v3310 = vsel %vm3302, 1, 0
    %v3311 = vsel %vm3303, 1, 0
    %v3312 = vsel %vm3304, 1, 0
    %v3313 = vsel %vm3305, 1, 0
    %v3314 = vcvt.s32.f32 %v3306
    %v3315 = vcvt.s32.f32 %v3307
    %v3316 = vcvt.s32.f32 %v3308
    %v3317 = vcvt.s32.f32 %v3309
    %v3318 = vcvt.s32.f32 %v3310
    %v3319 = vcvt.s32.f32 %v3311
    %v3320 = vcvt.s32.f32 %v3312
    %v3321 = vcvt.s32.f32 %v3313
    %v3322 = vadd.f32 %v3210, %v3314
    %v3323 = vadd.f32 %v3211, %v3315
    %v3324 = vadd.f32 %v3212, %v3316
    %v3325 = vadd.f32 %v3213, %v3317
    %v3326 = vadd.f32 %v3214, %v3318
    %v3327 = vadd.f32 %v3215, %v3319
    %v3328 = vadd.f32 %v3216, %v3320
    %v3329 = vadd.f32 %v3217, %v3321
    %v3330 = vmul.f32 %v3314, %v3290
    %v3331 = vmul.f32 %v3315, %v3291
    %v3332 = vmul.f32 %v3316, %v3292
    %v3333 = vmul.f32 %v3317, %v3293
    %v3334 = vmul.f32 %v3318, %v3294
    %v3335 = vmul.f32 %v3319, %v3295
    %v3336 = vmul.f32 %v3320, %v3296
    %v3337 = vmul.f32 %v3321, %v3297
    %v3338 = vadd.f32 %v3226, %v3330
    %v3339 = vadd.f32 %v3227, %v3331
    %v3340 = vadd.f32 %v3228, %v3332
    %v3341 = vadd.f32 %v3229, %v3333
    %v3342 = vadd.f32 %v3230, %v3334
    %v3343 = vadd.f32 %v3231, %v3335
    %v3344 = vadd.f32 %v3232, %v3336
    %v3345 = vadd.f32 %v3233, %v3337
    %3354 = vrot.lane.b32.xlu0 %v3290, 127
    %v3355 = vpop.permute.xlu0 %3354
    %3356 = vrot.lane.b32.xlu0 %v3291, 127
    %v3357 = vpop.permute.xlu0 %3356
    %3358 = vrot.lane.b32.xlu0 %v3292, 127
    %v3359 = vpop.permute.xlu0 %3358
    %3360 = vrot.lane.b32.xlu0 %v3293, 127
    %v3361 = vpop.permute.xlu0 %3360
    %3362 = vrot.lane.b32.xlu0 %v3294, 127
    %v3363 = vpop.permute.xlu0 %3362
    %3364 = vrot.lane.b32.xlu0 %v3295, 127
    %v3365 = vpop.permute.xlu0 %3364
    %3366 = vrot.lane.b32.xlu0 %v3296, 127
    %v3367 = vpop.permute.xlu0 %3366
    %3368 = vrot.lane.b32.xlu0 %v3297, 127
    %v3369 = vpop.permute.xlu0 %3368
    %3378 = vrot.lane.b32.xlu0 %v3290, 7
    %v3379 = vpop.permute.xlu0 %3378
    %3380 = vrot.lane.b32.xlu0 %v3291, 7
    %v3381 = vpop.permute.xlu0 %3380
    %3382 = vrot.lane.b32.xlu0 %v3292, 7
    %v3383 = vpop.permute.xlu0 %3382
    %3384 = vrot.lane.b32.xlu0 %v3293, 7
    %v3385 = vpop.permute.xlu0 %3384
    %3386 = vrot.lane.b32.xlu0 %v3294, 7
    %v3387 = vpop.permute.xlu0 %3386
    %3388 = vrot.lane.b32.xlu0 %v3295, 7
    %v3389 = vpop.permute.xlu0 %3388
    %3390 = vrot.lane.b32.xlu0 %v3296, 7
    %v3391 = vpop.permute.xlu0 %3390
    %3392 = vrot.lane.b32.xlu0 %v3297, 7
    %v3393 = vpop.permute.xlu0 %3392
    %v3402 = vsel %vm745, %v3355, %v3379
    %v3403 = vsel %vm745, %v3357, %v3381
    %v3404 = vsel %vm745, %v3359, %v3383
    %v3405 = vsel %vm745, %v3361, %v3385
    %v3406 = vsel %vm745, %v3363, %v3387
    %v3407 = vsel %vm745, %v3365, %v3389
    %v3408 = vsel %vm745, %v3367, %v3391
    %v3409 = vsel %vm745, %v3369, %v3393
    %vm3410 = vcmp.ge.f32.partialorder %v3402, %v2842
    %vm3411 = vcmp.ge.f32.partialorder %v3403, %v2843
    %vm3412 = vcmp.ge.f32.partialorder %v3404, %v2844
    %vm3413 = vcmp.ge.f32.partialorder %v3405, %v2845
    %vm3414 = vcmp.ge.f32.partialorder %v3406, %v2846
    %vm3415 = vcmp.ge.f32.partialorder %v3407, %v2847
    %vm3416 = vcmp.ge.f32.partialorder %v3408, %v2848
    %vm3417 = vcmp.ge.f32.partialorder %v3409, %v2849
    %v3418 = vsel %vm3410, 1, 0
    %v3419 = vsel %vm3411, 1, 0
    %v3420 = vsel %vm3412, 1, 0
    %v3421 = vsel %vm3413, 1, 0
    %v3422 = vsel %vm3414, 1, 0
    %v3423 = vsel %vm3415, 1, 0
    %v3424 = vsel %vm3416, 1, 0
    %v3425 = vsel %vm3417, 1, 0
    %v3426 = vcvt.s32.f32 %v3418
    %v3427 = vcvt.s32.f32 %v3419
    %v3428 = vcvt.s32.f32 %v3420
    %v3429 = vcvt.s32.f32 %v3421
    %v3430 = vcvt.s32.f32 %v3422
    %v3431 = vcvt.s32.f32 %v3423
    %v3432 = vcvt.s32.f32 %v3424
    %v3433 = vcvt.s32.f32 %v3425
    %v3434 = vadd.f32 %v3322, %v3426
    %v3435 = vadd.f32 %v3323, %v3427
    %v3436 = vadd.f32 %v3324, %v3428
    %v3437 = vadd.f32 %v3325, %v3429
    %v3438 = vadd.f32 %v3326, %v3430
    %v3439 = vadd.f32 %v3327, %v3431
    %v3440 = vadd.f32 %v3328, %v3432
    %v3441 = vadd.f32 %v3329, %v3433
    %v3442 = vmul.f32 %v3426, %v3402
    %v3443 = vmul.f32 %v3427, %v3403
    %v3444 = vmul.f32 %v3428, %v3404
    %v3445 = vmul.f32 %v3429, %v3405
    %v3446 = vmul.f32 %v3430, %v3406
    %v3447 = vmul.f32 %v3431, %v3407
    %v3448 = vmul.f32 %v3432, %v3408
    %v3449 = vmul.f32 %v3433, %v3409
    %v3450 = vadd.f32 %v3338, %v3442
    %v3451 = vadd.f32 %v3339, %v3443
    %v3452 = vadd.f32 %v3340, %v3444
    %v3453 = vadd.f32 %v3341, %v3445
    %v3454 = vadd.f32 %v3342, %v3446
    %v3455 = vadd.f32 %v3343, %v3447
    %v3456 = vadd.f32 %v3344, %v3448
    %v3457 = vadd.f32 %v3345, %v3449
    %3466 = vrot.lane.b32.xlu0 %v3402, 127
    %v3467 = vpop.permute.xlu0 %3466
    %3468 = vrot.lane.b32.xlu0 %v3403, 127
    %v3469 = vpop.permute.xlu0 %3468
    %3470 = vrot.lane.b32.xlu0 %v3404, 127
    %v3471 = vpop.permute.xlu0 %3470
    %3472 = vrot.lane.b32.xlu0 %v3405, 127
    %v3473 = vpop.permute.xlu0 %3472
    %3474 = vrot.lane.b32.xlu0 %v3406, 127
    %v3475 = vpop.permute.xlu0 %3474
    %3476 = vrot.lane.b32.xlu0 %v3407, 127
    %v3477 = vpop.permute.xlu0 %3476
    %3478 = vrot.lane.b32.xlu0 %v3408, 127
    %v3479 = vpop.permute.xlu0 %3478
    %3480 = vrot.lane.b32.xlu0 %v3409, 127
    %v3481 = vpop.permute.xlu0 %3480
    %3490 = vrot.lane.b32.xlu0 %v3402, 7
    %v3491 = vpop.permute.xlu0 %3490
    %3492 = vrot.lane.b32.xlu0 %v3403, 7
    %v3493 = vpop.permute.xlu0 %3492
    %3494 = vrot.lane.b32.xlu0 %v3404, 7
    %v3495 = vpop.permute.xlu0 %3494
    %3496 = vrot.lane.b32.xlu0 %v3405, 7
    %v3497 = vpop.permute.xlu0 %3496
    %3498 = vrot.lane.b32.xlu0 %v3406, 7
    %v3499 = vpop.permute.xlu0 %3498
    %3500 = vrot.lane.b32.xlu0 %v3407, 7
    %v3501 = vpop.permute.xlu0 %3500
    %3502 = vrot.lane.b32.xlu0 %v3408, 7
    %v3503 = vpop.permute.xlu0 %3502
    %3504 = vrot.lane.b32.xlu0 %v3409, 7
    %v3505 = vpop.permute.xlu0 %3504
    %v3514 = vsel %vm745, %v3467, %v3491
    %v3515 = vsel %vm745, %v3469, %v3493
    %v3516 = vsel %vm745, %v3471, %v3495
    %v3517 = vsel %vm745, %v3473, %v3497
    %v3518 = vsel %vm745, %v3475, %v3499
    %v3519 = vsel %vm745, %v3477, %v3501
    %v3520 = vsel %vm745, %v3479, %v3503
    %v3521 = vsel %vm745, %v3481, %v3505
    %vm3522 = vcmp.ge.f32.partialorder %v3514, %v2842
    %vm3523 = vcmp.ge.f32.partialorder %v3515, %v2843
    %vm3524 = vcmp.ge.f32.partialorder %v3516, %v2844
    %vm3525 = vcmp.ge.f32.partialorder %v3517, %v2845
    %vm3526 = vcmp.ge.f32.partialorder %v3518, %v2846
    %vm3527 = vcmp.ge.f32.partialorder %v3519, %v2847
    %vm3528 = vcmp.ge.f32.partialorder %v3520, %v2848
    %vm3529 = vcmp.ge.f32.partialorder %v3521, %v2849
    %v3530 = vsel %vm3522, 1, 0
    %v3531 = vsel %vm3523, 1, 0
    %v3532 = vsel %vm3524, 1, 0
    %v3533 = vsel %vm3525, 1, 0
    %v3534 = vsel %vm3526, 1, 0
    %v3535 = vsel %vm3527, 1, 0
    %v3536 = vsel %vm3528, 1, 0
    %v3537 = vsel %vm3529, 1, 0
    %v3538 = vcvt.s32.f32 %v3530
    %v3539 = vcvt.s32.f32 %v3531
    %v3540 = vcvt.s32.f32 %v3532
    %v3541 = vcvt.s32.f32 %v3533
    %v3542 = vcvt.s32.f32 %v3534
    %v3543 = vcvt.s32.f32 %v3535
    %v3544 = vcvt.s32.f32 %v3536
    %v3545 = vcvt.s32.f32 %v3537
    %v3546 = vadd.f32 %v3434, %v3538
    %v3547 = vadd.f32 %v3435, %v3539
    %v3548 = vadd.f32 %v3436, %v3540
    %v3549 = vadd.f32 %v3437, %v3541
    %v3550 = vadd.f32 %v3438, %v3542
    %v3551 = vadd.f32 %v3439, %v3543
    %v3552 = vadd.f32 %v3440, %v3544
    %v3553 = vadd.f32 %v3441, %v3545
    %v3554 = vmul.f32 %v3538, %v3514
    %v3555 = vmul.f32 %v3539, %v3515
    %v3556 = vmul.f32 %v3540, %v3516
    %v3557 = vmul.f32 %v3541, %v3517
    %v3558 = vmul.f32 %v3542, %v3518
    %v3559 = vmul.f32 %v3543, %v3519
    %v3560 = vmul.f32 %v3544, %v3520
    %v3561 = vmul.f32 %v3545, %v3521
    %v3562 = vadd.f32 %v3450, %v3554
    %v3563 = vadd.f32 %v3451, %v3555
    %v3564 = vadd.f32 %v3452, %v3556
    %v3565 = vadd.f32 %v3453, %v3557
    %v3566 = vadd.f32 %v3454, %v3558
    %v3567 = vadd.f32 %v3455, %v3559
    %v3568 = vadd.f32 %v3456, %v3560
    %v3569 = vadd.f32 %v3457, %v3561
    %3578 = vrot.lane.b32.xlu0 %v3514, 127
    %v3579 = vpop.permute.xlu0 %3578
    %3580 = vrot.lane.b32.xlu0 %v3515, 127
    %v3581 = vpop.permute.xlu0 %3580
    %3582 = vrot.lane.b32.xlu0 %v3516, 127
    %v3583 = vpop.permute.xlu0 %3582
    %3584 = vrot.lane.b32.xlu0 %v3517, 127
    %v3585 = vpop.permute.xlu0 %3584
    %3586 = vrot.lane.b32.xlu0 %v3518, 127
    %v3587 = vpop.permute.xlu0 %3586
    %3588 = vrot.lane.b32.xlu0 %v3519, 127
    %v3589 = vpop.permute.xlu0 %3588
    %3590 = vrot.lane.b32.xlu0 %v3520, 127
    %v3591 = vpop.permute.xlu0 %3590
    %3592 = vrot.lane.b32.xlu0 %v3521, 127
    %v3593 = vpop.permute.xlu0 %3592
    %3602 = vrot.lane.b32.xlu0 %v3514, 7
    %v3603 = vpop.permute.xlu0 %3602
    %3604 = vrot.lane.b32.xlu0 %v3515, 7
    %v3605 = vpop.permute.xlu0 %3604
    %3606 = vrot.lane.b32.xlu0 %v3516, 7
    %v3607 = vpop.permute.xlu0 %3606
    %3608 = vrot.lane.b32.xlu0 %v3517, 7
    %v3609 = vpop.permute.xlu0 %3608
    %3610 = vrot.lane.b32.xlu0 %v3518, 7
    %v3611 = vpop.permute.xlu0 %3610
    %3612 = vrot.lane.b32.xlu0 %v3519, 7
    %v3613 = vpop.permute.xlu0 %3612
    %3614 = vrot.lane.b32.xlu0 %v3520, 7
    %v3615 = vpop.permute.xlu0 %3614
    %3616 = vrot.lane.b32.xlu0 %v3521, 7
    %v3617 = vpop.permute.xlu0 %3616
    %v3626 = vsel %vm745, %v3579, %v3603
    %v3627 = vsel %vm745, %v3581, %v3605
    %v3628 = vsel %vm745, %v3583, %v3607
    %v3629 = vsel %vm745, %v3585, %v3609
    %v3630 = vsel %vm745, %v3587, %v3611
    %v3631 = vsel %vm745, %v3589, %v3613
    %v3632 = vsel %vm745, %v3591, %v3615
    %v3633 = vsel %vm745, %v3593, %v3617
    %vm3634 = vcmp.ge.f32.partialorder %v3626, %v2842
    %vm3635 = vcmp.ge.f32.partialorder %v3627, %v2843
    %vm3636 = vcmp.ge.f32.partialorder %v3628, %v2844
    %vm3637 = vcmp.ge.f32.partialorder %v3629, %v2845
    %vm3638 = vcmp.ge.f32.partialorder %v3630, %v2846
    %vm3639 = vcmp.ge.f32.partialorder %v3631, %v2847
    %vm3640 = vcmp.ge.f32.partialorder %v3632, %v2848
    %vm3641 = vcmp.ge.f32.partialorder %v3633, %v2849
    %v3642 = vsel %vm3634, 1, 0
    %v3643 = vsel %vm3635, 1, 0
    %v3644 = vsel %vm3636, 1, 0
    %v3645 = vsel %vm3637, 1, 0
    %v3646 = vsel %vm3638, 1, 0
    %v3647 = vsel %vm3639, 1, 0
    %v3648 = vsel %vm3640, 1, 0
    %v3649 = vsel %vm3641, 1, 0
    %v3650 = vcvt.s32.f32 %v3642
    %v3651 = vcvt.s32.f32 %v3643
    %v3652 = vcvt.s32.f32 %v3644
    %v3653 = vcvt.s32.f32 %v3645
    %v3654 = vcvt.s32.f32 %v3646
    %v3655 = vcvt.s32.f32 %v3647
    %v3656 = vcvt.s32.f32 %v3648
    %v3657 = vcvt.s32.f32 %v3649
    %v3658 = vadd.f32 %v3546, %v3650
    %v3659 = vadd.f32 %v3547, %v3651
    %v3660 = vadd.f32 %v3548, %v3652
    %v3661 = vadd.f32 %v3549, %v3653
    %v3662 = vadd.f32 %v3550, %v3654
    %v3663 = vadd.f32 %v3551, %v3655
    %v3664 = vadd.f32 %v3552, %v3656
    %v3665 = vadd.f32 %v3553, %v3657
    %v3666 = vmul.f32 %v3650, %v3626
    %v3667 = vmul.f32 %v3651, %v3627
    %v3668 = vmul.f32 %v3652, %v3628
    %v3669 = vmul.f32 %v3653, %v3629
    %v3670 = vmul.f32 %v3654, %v3630
    %v3671 = vmul.f32 %v3655, %v3631
    %v3672 = vmul.f32 %v3656, %v3632
    %v3673 = vmul.f32 %v3657, %v3633
    %v3674 = vadd.f32 %v3562, %v3666
    %v3675 = vadd.f32 %v3563, %v3667
    %v3676 = vadd.f32 %v3564, %v3668
    %v3677 = vadd.f32 %v3565, %v3669
    %v3678 = vadd.f32 %v3566, %v3670
    %v3679 = vadd.f32 %v3567, %v3671
    %v3680 = vadd.f32 %v3568, %v3672
    %v3681 = vadd.f32 %v3569, %v3673
    %v3682 = vmul.f32 %v3658, %v2842
    %v3683 = vmul.f32 %v3659, %v2843
    %v3684 = vmul.f32 %v3660, %v2844
    %v3685 = vmul.f32 %v3661, %v2845
    %v3686 = vmul.f32 %v3662, %v2846
    %v3687 = vmul.f32 %v3663, %v2847
    %v3688 = vmul.f32 %v3664, %v2848
    %v3689 = vmul.f32 %v3665, %v2849
    %v3690 = vadd.f32 %v3682, 1.0
    %v3691 = vadd.f32 %v3683, 1.0
    %v3692 = vadd.f32 %v3684, 1.0
    %v3693 = vadd.f32 %v3685, 1.0
    %v3694 = vadd.f32 %v3686, 1.0
    %v3695 = vadd.f32 %v3687, 1.0
    %v3696 = vadd.f32 %v3688, 1.0
    %v3697 = vadd.f32 %v3689, 1.0
    %vm3698 = vcmp.gt.f32.partialorder %v3690, %v3674
    %vm3699 = vcmp.gt.f32.partialorder %v3691, %v3675
    %vm3700 = vcmp.gt.f32.partialorder %v3692, %v3676
    %vm3701 = vcmp.gt.f32.partialorder %v3693, %v3677
    %vm3702 = vcmp.gt.f32.partialorder %v3694, %v3678
    %vm3703 = vcmp.gt.f32.partialorder %v3695, %v3679
    %vm3704 = vcmp.gt.f32.partialorder %v3696, %v3680
    %vm3705 = vcmp.gt.f32.partialorder %v3697, %v3681
    %v3706 = vsel %vm3698, 1, 0
    %v3707 = vsel %vm3699, 1, 0
    %v3708 = vsel %vm3700, 1, 0
    %v3709 = vsel %vm3701, 1, 0
    %v3710 = vsel %vm3702, 1, 0
    %v3711 = vsel %vm3703, 1, 0
    %v3712 = vsel %vm3704, 1, 0
    %v3713 = vsel %vm3705, 1, 0
    %v3714 = vcvt.s32.f32 %v3706
    %v3715 = vcvt.s32.f32 %v3707
    %v3716 = vcvt.s32.f32 %v3708
    %v3717 = vcvt.s32.f32 %v3709
    %v3718 = vcvt.s32.f32 %v3710
    %v3719 = vcvt.s32.f32 %v3711
    %v3720 = vcvt.s32.f32 %v3712
    %v3721 = vcvt.s32.f32 %v3713
    %v3722 = vsel %vm238, %v3714, 0.0
    %3723 = vadd.xlane.f32.xlu0 %v3722
    %v3724 = vpop.xlane.xlu0 %3723
    %v3725 = vsel %vm238, %v3715, 0.0
    %3726 = vadd.xlane.f32.xlu0 %v3725
    %v3727 = vpop.xlane.xlu0 %3726
    %v3728 = vsel %vm238, %v3716, 0.0
    %3729 = vadd.xlane.f32.xlu0 %v3728
    %v3730 = vpop.xlane.xlu0 %3729
    %v3731 = vsel %vm238, %v3717, 0.0
    %3732 = vadd.xlane.f32.xlu0 %v3731
    %v3733 = vpop.xlane.xlu0 %3732
    %v3734 = vsel %vm238, %v3718, 0.0
    %3735 = vadd.xlane.f32.xlu0 %v3734
    %v3736 = vpop.xlane.xlu0 %3735
    %v3737 = vsel %vm238, %v3719, 0.0
    %3738 = vadd.xlane.f32.xlu0 %v3737
    %v3739 = vpop.xlane.xlu0 %3738
    %v3740 = vsel %vm238, %v3720, 0.0
    %3741 = vadd.xlane.f32.xlu0 %v3740
    %v3742 = vpop.xlane.xlu0 %3741
    %v3743 = vsel %vm238, %v3721, 0.0
    %3744 = vadd.xlane.f32.xlu0 %v3743
    %v3745 = vpop.xlane.xlu0 %3744
    %v3746 = vsel %vm3698, %v2842, 0.0
    %v3747 = vsel %vm3699, %v2843, 0.0
    %v3748 = vsel %vm3700, %v2844, 0.0
    %v3749 = vsel %vm3701, %v2845, 0.0
    %v3750 = vsel %vm3702, %v2846, 0.0
    %v3751 = vsel %vm3703, %v2847, 0.0
    %v3752 = vsel %vm3704, %v2848, 0.0
    %v3753 = vsel %vm3705, %v2849, 0.0
    %v3754 = vsel %vm238, %v3746, 0.0
    %3755 = vadd.xlane.f32.xlu0 %v3754
    %v3756 = vpop.xlane.xlu0 %3755
    %v3757 = vsel %vm238, %v3747, 0.0
    %3758 = vadd.xlane.f32.xlu0 %v3757
    %v3759 = vpop.xlane.xlu0 %3758
    %v3760 = vsel %vm238, %v3748, 0.0
    %3761 = vadd.xlane.f32.xlu0 %v3760
    %v3762 = vpop.xlane.xlu0 %3761
    %v3763 = vsel %vm238, %v3749, 0.0
    %3764 = vadd.xlane.f32.xlu0 %v3763
    %v3765 = vpop.xlane.xlu0 %3764
    %v3766 = vsel %vm238, %v3750, 0.0
    %3767 = vadd.xlane.f32.xlu0 %v3766
    %v3768 = vpop.xlane.xlu0 %3767
    %v3769 = vsel %vm238, %v3751, 0.0
    %3770 = vadd.xlane.f32.xlu0 %v3769
    %v3771 = vpop.xlane.xlu0 %3770
    %v3772 = vsel %vm238, %v3752, 0.0
    %3773 = vadd.xlane.f32.xlu0 %v3772
    %v3774 = vpop.xlane.xlu0 %3773
    %v3775 = vsel %vm238, %v3753, 0.0
    %3776 = vadd.xlane.f32.xlu0 %v3775
    %v3777 = vpop.xlane.xlu0 %3776
    %v3778 = vsub.f32 %v3756, 1.0
    %v3779 = vsub.f32 %v3759, 1.0
    %v3780 = vsub.f32 %v3762, 1.0
    %v3781 = vsub.f32 %v3765, 1.0
    %v3782 = vsub.f32 %v3768, 1.0
    %v3783 = vsub.f32 %v3771, 1.0
    %v3784 = vsub.f32 %v3774, 1.0
    %v3785 = vsub.f32 %v3777, 1.0
    %v3786 = vrcp.pop %v3724
    %v3787 = vmul.f32 %v3778, %v3786
    %v3788 = vrcp.pop %v3727
    %v3789 = vmul.f32 %v3779, %v3788
    %v3790 = vrcp.pop %v3730
    %v3791 = vmul.f32 %v3780, %v3790
    %v3792 = vrcp.pop %v3733
    %v3793 = vmul.f32 %v3781, %v3792
    %v3794 = vrcp.pop %v3736
    %v3795 = vmul.f32 %v3782, %v3794
    %v3796 = vrcp.pop %v3739
    %v3797 = vmul.f32 %v3783, %v3796
    %v3798 = vrcp.pop %v3742
    %v3799 = vmul.f32 %v3784, %v3798
    %v3800 = vrcp.pop %v3745
    %v3801 = vmul.f32 %v3785, %v3800
    %v3802 = vsub.f32 %v2842, %v3787
    %v3803 = vsub.f32 %v2843, %v3789
    %v3804 = vsub.f32 %v2844, %v3791
    %v3805 = vsub.f32 %v2845, %v3793
    %v3806 = vsub.f32 %v2846, %v3795
    %v3807 = vsub.f32 %v2847, %v3797
    %v3808 = vsub.f32 %v2848, %v3799
    %v3809 = vsub.f32 %v2849, %v3801
    %v3810 = vmax.f32 %v3802, 0.0
    %v3811 = vmax.f32 %v3803, 0.0
    %v3812 = vmax.f32 %v3804, 0.0
    %v3813 = vmax.f32 %v3805, 0.0
    %v3814 = vmax.f32 %v3806, 0.0
    %v3815 = vmax.f32 %v3807, 0.0
    %v3816 = vmax.f32 %v3808, 0.0
    %v3817 = vmax.f32 %v3809, 0.0
    %3818 = vst.msk [vmem:[#allocation10] sm:$0xff] %vm238, %v3810
    %3819 = vst.msk [vmem:[#allocation10 + $0x8] sm:$0xff] %vm238, %v3811
    %3820 = vst.msk [vmem:[#allocation10 + $0x10] sm:$0xff] %vm238, %v3812
    %3821 = vst.msk [vmem:[#allocation10 + $0x18] sm:$0xff] %vm238, %v3813
    %3822 = vst.msk [vmem:[#allocation10 + $0x20] sm:$0xff] %vm238, %v3814
    %3823 = vst.msk [vmem:[#allocation10 + $0x28] sm:$0xff] %vm238, %v3815
    %3824 = vst.msk [vmem:[#allocation10 + $0x30] sm:$0xff] %vm238, %v3816
    %3825 = vst.msk [vmem:[#allocation10 + $0x38] sm:$0xff] %vm238, %v3817
    %v3826 = vpack.c.bf16 %v3810, %v3810
    %v3827 = vpack.c.bf16 %v3811, %v3811
    %v3828 = vpack.c.bf16 %v3812, %v3812
    %v3829 = vpack.c.bf16 %v3813, %v3813
    %v3830 = vpack.c.bf16 %v3814, %v3814
    %v3831 = vpack.c.bf16 %v3815, %v3815
    %v3832 = vpack.c.bf16 %v3816, %v3816
    %v3833 = vpack.c.bf16 %v3817, %v3817
    %3834 = vrot.lane.b32.xlu0 %v2432, 64
    %v3835 = vpop.permute.xlu0 %3834
    %v3837 = vsel %vm238, %v3826, 0
    %v3840 = vsel %vm1631, %v3835, 0
    %3842 = vmatprep.subr.bf16.mxu0 0
    %3843 = vmatpush1.bf16.msra.mxu0 0
    %3844 = vmatprep.subr.bf16.mxu0 0
    %3845 = vmatpush1.bf16.msra.mxu0 0
    %3846 = vmatprep.subr.bf16.mxu0 0
    %3847 = vmatpush1.bf16.msra.mxu0 0
    %3848 = vmatprep.subr.bf16.mxu0 0
    %3849 = vmatpush1.bf16.msra.mxu0 0
    %3850 = vmatprep.subr.bf16.mxu0 0
    %3851 = vmatpush1.bf16.msra.mxu0 0
    %3852 = vmatprep.subr.bf16.mxu0 0
    %3853 = vmatpush1.bf16.msra.mxu0 0
    %3854 = vmatprep.subr.bf16.mxu0 0
    %3855 = vmatpush1.bf16.msra.mxu0 0
    %3856 = vmatprep.subr.bf16.mxu0 0
    %3857 = vmatpush1.bf16.msra.mxu0 %v3840
    %3858 = vmatprep.subr.bf16.mxu0 0
    %3859 = vmatpush2.bf16.msra.mxu0 0
    %3860 = vmatprep.subr.bf16.mxu0 0
    %3861 = vmatpush2.bf16.msra.mxu0 0
    %3862 = vmatprep.subr.bf16.mxu0 0
    %3863 = vmatpush2.bf16.msra.mxu0 0
    %3864 = vmatprep.subr.bf16.mxu0 0
    %3865 = vmatpush2.bf16.msra.mxu0 0
    %3866 = vmatprep.subr.bf16.mxu0 0
    %3867 = vmatpush2.bf16.msra.mxu0 0
    %3868 = vmatprep.subr.bf16.mxu0 0
    %3869 = vmatpush2.bf16.msra.mxu0 0
    %3870 = vmatprep.subr.bf16.mxu0 0
    %3871 = vmatpush2.bf16.msra.mxu0 0
    %3872 = vmatprep.subr.bf16.mxu0 0
    %3873 = vmatpush2.bf16.msra.mxu0 0
    %3874 = vmatprep.mubr.bf16.mxu0 0
    %3875 = vmatmul.mubr.bf16.gmra.mxu0 %v3837
    %v3876 = vpop.f32.mrf.mxu0
    %v3877 = vadd.f32 0.0, %v3876
    %v3878 = vpop.f32.mrf.mxu0
    %v3879 = vpop.f32.mrf.mxu0
    %v3880 = vpop.f32.mrf.mxu0
    %3881 = vdwg.mxu0
    %3882 = vrot.lane.b32.xlu0 %v2495, 64
    %v3883 = vpop.permute.xlu0 %3882
    %v3885 = vsel %vm238, %v3827, 0
    %v3888 = vsel %vm1631, %v3883, 0
    %3890 = vmatprep.subr.bf16.mxu0 0
    %3891 = vmatpush1.bf16.msra.mxu0 0
    %3892 = vmatprep.subr.bf16.mxu0 0
    %3893 = vmatpush1.bf16.msra.mxu0 0
    %3894 = vmatprep.subr.bf16.mxu0 0
    %3895 = vmatpush1.bf16.msra.mxu0 0
    %3896 = vmatprep.subr.bf16.mxu0 0
    %3897 = vmatpush1.bf16.msra.mxu0 0
    %3898 = vmatprep.subr.bf16.mxu0 0
    %3899 = vmatpush1.bf16.msra.mxu0 0
    %3900 = vmatprep.subr.bf16.mxu0 0
    %3901 = vmatpush1.bf16.msra.mxu0 0
    %3902 = vmatprep.subr.bf16.mxu0 0
    %3903 = vmatpush1.bf16.msra.mxu0 0
    %3904 = vmatprep.subr.bf16.mxu0 0
    %3905 = vmatpush1.bf16.msra.mxu0 %v3888
    %3906 = vmatprep.subr.bf16.mxu0 0
    %3907 = vmatpush2.bf16.msra.mxu0 0
    %3908 = vmatprep.subr.bf16.mxu0 0
    %3909 = vmatpush2.bf16.msra.mxu0 0
    %3910 = vmatprep.subr.bf16.mxu0 0
    %3911 = vmatpush2.bf16.msra.mxu0 0
    %3912 = vmatprep.subr.bf16.mxu0 0
    %3913 = vmatpush2.bf16.msra.mxu0 0
    %3914 = vmatprep.subr.bf16.mxu0 0
    %3915 = vmatpush2.bf16.msra.mxu0 0
    %3916 = vmatprep.subr.bf16.mxu0 0
    %3917 = vmatpush2.bf16.msra.mxu0 0
    %3918 = vmatprep.subr.bf16.mxu0 0
    %3919 = vmatpush2.bf16.msra.mxu0 0
    %3920 = vmatprep.subr.bf16.mxu0 0
    %3921 = vmatpush2.bf16.msra.mxu0 0
    %3922 = vmatprep.mubr.bf16.mxu0 0
    %3923 = vmatmul.mubr.bf16.gmra.mxu0 %v3885
    %v3924 = vpop.f32.mrf.mxu0
    %v3925 = vadd.f32 0.0, %v3924
    %v3926 = vpop.f32.mrf.mxu0
    %v3927 = vpop.f32.mrf.mxu0
    %v3928 = vpop.f32.mrf.mxu0
    %3929 = vdwg.mxu0
    %3930 = vrot.lane.b32.xlu0 %v2545, 64
    %v3931 = vpop.permute.xlu0 %3930
    %v3933 = vsel %vm238, %v3828, 0
    %v3936 = vsel %vm1631, %v3931, 0
    %3938 = vmatprep.subr.bf16.mxu0 0
    %3939 = vmatpush1.bf16.msra.mxu0 0
    %3940 = vmatprep.subr.bf16.mxu0 0
    %3941 = vmatpush1.bf16.msra.mxu0 0
    %3942 = vmatprep.subr.bf16.mxu0 0
    %3943 = vmatpush1.bf16.msra.mxu0 0
    %3944 = vmatprep.subr.bf16.mxu0 0
    %3945 = vmatpush1.bf16.msra.mxu0 0
    %3946 = vmatprep.subr.bf16.mxu0 0
    %3947 = vmatpush1.bf16.msra.mxu0 0
    %3948 = vmatprep.subr.bf16.mxu0 0
    %3949 = vmatpush1.bf16.msra.mxu0 0
    %3950 = vmatprep.subr.bf16.mxu0 0
    %3951 = vmatpush1.bf16.msra.mxu0 0
    %3952 = vmatprep.subr.bf16.mxu0 0
    %3953 = vmatpush1.bf16.msra.mxu0 %v3936
    %3954 = vmatprep.subr.bf16.mxu0 0
    %3955 = vmatpush2.bf16.msra.mxu0 0
    %3956 = vmatprep.subr.bf16.mxu0 0
    %3957 = vmatpush2.bf16.msra.mxu0 0
    %3958 = vmatprep.subr.bf16.mxu0 0
    %3959 = vmatpush2.bf16.msra.mxu0 0
    %3960 = vmatprep.subr.bf16.mxu0 0
    %3961 = vmatpush2.bf16.msra.mxu0 0
    %3962 = vmatprep.subr.bf16.mxu0 0
    %3963 = vmatpush2.bf16.msra.mxu0 0
    %3964 = vmatprep.subr.bf16.mxu0 0
    %3965 = vmatpush2.bf16.msra.mxu0 0
    %3966 = vmatprep.subr.bf16.mxu0 0
    %3967 = vmatpush2.bf16.msra.mxu0 0
    %3968 = vmatprep.subr.bf16.mxu0 0
    %3969 = vmatpush2.bf16.msra.mxu0 0
    %3970 = vmatprep.mubr.bf16.mxu0 0
    %3971 = vmatmul.mubr.bf16.gmra.mxu0 %v3933
    %v3972 = vpop.f32.mrf.mxu0
    %v3973 = vadd.f32 0.0, %v3972
    %v3974 = vpop.f32.mrf.mxu0
    %v3975 = vpop.f32.mrf.mxu0
    %v3976 = vpop.f32.mrf.mxu0
    %3977 = vdwg.mxu0
    %3978 = vrot.lane.b32.xlu0 %v2595, 64
    %v3979 = vpop.permute.xlu0 %3978
    %v3981 = vsel %vm238, %v3829, 0
    %v3984 = vsel %vm1631, %v3979, 0
    %3986 = vmatprep.subr.bf16.mxu0 0
    %3987 = vmatpush1.bf16.msra.mxu0 0
    %3988 = vmatprep.subr.bf16.mxu0 0
    %3989 = vmatpush1.bf16.msra.mxu0 0
    %3990 = vmatprep.subr.bf16.mxu0 0
    %3991 = vmatpush1.bf16.msra.mxu0 0
    %3992 = vmatprep.subr.bf16.mxu0 0
    %3993 = vmatpush1.bf16.msra.mxu0 0
    %3994 = vmatprep.subr.bf16.mxu0 0
    %3995 = vmatpush1.bf16.msra.mxu0 0
    %3996 = vmatprep.subr.bf16.mxu0 0
    %3997 = vmatpush1.bf16.msra.mxu0 0
    %3998 = vmatprep.subr.bf16.mxu0 0
    %3999 = vmatpush1.bf16.msra.mxu0 0
    %4000 = vmatprep.subr.bf16.mxu0 0
    %4001 = vmatpush1.bf16.msra.mxu0 %v3984
    %4002 = vmatprep.subr.bf16.mxu0 0
    %4003 = vmatpush2.bf16.msra.mxu0 0
    %4004 = vmatprep.subr.bf16.mxu0 0
    %4005 = vmatpush2.bf16.msra.mxu0 0
    %4006 = vmatprep.subr.bf16.mxu0 0
    %4007 = vmatpush2.bf16.msra.mxu0 0
    %4008 = vmatprep.subr.bf16.mxu0 0
    %4009 = vmatpush2.bf16.msra.mxu0 0
    %4010 = vmatprep.subr.bf16.mxu0 0
    %4011 = vmatpush2.bf16.msra.mxu0 0
    %4012 = vmatprep.subr.bf16.mxu0 0
    %4013 = vmatpush2.bf16.msra.mxu0 0
    %4014 = vmatprep.subr.bf16.mxu0 0
    %4015 = vmatpush2.bf16.msra.mxu0 0
    %4016 = vmatprep.subr.bf16.mxu0 0
    %4017 = vmatpush2.bf16.msra.mxu0 0
    %4018 = vmatprep.mubr.bf16.mxu0 0
    %4019 = vmatmul.mubr.bf16.gmra.mxu0 %v3981
    %v4020 = vpop.f32.mrf.mxu0
    %v4021 = vadd.f32 0.0, %v4020
    %v4022 = vpop.f32.mrf.mxu0
    %v4023 = vpop.f32.mrf.mxu0
    %v4024 = vpop.f32.mrf.mxu0
    %4025 = vdwg.mxu0
    %4026 = vrot.lane.b32.xlu0 %v2433, 64
    %v4027 = vpop.permute.xlu0 %4026
    %v4029 = vsel %vm238, %v3830, 0
    %v4032 = vsel %vm1631, %v4027, 0
    %4034 = vmatprep.subr.bf16.mxu0 0
    %4035 = vmatpush1.bf16.msra.mxu0 0
    %4036 = vmatprep.subr.bf16.mxu0 0
    %4037 = vmatpush1.bf16.msra.mxu0 0
    %4038 = vmatprep.subr.bf16.mxu0 0
    %4039 = vmatpush1.bf16.msra.mxu0 0
    %4040 = vmatprep.subr.bf16.mxu0 0
    %4041 = vmatpush1.bf16.msra.mxu0 0
    %4042 = vmatprep.subr.bf16.mxu0 0
    %4043 = vmatpush1.bf16.msra.mxu0 0
    %4044 = vmatprep.subr.bf16.mxu0 0
    %4045 = vmatpush1.bf16.msra.mxu0 0
    %4046 = vmatprep.subr.bf16.mxu0 0
    %4047 = vmatpush1.bf16.msra.mxu0 0
    %4048 = vmatprep.subr.bf16.mxu0 0
    %4049 = vmatpush1.bf16.msra.mxu0 %v4032
    %4050 = vmatprep.subr.bf16.mxu0 0
    %4051 = vmatpush2.bf16.msra.mxu0 0
    %4052 = vmatprep.subr.bf16.mxu0 0
    %4053 = vmatpush2.bf16.msra.mxu0 0
    %4054 = vmatprep.subr.bf16.mxu0 0
    %4055 = vmatpush2.bf16.msra.mxu0 0
    %4056 = vmatprep.subr.bf16.mxu0 0
    %4057 = vmatpush2.bf16.msra.mxu0 0
    %4058 = vmatprep.subr.bf16.mxu0 0
    %4059 = vmatpush2.bf16.msra.mxu0 0
    %4060 = vmatprep.subr.bf16.mxu0 0
    %4061 = vmatpush2.bf16.msra.mxu0 0
    %4062 = vmatprep.subr.bf16.mxu0 0
    %4063 = vmatpush2.bf16.msra.mxu0 0
    %4064 = vmatprep.subr.bf16.mxu0 0
    %4065 = vmatpush2.bf16.msra.mxu0 0
    %4066 = vmatprep.mubr.bf16.mxu0 0
    %4067 = vmatmul.mubr.bf16.gmra.mxu0 %v4029
    %v4068 = vpop.f32.mrf.mxu0
    %v4069 = vadd.f32 0.0, %v4068
    %v4070 = vpop.f32.mrf.mxu0
    %v4071 = vpop.f32.mrf.mxu0
    %v4072 = vpop.f32.mrf.mxu0
    %4073 = vdwg.mxu0
    %4074 = vrot.lane.b32.xlu0 %v2693, 64
    %v4075 = vpop.permute.xlu0 %4074
    %v4077 = vsel %vm238, %v3831, 0
    %v4080 = vsel %vm1631, %v4075, 0
    %4082 = vmatprep.subr.bf16.mxu0 0
    %4083 = vmatpush1.bf16.msra.mxu0 0
    %4084 = vmatprep.subr.bf16.mxu0 0
    %4085 = vmatpush1.bf16.msra.mxu0 0
    %4086 = vmatprep.subr.bf16.mxu0 0
    %4087 = vmatpush1.bf16.msra.mxu0 0
    %4088 = vmatprep.subr.bf16.mxu0 0
    %4089 = vmatpush1.bf16.msra.mxu0 0
    %4090 = vmatprep.subr.bf16.mxu0 0
    %4091 = vmatpush1.bf16.msra.mxu0 0
    %4092 = vmatprep.subr.bf16.mxu0 0
    %4093 = vmatpush1.bf16.msra.mxu0 0
    %4094 = vmatprep.subr.bf16.mxu0 0
    %4095 = vmatpush1.bf16.msra.mxu0 0
    %4096 = vmatprep.subr.bf16.mxu0 0
    %4097 = vmatpush1.bf16.msra.mxu0 %v4080
    %4098 = vmatprep.subr.bf16.mxu0 0
    %4099 = vmatpush2.bf16.msra.mxu0 0
    %4100 = vmatprep.subr.bf16.mxu0 0
    %4101 = vmatpush2.bf16.msra.mxu0 0
    %4102 = vmatprep.subr.bf16.mxu0 0
    %4103 = vmatpush2.bf16.msra.mxu0 0
    %4104 = vmatprep.subr.bf16.mxu0 0
    %4105 = vmatpush2.bf16.msra.mxu0 0
    %4106 = vmatprep.subr.bf16.mxu0 0
    %4107 = vmatpush2.bf16.msra.mxu0 0
    %4108 = vmatprep.subr.bf16.mxu0 0
    %4109 = vmatpush2.bf16.msra.mxu0 0
    %4110 = vmatprep.subr.bf16.mxu0 0
    %4111 = vmatpush2.bf16.msra.mxu0 0
    %4112 = vmatprep.subr.bf16.mxu0 0
    %4113 = vmatpush2.bf16.msra.mxu0 0
    %4114 = vmatprep.mubr.bf16.mxu0 0
    %4115 = vmatmul.mubr.bf16.gmra.mxu0 %v4077
    %v4116 = vpop.f32.mrf.mxu0
    %v4117 = vadd.f32 0.0, %v4116
    %v4118 = vpop.f32.mrf.mxu0
    %v4119 = vpop.f32.mrf.mxu0
    %v4120 = vpop.f32.mrf.mxu0
    %4121 = vdwg.mxu0
    %4122 = vrot.lane.b32.xlu0 %v2743, 64
    %v4123 = vpop.permute.xlu0 %4122
    %v4125 = vsel %vm238, %v3832, 0
    %v4128 = vsel %vm1631, %v4123, 0
    %4130 = vmatprep.subr.bf16.mxu0 0
    %4131 = vmatpush1.bf16.msra.mxu0 0
    %4132 = vmatprep.subr.bf16.mxu0 0
    %4133 = vmatpush1.bf16.msra.mxu0 0
    %4134 = vmatprep.subr.bf16.mxu0 0
    %4135 = vmatpush1.bf16.msra.mxu0 0
    %4136 = vmatprep.subr.bf16.mxu0 0
    %4137 = vmatpush1.bf16.msra.mxu0 0
    %4138 = vmatprep.subr.bf16.mxu0 0
    %4139 = vmatpush1.bf16.msra.mxu0 0
    %4140 = vmatprep.subr.bf16.mxu0 0
    %4141 = vmatpush1.bf16.msra.mxu0 0
    %4142 = vmatprep.subr.bf16.mxu0 0
    %4143 = vmatpush1.bf16.msra.mxu0 0
    %4144 = vmatprep.subr.bf16.mxu0 0
    %4145 = vmatpush1.bf16.msra.mxu0 %v4128
    %4146 = vmatprep.subr.bf16.mxu0 0
    %4147 = vmatpush2.bf16.msra.mxu0 0
    %4148 = vmatprep.subr.bf16.mxu0 0
    %4149 = vmatpush2.bf16.msra.mxu0 0
    %4150 = vmatprep.subr.bf16.mxu0 0
    %4151 = vmatpush2.bf16.msra.mxu0 0
    %4152 = vmatprep.subr.bf16.mxu0 0
    %4153 = vmatpush2.bf16.msra.mxu0 0
    %4154 = vmatprep.subr.bf16.mxu0 0
    %4155 = vmatpush2.bf16.msra.mxu0 0
    %4156 = vmatprep.subr.bf16.mxu0 0
    %4157 = vmatpush2.bf16.msra.mxu0 0
    %4158 = vmatprep.subr.bf16.mxu0 0
    %4159 = vmatpush2.bf16.msra.mxu0 0
    %4160 = vmatprep.subr.bf16.mxu0 0
    %4161 = vmatpush2.bf16.msra.mxu0 0
    %4162 = vmatprep.mubr.bf16.mxu0 0
    %4163 = vmatmul.mubr.bf16.gmra.mxu0 %v4125
    %v4164 = vpop.f32.mrf.mxu0
    %v4165 = vadd.f32 0.0, %v4164
    %v4166 = vpop.f32.mrf.mxu0
    %v4167 = vpop.f32.mrf.mxu0
    %v4168 = vpop.f32.mrf.mxu0
    %4169 = vdwg.mxu0
    %4170 = vrot.lane.b32.xlu0 %v2793, 64
    %v4171 = vpop.permute.xlu0 %4170
    %v4173 = vsel %vm238, %v3833, 0
    %v4176 = vsel %vm1631, %v4171, 0
    %4178 = vmatprep.subr.bf16.mxu0 0
    %4179 = vmatpush1.bf16.msra.mxu0 0
    %4180 = vmatprep.subr.bf16.mxu0 0
    %4181 = vmatpush1.bf16.msra.mxu0 0
    %4182 = vmatprep.subr.bf16.mxu0 0
    %4183 = vmatpush1.bf16.msra.mxu0 0
    %4184 = vmatprep.subr.bf16.mxu0 0
    %4185 = vmatpush1.bf16.msra.mxu0 0
    %4186 = vmatprep.subr.bf16.mxu0 0
    %4187 = vmatpush1.bf16.msra.mxu0 0
    %4188 = vmatprep.subr.bf16.mxu0 0
    %4189 = vmatpush1.bf16.msra.mxu0 0
    %4190 = vmatprep.subr.bf16.mxu0 0
    %4191 = vmatpush1.bf16.msra.mxu0 0
    %4192 = vmatprep.subr.bf16.mxu0 0
    %4193 = vmatpush1.bf16.msra.mxu0 %v4176
    %4194 = vmatprep.subr.bf16.mxu0 0
    %4195 = vmatpush2.bf16.msra.mxu0 0
    %4196 = vmatprep.subr.bf16.mxu0 0
    %4197 = vmatpush2.bf16.msra.mxu0 0
    %4198 = vmatprep.subr.bf16.mxu0 0
    %4199 = vmatpush2.bf16.msra.mxu0 0
    %4200 = vmatprep.subr.bf16.mxu0 0
    %4201 = vmatpush2.bf16.msra.mxu0 0
    %4202 = vmatprep.subr.bf16.mxu0 0
    %4203 = vmatpush2.bf16.msra.mxu0 0
    %4204 = vmatprep.subr.bf16.mxu0 0
    %4205 = vmatpush2.bf16.msra.mxu0 0
    %4206 = vmatprep.subr.bf16.mxu0 0
    %4207 = vmatpush2.bf16.msra.mxu0 0
    %4208 = vmatprep.subr.bf16.mxu0 0
    %4209 = vmatpush2.bf16.msra.mxu0 0
    %4210 = vmatprep.mubr.bf16.mxu0 0
    %4211 = vmatmul.mubr.bf16.gmra.mxu0 %v4173
    %v4212 = vpop.f32.mrf.mxu0
    %v4213 = vadd.f32 0.0, %v4212
    %v4214 = vpop.f32.mrf.mxu0
    %v4215 = vpop.f32.mrf.mxu0
    %v4216 = vpop.f32.mrf.mxu0
    %4217 = vdwg.mxu0
    %4220 = vrot.lane.b32.xlu0 %v3925, 8
    %v4221 = vpop.permute.xlu0 %4220
    %4222 = vrot.lane.b32.xlu0 %v4117, 8
    %v4223 = vpop.permute.xlu0 %4222
    %4228 = vrot.lane.b32.xlu0 %v3973, 16
    %v4229 = vpop.permute.xlu0 %4228
    %4230 = vrot.lane.b32.xlu0 %v4165, 16
    %v4231 = vpop.permute.xlu0 %4230
    %4236 = vrot.lane.b32.xlu0 %v4021, 24
    %v4237 = vpop.permute.xlu0 %4236
    %4238 = vrot.lane.b32.xlu0 %v4213, 24
    %v4239 = vpop.permute.xlu0 %4238
    %v4242 = vsel %vm238, %v3877, %v4221
    %v4243 = vsel %vm238, %v4069, %v4223
    %v4244 = vsel %vm101, %v4242, %v4229
    %v4245 = vsel %vm101, %v4243, %v4231
    %v4246 = vsel %vm2039, %v4244, %v4237
    %v4247 = vsel %vm2039, %v4245, %v4239
    %v4248 = vpack.c.bf16 %v4247, %v4246
    %s4249 = scalar_lea.vmem %s5, 16
    %v4250 = vld [vmem:[%s4249] sm:$0xf]
    %v4251 = vld [vmem:[%s4249 + $0x4] sm:$0xf]
    %v4252 = vld [vmem:[%s4249 + $0x8] sm:$0xf]
    %v4253 = vld [vmem:[%s4249 + $0xc] sm:$0xf]
    %s4254 = scalar_lea.vmem %s6, 1
    %v4255 = vld [vmem:[%s4254] sm:$0x1]
    %v4257 = vlaneseq
    %v4258 = vshrl.u32 %v4257, 7
    %v4259 = vsub.s32 0, %v4258
    %v4260 = vrot.slane %v4255, %v4259
    %v4266 = vunpack.c.l.b16 %v4250
    %v4267 = vunpack.c.l.b16 %v4251
    %v4268 = vunpack.c.l.b16 %v4252
    %v4269 = vunpack.c.l.b16 %v4253
    %v4270 = vpack.c.b16 %v4267, %v4266
    %v4271 = vpack.c.b16 %v4269, %v4268
    %v4275 = vsel %vm173, %v4248, 0
    %4277 = vmatprep.subr.bf16.mxu0 0
    %4278 = vmatpush1.bf16.msra.mxu0 0
    %4279 = vmatprep.subr.bf16.mxu0 0
    %4280 = vmatpush1.bf16.msra.mxu0 0
    %4281 = vmatprep.subr.bf16.mxu0 0
    %4282 = vmatpush1.bf16.msra.mxu0 0
    %4283 = vmatprep.subr.bf16.mxu0 0
    %4284 = vmatpush1.bf16.msra.mxu0 0
    %4285 = vmatprep.subr.bf16.mxu0 0
    %4286 = vmatpush1.bf16.msra.mxu0 0
    %4287 = vmatprep.subr.bf16.mxu0 0
    %4288 = vmatpush1.bf16.msra.mxu0 0
    %4289 = vmatprep.subr.bf16.mxu0 0
    %4290 = vmatpush1.bf16.msra.mxu0 %v4271
    %4291 = vmatprep.subr.bf16.mxu0 0
    %4292 = vmatpush1.bf16.msra.mxu0 %v4270
    %4293 = vmatprep.subr.bf16.mxu0 0
    %4294 = vmatpush2.bf16.msra.mxu0 0
    %4295 = vmatprep.subr.bf16.mxu0 0
    %4296 = vmatpush2.bf16.msra.mxu0 0
    %4297 = vmatprep.subr.bf16.mxu0 0
    %4298 = vmatpush2.bf16.msra.mxu0 0
    %4299 = vmatprep.subr.bf16.mxu0 0
    %4300 = vmatpush2.bf16.msra.mxu0 0
    %4301 = vmatprep.subr.bf16.mxu0 0
    %4302 = vmatpush2.bf16.msra.mxu0 0
    %4303 = vmatprep.subr.bf16.mxu0 0
    %4304 = vmatpush2.bf16.msra.mxu0 0
    %4305 = vmatprep.subr.bf16.mxu0 0
    %4306 = vmatpush2.bf16.msra.mxu0 0
    %4307 = vmatprep.subr.bf16.mxu0 0
    %4308 = vmatpush2.bf16.msra.mxu0 0
    %4309 = vmatprep.mubr.bf16.mxu0 0
    %4310 = vmatmul.mubr.bf16.gmra.mxu0 %v4275
    %v4311 = vpop.f32.mrf.mxu0
    %v4312 = vadd.f32 %v4260, %v4311
    %v4313 = vpop.f32.mrf.mxu0
    %v4314 = vpop.f32.mrf.mxu0
    %v4315 = vadd.f32 %v4260, %v4314
    %v4316 = vpop.f32.mrf.mxu0
    %4317 = vdwg.mxu0
    %v4318 = vadd.f32 %v2356, %v4312
    %v4319 = vadd.f32 %v2357, %v4315
    %s4320 = scalar_lea.vmem %s7, 1
    %v4321 = vld [vmem:[%s4320] sm:$0x1]
    %s4322 = scalar_lea.vmem %s8, 1
    %v4323 = vld [vmem:[%s4322] sm:$0x1]
    %v4324 = vsel %vm173, %v4318, 0.0
    %4325 = vadd.xlane.f32.xlu0 %v4324
    %v4326 = vpop.xlane.xlu0 %4325
    %v4327 = vsel %vm173, %v4319, 0.0
    %4328 = vadd.xlane.f32.xlu0 %v4327
    %v4329 = vpop.xlane.xlu0 %4328
    %v4330 = vmul.f32 %v4326, %v2120
    %v4331 = vmul.f32 %v4329, %v2120
    %v4332 = vsub.f32 %v4318, %v4330
    %v4333 = vsub.f32 %v4319, %v4331
    %v4334 = vmul.f32 %v4332, %v4332
    %v4335 = vmul.f32 %v4333, %v4333
    %v4336 = vsel %vm173, %v4334, 0.0
    %4337 = vadd.xlane.f32.xlu0 %v4336
    %v4338 = vpop.xlane.xlu0 %4337
    %v4339 = vsel %vm173, %v4335, 0.0
    %4340 = vadd.xlane.f32.xlu0 %v4339
    %v4341 = vpop.xlane.xlu0 %4340
    %v4342 = vmul.f32 %v4338, %v2120
    %v4343 = vmul.f32 %v4341, %v2120
    %v4344 = vadd.f32 %v4342, 1e-05
    %v4345 = vadd.f32 %v4343, 1e-05
    %v4346 = vrsqrt.pop %v4344
    %v4347 = vrsqrt.pop %v4345
    %v4348 = vmul.f32 %v4332, %v4346
    %v4349 = vmul.f32 %v4333, %v4347
    %v4351 = vlaneseq
    %v4352 = vshrl.u32 %v4351, 7
    %v4353 = vsub.s32 0, %v4352
    %v4354 = vrot.slane %v4321, %v4353
    %v4356 = vmul.f32 %v4348, %v4354
    %v4357 = vmul.f32 %v4349, %v4354
    %v4359 = vlaneseq
    %v4360 = vshrl.u32 %v4359, 7
    %v4361 = vsub.s32 0, %v4360
    %v4362 = vrot.slane %v4323, %v4361
    %v4364 = vadd.f32 %v4356, %v4362
    %v4365 = vadd.f32 %v4357, %v4362
    %v4366 = vpack.c.bf16 %v4365, %v4364
    %s4367 = scalar_lea.vmem %s9, 16
    %v4368 = vld [vmem:[%s4367] sm:$0xf]
    %v4369 = vld [vmem:[%s4367 + $0x4] sm:$0xf]
    %v4370 = vld [vmem:[%s4367 + $0x8] sm:$0xf]
    %v4371 = vld [vmem:[%s4367 + $0xc] sm:$0xf]
    %s4372 = scalar_lea.vmem [#allocation2], 1
    %v4373 = vld [vmem:[%s4372] sm:$0x1]
    %v4375 = vlaneseq
    %v4376 = vshrl.u32 %v4375, 7
    %v4377 = vsub.s32 0, %v4376
    %v4378 = vrot.slane %v4373, %v4377
    %v4384 = vunpack.c.l.b16 %v4368
    %v4385 = vunpack.c.l.b16 %v4369
    %v4386 = vunpack.c.l.b16 %v4370
    %v4387 = vunpack.c.l.b16 %v4371
    %v4388 = vpack.c.b16 %v4385, %v4384
    %v4389 = vpack.c.b16 %v4387, %v4386
    %v4393 = vsel %vm173, %v4366, 0
    %4395 = vmatprep.subr.bf16.mxu0 0
    %4396 = vmatpush1.bf16.msra.mxu0 0
    %4397 = vmatprep.subr.bf16.mxu0 0
    %4398 = vmatpush1.bf16.msra.mxu0 0
    %4399 = vmatprep.subr.bf16.mxu0 0
    %4400 = vmatpush1.bf16.msra.mxu0 0
    %4401 = vmatprep.subr.bf16.mxu0 0
    %4402 = vmatpush1.bf16.msra.mxu0 0
    %4403 = vmatprep.subr.bf16.mxu0 0
    %4404 = vmatpush1.bf16.msra.mxu0 0
    %4405 = vmatprep.subr.bf16.mxu0 0
    %4406 = vmatpush1.bf16.msra.mxu0 0
    %4407 = vmatprep.subr.bf16.mxu0 0
    %4408 = vmatpush1.bf16.msra.mxu0 %v4389
    %4409 = vmatprep.subr.bf16.mxu0 0
    %4410 = vmatpush1.bf16.msra.mxu0 %v4388
    %4411 = vmatprep.subr.bf16.mxu0 0
    %4412 = vmatpush2.bf16.msra.mxu0 0
    %4413 = vmatprep.subr.bf16.mxu0 0
    %4414 = vmatpush2.bf16.msra.mxu0 0
    %4415 = vmatprep.subr.bf16.mxu0 0
    %4416 = vmatpush2.bf16.msra.mxu0 0
    %4417 = vmatprep.subr.bf16.mxu0 0
    %4418 = vmatpush2.bf16.msra.mxu0 0
    %4419 = vmatprep.subr.bf16.mxu0 0
    %4420 = vmatpush2.bf16.msra.mxu0 0
    %4421 = vmatprep.subr.bf16.mxu0 0
    %4422 = vmatpush2.bf16.msra.mxu0 0
    %4423 = vmatprep.subr.bf16.mxu0 0
    %4424 = vmatpush2.bf16.msra.mxu0 0
    %4425 = vmatprep.subr.bf16.mxu0 0
    %4426 = vmatpush2.bf16.msra.mxu0 0
    %4427 = vmatprep.mubr.bf16.mxu0 0
    %4428 = vmatmul.mubr.bf16.gmra.mxu0 %v4393
    %v4429 = vpop.f32.mrf.mxu0
    %v4430 = vadd.f32 %v4378, %v4429
    %v4431 = vpop.f32.mrf.mxu0
    %v4432 = vpop.f32.mrf.mxu0
    %v4433 = vadd.f32 %v4378, %v4432
    %v4434 = vpop.f32.mrf.mxu0
    %4435 = vdwg.mxu0
    %v4436 = vmax.f32 %v4430, 0.0
    %v4437 = vmax.f32 %v4433, 0.0
    %v4438 = vpack.c.bf16 %v4437, %v4436
    %s4439 = scalar_lea.vmem %s11, 32
    %v4440 = vld [vmem:[%s4439] sm:$0xf]
    %v4441 = vld [vmem:[%s4439 + $0x4] sm:$0xf]
    %v4442 = vld [vmem:[%s4439 + $0x8] sm:$0xf]
    %v4443 = vld [vmem:[%s4439 + $0xc] sm:$0xf]
    %v4444 = vld [vmem:[%s4439 + $0x10] sm:$0xf]
    %v4445 = vld [vmem:[%s4439 + $0x14] sm:$0xf]
    %v4446 = vld [vmem:[%s4439 + $0x18] sm:$0xf]
    %v4447 = vld [vmem:[%s4439 + $0x1c] sm:$0xf]
    %s4448 = scalar_lea.vmem [#allocation5], 1
    %v4449 = vld [vmem:[%s4448] sm:$0x1]
    %v4451 = vlaneseq
    %v4452 = vshrl.u32 %v4451, 7
    %v4453 = vsub.s32 0, %v4452
    %v4454 = vrot.slane %v4449, %v4453
    %v4464 = vunpack.c.l.b16 %v4440
    %v4465 = vunpack.c.l.b16 %v4441
    %v4466 = vunpack.c.l.b16 %v4442
    %v4467 = vunpack.c.l.b16 %v4443
    %v4468 = vunpack.c.l.b16 %v4444
    %v4469 = vunpack.c.l.b16 %v4445
    %v4470 = vunpack.c.l.b16 %v4446
    %v4471 = vunpack.c.l.b16 %v4447
    %v4472 = vpack.c.b16 %v4465, %v4464
    %v4473 = vpack.c.b16 %v4467, %v4466
    %v4474 = vpack.c.b16 %v4469, %v4468
    %v4475 = vpack.c.b16 %v4471, %v4470
    %v4481 = vsel %vm2267, %v4438, 0
    %4483 = vmatprep.subr.bf16.mxu0 0
    %4484 = vmatpush1.bf16.msra.mxu0 0
    %4485 = vmatprep.subr.bf16.mxu0 0
    %4486 = vmatpush1.bf16.msra.mxu0 0
    %4487 = vmatprep.subr.bf16.mxu0 0
    %4488 = vmatpush1.bf16.msra.mxu0 0
    %4489 = vmatprep.subr.bf16.mxu0 0
    %4490 = vmatpush1.bf16.msra.mxu0 0
    %4491 = vmatprep.subr.bf16.mxu0 0
    %4492 = vmatpush1.bf16.msra.mxu0 %v4475
    %4493 = vmatprep.subr.bf16.mxu0 0
    %4494 = vmatpush1.bf16.msra.mxu0 %v4474
    %4495 = vmatprep.subr.bf16.mxu0 0
    %4496 = vmatpush1.bf16.msra.mxu0 %v4473
    %4497 = vmatprep.subr.bf16.mxu0 0
    %4498 = vmatpush1.bf16.msra.mxu0 %v4472
    %4499 = vmatprep.subr.bf16.mxu0 0
    %4500 = vmatpush2.bf16.msra.mxu0 0
    %4501 = vmatprep.subr.bf16.mxu0 0
    %4502 = vmatpush2.bf16.msra.mxu0 0
    %4503 = vmatprep.subr.bf16.mxu0 0
    %4504 = vmatpush2.bf16.msra.mxu0 0
    %4505 = vmatprep.subr.bf16.mxu0 0
    %4506 = vmatpush2.bf16.msra.mxu0 0
    %4507 = vmatprep.subr.bf16.mxu0 0
    %4508 = vmatpush2.bf16.msra.mxu0 0
    %4509 = vmatprep.subr.bf16.mxu0 0
    %4510 = vmatpush2.bf16.msra.mxu0 0
    %4511 = vmatprep.subr.bf16.mxu0 0
    %4512 = vmatpush2.bf16.msra.mxu0 0
    %4513 = vmatprep.subr.bf16.mxu0 0
    %4514 = vmatpush2.bf16.msra.mxu0 0
    %4515 = vmatprep.mubr.bf16.mxu0 0
    %4516 = vmatmul.mubr.bf16.gmra.mxu0 %v4481
    %v4517 = vpop.f32.mrf.mxu0
    %v4518 = vadd.f32 %v4454, %v4517
    %v4519 = vpop.f32.mrf.mxu0
    %v4520 = vpop.f32.mrf.mxu0
    %v4521 = vadd.f32 %v4454, %v4520
    %v4522 = vpop.f32.mrf.mxu0
    %4523 = vdwg.mxu0
    %v4524 = vadd.f32 %v4364, %v4518
    %v4525 = vadd.f32 %v4365, %v4521
    %s4526 = scalar_lea.vmem %s13, 1
    %v4527 = vld [vmem:[%s4526] sm:$0x1]
    %s4528 = scalar_lea.vmem %s14, 1
    %v4529 = vld [vmem:[%s4528] sm:$0x1]
    %v4530 = vsel %vm173, %v4524, 0.0
    %4531 = vadd.xlane.f32.xlu0 %v4530
    %v4532 = vpop.xlane.xlu0 %4531
    %v4533 = vsel %vm173, %v4525, 0.0
    %4534 = vadd.xlane.f32.xlu0 %v4533
    %v4535 = vpop.xlane.xlu0 %4534
    %v4536 = vmul.f32 %v4532, %v2120
    %v4537 = vmul.f32 %v4535, %v2120
    %v4538 = vsub.f32 %v4524, %v4536
    %v4539 = vsub.f32 %v4525, %v4537
    %v4540 = vmul.f32 %v4538, %v4538
    %v4541 = vmul.f32 %v4539, %v4539
    %v4542 = vsel %vm173, %v4540, 0.0
    %4543 = vadd.xlane.f32.xlu0 %v4542
    %v4544 = vpop.xlane.xlu0 %4543
    %v4545 = vsel %vm173, %v4541, 0.0
    %4546 = vadd.xlane.f32.xlu0 %v4545
    %v4547 = vpop.xlane.xlu0 %4546
    %v4548 = vmul.f32 %v4544, %v2120
    %v4549 = vmul.f32 %v4547, %v2120
    %v4550 = vadd.f32 %v4548, 1e-05
    %v4551 = vadd.f32 %v4549, 1e-05
    %v4552 = vrsqrt.pop %v4550
    %v4553 = vrsqrt.pop %v4551
    %v4554 = vmul.f32 %v4538, %v4552
    %v4555 = vmul.f32 %v4539, %v4553
    %v4557 = vlaneseq
    %v4558 = vshrl.u32 %v4557, 7
    %v4559 = vsub.s32 0, %v4558
    %v4560 = vrot.slane %v4527, %v4559
    %v4562 = vmul.f32 %v4554, %v4560
    %v4563 = vmul.f32 %v4555, %v4560
    %v4565 = vlaneseq
    %v4566 = vshrl.u32 %v4565, 7
    %v4567 = vsub.s32 0, %v4566
    %v4568 = vrot.slane %v4529, %v4567
    %v4570 = vadd.f32 %v4562, %v4568
    %v4571 = vadd.f32 %v4563, %v4568
    %v4572 = vsel %vm173, %v4570, 0.0
    %v4573 = vrot.slane %v4572, 4
    %v4574 = vadd.f32 %v4572, %v4573
    %v4575 = vrot.slane %v4574, 2
    %v4576 = vadd.f32 %v4574, %v4575
    %v4577 = vrot.slane %v4576, 1
    %v4578 = vadd.f32 %v4576, %v4577
    %v4579 = vsel %vm173, %v4571, 0.0
    %v4580 = vrot.slane %v4579, 4
    %v4581 = vadd.f32 %v4579, %v4580
    %v4582 = vrot.slane %v4581, 2
    %v4583 = vadd.f32 %v4581, %v4582
    %v4584 = vrot.slane %v4583, 1
    %v4585 = vadd.f32 %v4583, %v4584
    %v4586 = vrcp.pop 8.0
    %v4587 = vmul.f32 %v4578, %v4586
    %v4588 = vmul.f32 %v4585, %v4586
    %v4589 = vpack.c.bf16 %v4587, %v4587
    %v4590 = vpack.c.bf16 %v4588, %v4588
    %v4591 = vld [vmem:[%s15] sm:$0xf]
    %v4592 = vld [vmem:[%s15 + $0x4] sm:$0xf]
    %v4593 = vld [vmem:[%s15 + $0x8] sm:$0xf]
    %v4594 = vld [vmem:[%s15 + $0xc] sm:$0xf]
    %v4595 = vld [vmem:[%s16] sm:$0x1]
    %v4597 = vlaneseq
    %v4598 = vshrl.u32 %v4597, 7
    %v4599 = vsub.s32 0, %v4598
    %v4600 = vrot.slane %v4595, %v4599
    %v4604 = vunpack.c.l.b16 %v4589
    %v4605 = vunpack.c.l.b16 %v4590
    %vm4606 = vcmask 1041409
    %v4607 = vsel %vm4606, %v4605, %v4604
    %v4608 = vpack.c.b16 %v4607, %v4607
    %v4613 = vunpack.c.l.b16 %v4591
    %v4614 = vunpack.c.l.b16 %v4592
    %v4615 = vunpack.c.l.b16 %v4593
    %v4616 = vunpack.c.l.b16 %v4594
    %v4617 = vpack.c.b16 %v4614, %v4613
    %v4618 = vpack.c.b16 %v4616, %v4615
    %v4622 = vsel %vm173, %v4608, 0
    %4624 = vmatprep.subr.bf16.mxu0 0
    %4625 = vmatpush1.bf16.msra.mxu0 0
    %4626 = vmatprep.subr.bf16.mxu0 0
    %4627 = vmatpush1.bf16.msra.mxu0 0
    %4628 = vmatprep.subr.bf16.mxu0 0
    %4629 = vmatpush1.bf16.msra.mxu0 0
    %4630 = vmatprep.subr.bf16.mxu0 0
    %4631 = vmatpush1.bf16.msra.mxu0 0
    %4632 = vmatprep.subr.bf16.mxu0 0
    %4633 = vmatpush1.bf16.msra.mxu0 0
    %4634 = vmatprep.subr.bf16.mxu0 0
    %4635 = vmatpush1.bf16.msra.mxu0 0
    %4636 = vmatprep.subr.bf16.mxu0 0
    %4637 = vmatpush1.bf16.msra.mxu0 %v4618
    %4638 = vmatprep.subr.bf16.mxu0 0
    %4639 = vmatpush1.bf16.msra.mxu0 %v4617
    %4640 = vmatprep.subr.bf16.mxu0 0
    %4641 = vmatpush2.bf16.msra.mxu0 0
    %4642 = vmatprep.subr.bf16.mxu0 0
    %4643 = vmatpush2.bf16.msra.mxu0 0
    %4644 = vmatprep.subr.bf16.mxu0 0
    %4645 = vmatpush2.bf16.msra.mxu0 0
    %4646 = vmatprep.subr.bf16.mxu0 0
    %4647 = vmatpush2.bf16.msra.mxu0 0
    %4648 = vmatprep.subr.bf16.mxu0 0
    %4649 = vmatpush2.bf16.msra.mxu0 0
    %4650 = vmatprep.subr.bf16.mxu0 0
    %4651 = vmatpush2.bf16.msra.mxu0 0
    %4652 = vmatprep.subr.bf16.mxu0 0
    %4653 = vmatpush2.bf16.msra.mxu0 0
    %4654 = vmatprep.subr.bf16.mxu0 0
    %4655 = vmatpush2.bf16.msra.mxu0 0
    %4656 = vmatprep.mubr.bf16.mxu0 0
    %4657 = vmatmul.mubr.bf16.gmra.mxu0 %v4622
    %v4658 = vpop.f32.mrf.mxu0
    %v4659 = vadd.f32 %v4600, %v4658
    %v4660 = vpop.f32.mrf.mxu0
    %v4661 = vpop.f32.mrf.mxu0
    %v4662 = vpop.f32.mrf.mxu0
    %4663 = vdwg.mxu0
    %vm4664 = vcmask 74752
    %4665 = vst.msk [vmem:[#allocation7] sm:$0x3] %vm4664, %v4659
    // Predicated region
    $region78: #{transformer_forward.1} parent=1 // pred_check
      _
    $region79: #{transformer_forward.1} parent=1 // pred_check_branch
      %4667 = sbr.rel (0) target = $region81
    $region80: #{transformer_forward.1} parent=1 // pred_region
      %s4669 = ssub.s32 32, 32
      %4670 = vsyncadd [#allocation4], %s4669
      %s4672 = sshll.u32 [#allocation7], 4
      %s4673 = int_to_ptr.vmem [resolvable:$true] %s4672
      %4675 = dma.vmem_to_hbm [thread:$0]  %s4673, 32, %s17, [#allocation4]
    $region81: #{transformer_forward.1} parent=1 // pred_fallthru
      _
    // Predicated region
    $region82: #{transformer_forward.1} parent=1 // pred_check
      _
    $region83: #{transformer_forward.1} parent=1 // pred_check_branch
      %4677 = sbr.rel (0) target = $region85
    $region84: #{transformer_forward.1} parent=1 // pred_region
      %s4679 = ssub.s32 1024, 1024
      %4680 = vsyncadd [#allocation9], %s4679
      %s4681 = sshll.u32 [#allocation8], 4
      %s4682 = int_to_ptr.vmem [resolvable:$true] %s4681
      %4687 = dma.vmem_to_hbm [thread:$0]  %s4682, 1024, %s18, [#allocation9], 128, 128, 8
    $region85: #{transformer_forward.1} parent=1 // pred_fallthru
      _
    // Predicated region
    $region86: #{transformer_forward.1} parent=1 // pred_check
      _
    $region87: #{transformer_forward.1} parent=1 // pred_check_branch
      %4689 = sbr.rel (0) target = $region89
    $region88: #{transformer_forward.1} parent=1 // pred_region
      %s4691 = ssub.s32 1024, 1024
      %4692 = vsyncadd [#allocation9], %s4691
      %s4693 = sshll.u32 [#allocation10], 4
      %s4694 = int_to_ptr.vmem [resolvable:$true] %s4693
      %4699 = dma.vmem_to_hbm [thread:$0]  %s4694, 1024, %s19, [#allocation9], 128, 128, 8
    $region89: #{transformer_forward.1} parent=1 // pred_fallthru
      _
    // Predicated region
    $region90: #{transformer_forward.1} parent=1 // pred_check
      _
    $region91: #{transformer_forward.1} parent=1 // pred_check_branch
      %4701 = sbr.rel (0) target = $region93
    $region92: #{transformer_forward.1} parent=1 // pred_region
      %4702 = dma.done [#allocation4], 32
    $region93: #{transformer_forward.1} parent=1 // pred_fallthru
      _
    // Predicated region
    $region94: #{transformer_forward.1} parent=1 // pred_check
      _
    $region95: #{transformer_forward.1} parent=1 // pred_check_branch
      %4704 = sbr.rel (0) target = $region97
    $region96: #{transformer_forward.1} parent=1 // pred_region
      %4705 = dma.done [#allocation9], 1024
    $region97: #{transformer_forward.1} parent=1 // pred_fallthru
      _
    // Predicated region
    $region98: #{transformer_forward.1} parent=1 // pred_check
      _
    $region99: #{transformer_forward.1} parent=1 // pred_check_branch
      %4707 = sbr.rel (0) target = $region101
    $region100: #{transformer_forward.1} parent=1 // pred_region
      %4708 = dma.done [#allocation9], 1024
    $region101: #{transformer_forward.1} parent=1 // pred_fallthru
      _
    %4709 = vsyncpa [#allocation3], 1
    %4710 = vsyncpa [#allocation6], 1
    %4711 = vsyncpa [#allocation4], 1
    %4712 = vsyncpa [#allocation9], 1

</llo_original>
